<compile_context>
chip_gen: v7x
topology: tpu7x:2x2x1
jax: 0.10.0
libtpu: 0.0.40
codegen_flags: <defaults>
</compile_context>

<pallas_src>
import numpy as np

import jax
import jax.numpy as jnp
from jax.experimental import pallas as pl
from jax.experimental.pallas import tpu as pltpu


# ----------------------------------------------------------------------------
# Host-side (run once): fold a conv weight into per-height-tap Toeplitz
# matrices over the width axis.
#   T[i, x*Cin+ci, ow*Cout+co] = w[co, ci, i, j]   where x = S*ow + j - P
# ----------------------------------------------------------------------------
def _fold_conv_weight(w_oihw, in_h, in_w, stride, pad):
    cout, cin, kh, kw = w_oihw.shape
    out_h = (in_h + 2 * pad - kh) // stride + 1
    out_w = (in_w + 2 * pad - kw) // stride + 1
    place = np.zeros((kw, in_w, out_w), np.float32)
    for ow in range(out_w):
        for j in range(kw):
            x = stride * ow + j - pad
            if 0 <= x < in_w:
                place[j, x, ow] = 1.0
    # T[i, x, ci, ow, co] = sum_j place[j, x, ow] * w[co, ci, i, j]
    t = jnp.einsum("jxw,ocij->ixcwo", jnp.asarray(place),
                   w_oihw.astype(jnp.float32))
    t = t.reshape(kh, in_w * cin, out_w * cout)
    return t, out_h, out_w


def _row_select(in_h, out_h, kh, stride, pad):
    """0/1 matrices: SEL[i] @ X picks padded row (stride*oh + i - pad)."""
    sel = np.zeros((kh, out_h, in_h), np.float32)
    for i in range(kh):
        for oh in range(out_h):
            r = stride * oh + i - pad
            if 0 <= r < in_h:
                sel[i, oh, r] = 1.0
    return jnp.asarray(sel)


def prepare_params(params, image_size):
    """Fold all conv weights / biases once; returns kernel-ready tensors."""
    h = w = image_size
    main = []
    for (wgt, b) in params["main"]:
        kh = wgt.shape[2]
        t, oh, ow = _fold_conv_weight(wgt, h, w, stride=2, pad=1)
        sel = _row_select(h, oh, kh, stride=2, pad=1)
        cout = wgt.shape[0]
        b_row = jnp.tile(b.astype(jnp.float32), ow).reshape(1, ow * cout)
        main.append((sel, t, b_row))
        h, w = oh, ow

    t_src, oh_s, ow_s = _fold_conv_weight(params["conv1_w"], h, w, 1, 1)
    sel_src = _row_select(h, oh_s, params["conv1_w"].shape[2], 1, 1)
    t_cls, oh_c, ow_c = _fold_conv_weight(params["conv2_w"], h, w, 1, 0)
    sel_cls = _row_select(h, oh_c, params["conv2_w"].shape[2], 1, 0)
    assert (oh_c, ow_c) == (1, 1), "conv2 must collapse the spatial dims"

    return dict(
        main=main,
        sel_src=sel_src, t_src=t_src, src_hw=(oh_s, ow_s),
        sel_cls=sel_cls, t_cls=t_cls,
        c_dim=int(params["conv2_w"].shape[0]),
    )


# ----------------------------------------------------------------------------
# In-kernel conv layer: out = sum_i (SEL[i] @ X) @ T[i]  (+ bias) (LeakyReLU)
# ----------------------------------------------------------------------------
def _conv_layer(x, sel_ref, t_ref, b_row, *, leaky, slope=0.01):
    """x: (H_in, W_in*Cin) value.  sel_ref: (KH, OH, H_in).  t_ref: (KH, W_in*Cin, OW*Cout)."""
    kh = t_ref.shape[0]
    oh = sel_ref.shape[1]
    owc = t_ref.shape[2]

    acc = jnp.zeros((oh, owc), jnp.float32)
    for i in range(kh):
        # Row selection (handles height stride + zero padding) — tiny MXU dot.
        rows = jnp.dot(sel_ref[i], x, preferred_element_type=jnp.float32)
        # Width taps / stride / padding folded into T[i] — main MXU dot.
        acc = acc + jnp.dot(rows, t_ref[i], preferred_element_type=jnp.float32)

    if b_row is not None:
        acc = acc + b_row
    if leaky:
        acc = jnp.where(acc >= 0.0, acc, slope * acc)
    return acc


def _make_fused_kernel(n_main):
    def kernel(*refs):
        x_ref = refs[0]
        layer_refs = refs[1:1 + 3 * n_main]
        sel_src_ref = refs[1 + 3 * n_main]
        t_src_ref = refs[2 + 3 * n_main]
        sel_cls_ref = refs[3 + 3 * n_main]
        t_cls_ref = refs[4 + 3 * n_main]
        src_ref = refs[5 + 3 * n_main]
        cls_ref = refs[6 + 3 * n_main]

        h = x_ref[0].astype(jnp.float32)            # (H, W*Cin) for sample n
        for li in range(n_main):
            sel_ref = layer_refs[3 * li]
            t_ref = layer_refs[3 * li + 1]
            b_ref = layer_refs[3 * li + 2]
            h = _conv_layer(h, sel_ref, t_ref, b_ref[...], leaky=True)

        src = _conv_layer(h, sel_src_ref, t_src_ref, None, leaky=False)
        cls = _conv_layer(h, sel_cls_ref, t_cls_ref, None, leaky=False)

        src_ref[0] = src.astype(src_ref.dtype)
        cls_ref[0] = cls.astype(cls_ref.dtype)

    return kernel


def _const_index_map(ndim):
    zeros = (0,) * ndim
    return lambda i: zeros


# ----------------------------------------------------------------------------
# Forward: one fused pallas_call, grid over the batch ("parallel" for v7x).
# ----------------------------------------------------------------------------
def discriminator_forward(x_nchw, prep):
    n, cin, h, w = x_nchw.shape
    x3d = jnp.transpose(x_nchw, (0, 2, 3, 1)).reshape(n, h, w * cin)

    oh_s, ow_s = prep["src_hw"]
    c_dim = prep["c_dim"]

    # kernel input tensors (all pre-folded once in prepare_params)
    weights = []
    for (sel, t, b_row) in prep["main"]:
        weights += [sel, t, b_row]
    weights += [prep["sel_src"], prep["t_src"], prep["sel_cls"], prep["t_cls"]]

    in_specs = [pl.BlockSpec((1, h, w * cin), lambda i: (i, 0, 0))]
    for t in weights:
        in_specs.append(pl.BlockSpec(t.shape, _const_index_map(t.ndim)))

    out_shape = (jax.ShapeDtypeStruct((n, oh_s, ow_s), jnp.float32),
                 jax.ShapeDtypeStruct((n, 1, c_dim), jnp.float32))
    out_specs = (pl.BlockSpec((1, oh_s, ow_s), lambda i: (i, 0, 0)),
                 pl.BlockSpec((1, 1, c_dim), lambda i: (i, 0, 0)))

    # advisory cost estimate so XLA can overlap surrounding ops with the call
    flops = 0
    all_layers = [(sel, t) for (sel, t, _) in prep["main"]]
    all_layers += [(prep["sel_src"], prep["t_src"]),
                   (prep["sel_cls"], prep["t_cls"])]
    for (sel, t) in all_layers:
        kh, oh, h_in = sel.shape
        _, wcin, owc = t.shape
        flops += n * kh * (2 * oh * h_in * wcin + 2 * oh * wcin * owc)
    bytes_accessed = (int(x3d.size) + sum(int(t.size) for t in weights)
                      + n * oh_s * ow_s + n * c_dim) * 4

    kernel = _make_fused_kernel(len(prep["main"]))

    out_src3d, out_cls3d = pl.pallas_call(
        kernel,
        out_shape=out_shape,
        grid=(n,),
        in_specs=in_specs,
        out_specs=out_specs,
        compiler_params=pltpu.CompilerParams(
            dimension_semantics=("parallel",)),
        cost_estimate=pl.CostEstimate(flops=flops, transcendentals=0,
                                      bytes_accessed=bytes_accessed),
    )(x3d, *weights)

    out_src = out_src3d.reshape(n, oh_s, ow_s, 1).transpose(0, 3, 1, 2)
    out_cls = out_cls3d.reshape(n, c_dim)
    return out_src, out_cls


# ----------------------------------------------------------------------------
# Pure-JAX reference (correctness check)
# ----------------------------------------------------------------------------
def reference_forward(x_nchw, params):
    def conv(x, w, b, stride, pad):
        out = jax.lax.conv_general_dilated(
            x, w, (stride, stride), [(pad, pad), (pad, pad)],
            dimension_numbers=("NCHW", "OIHW", "NCHW"))
        if b is not None:
            out = out + b[None, :, None, None]
        return out

    h = x_nchw
    for (w, b) in params["main"]:
        h = conv(h, w, b, 2, 1)
        h = jnp.where(h >= 0, h, 0.01 * h)
    out_src = conv(h, params["conv1_w"], None, 1, 1)
    out_cls = conv(h, params["conv2_w"], None, 1, 0)
    return out_src, out_cls.reshape(out_cls.shape[0], out_cls.shape[1])


# ----------------------------------------------------------------------------
# Deterministic parameter init (shapes from Discriminator.__init__)
# ----------------------------------------------------------------------------
def init_params(key, image_size=16, conv_dim=8, c_dim=5, repeat_num=2,
                colored_input=False):
    params = {"main": []}
    in_ch = 3 if colored_input else 1
    curr = conv_dim
    specs = [(in_ch, conv_dim)]
    for _ in range(1, repeat_num):
        specs.append((curr, curr * 2))
        curr *= 2
    for (cin, cout) in specs:
        key, kw_, kb_ = jax.random.split(key, 3)
        w = jax.random.normal(kw_, (cout, cin, 4, 4), jnp.float32) * 0.05
        b = jax.random.normal(kb_, (cout,), jnp.float32) * 0.05
        params["main"].append((w, b))
    ksz = image_size // (2 ** repeat_num)
    key, k1, k2 = jax.random.split(key, 3)
    params["conv1_w"] = jax.random.normal(k1, (1, curr, 3, 3), jnp.float32) * 0.05
    params["conv2_w"] = jax.random.normal(k2, (c_dim, curr, ksz, ksz),
                                          jnp.float32) * 0.05
    return params


if __name__ == "__main__":
    image_size, conv_dim, c_dim, repeat_num = 16, 8, 5, 2
    batch = 2

    key = jax.random.PRNGKey(0)
    key, kx = jax.random.split(key)
    x = jax.random.normal(kx, (batch, 1, image_size, image_size), jnp.float32)
    params = init_params(key, image_size, conv_dim, c_dim, repeat_num)
    prep = prepare_params(params, image_size)   # one-time weight folding

    out_src, out_cls = discriminator_forward(x, prep)
    out_src = jax.block_until_ready(out_src)
    out_cls = jax.block_until_ready(out_cls)

    # sanity: shapes + numerics vs pure-JAX reference
    ref_src, ref_cls = reference_forward(x, params)
    fs = image_size // (2 ** repeat_num)
    assert out_src.shape == (batch, 1, fs, fs), out_src.shape
    assert out_cls.shape == (batch, c_dim), out_cls.shape
    assert jnp.allclose(out_src, ref_src, atol=1e-4, rtol=1e-4), \
        float(jnp.max(jnp.abs(out_src - ref_src)))
    assert jnp.allclose(out_cls, ref_cls, atol=1e-4, rtol=1e-4), \
        float(jnp.max(jnp.abs(out_cls - ref_cls)))

    print("KERNEL_OK")
</pallas_src>

<mosaic_0001>
module attributes {stable_mosaic.version = 11 : i64} {
  func.func @kernel(%arg0: i32, %arg1: memref<1x16x16xf32, #tpu.memory_space<vmem>>, %arg2: memref<4x8x16xf32, #tpu.memory_space<vmem>>, %arg3: memref<4x16x64xf32, #tpu.memory_space<vmem>>, %arg4: memref<1x64xf32, #tpu.memory_space<vmem>>, %arg5: memref<4x4x8xf32, #tpu.memory_space<vmem>>, %arg6: memref<4x64x64xf32, #tpu.memory_space<vmem>>, %arg7: memref<1x64xf32, #tpu.memory_space<vmem>>, %arg8: memref<3x4x4xf32, #tpu.memory_space<vmem>>, %arg9: memref<3x64x4xf32, #tpu.memory_space<vmem>>, %arg10: memref<4x1x4xf32, #tpu.memory_space<vmem>>, %arg11: memref<4x64x5xf32, #tpu.memory_space<vmem>>, %arg12: memref<1x4x4xf32, #tpu.memory_space<vmem>>, %arg13: memref<1x1x5xf32, #tpu.memory_space<vmem>>) attributes {dimension_semantics = [#tpu.dimension_semantics<parallel>], iteration_bounds = array<i64: 2>, scalar_prefetch = 0 : i64, scratch_operands = 0 : i64, tpu.core_type = #tpu.core_type<tc>, window_params = [{transform_indices = @transform_0, window_bounds = array<i64: 1, 16, 16>}, {pipeline_mode = #tpu.pipeline_mode<synchronous>, transform_indices = @transform_1, window_bounds = array<i64: 4, 8, 16>}, {pipeline_mode = #tpu.pipeline_mode<synchronous>, transform_indices = @transform_2, window_bounds = array<i64: 4, 16, 64>}, {pipeline_mode = #tpu.pipeline_mode<synchronous>, transform_indices = @transform_3, window_bounds = array<i64: 1, 64>}, {pipeline_mode = #tpu.pipeline_mode<synchronous>, transform_indices = @transform_4, window_bounds = array<i64: 4, 4, 8>}, {pipeline_mode = #tpu.pipeline_mode<synchronous>, transform_indices = @transform_5, window_bounds = array<i64: 4, 64, 64>}, {pipeline_mode = #tpu.pipeline_mode<synchronous>, transform_indices = @transform_6, window_bounds = array<i64: 1, 64>}, {pipeline_mode = #tpu.pipeline_mode<synchronous>, transform_indices = @transform_7, window_bounds = array<i64: 3, 4, 4>}, {pipeline_mode = #tpu.pipeline_mode<synchronous>, transform_indices = @transform_8, window_bounds = array<i64: 3, 64, 4>}, {pipeline_mode = #tpu.pipeline_mode<synchronous>, transform_indices = @transform_9, window_bounds = array<i64: 4, 1, 4>}, {pipeline_mode = #tpu.pipeline_mode<synchronous>, transform_indices = @transform_10, window_bounds = array<i64: 4, 64, 5>}, {transform_indices = @transform_11, window_bounds = array<i64: 1, 4, 4>}, {transform_indices = @transform_12, window_bounds = array<i64: 1, 1, 5>}]} {
    %c0 = arith.constant 0 : index
    %c0_0 = arith.constant 0 : index
    %c0_1 = arith.constant 0 : index
    %0 = vector.load %arg1[%c0, %c0_0, %c0_1] : memref<1x16x16xf32, #tpu.memory_space<vmem>>, vector<1x16x16xf32>
    %1 = vector.shape_cast %0 : vector<1x16x16xf32> to vector<16x16xf32>
    %c0_2 = arith.constant 0 : index
    %c0_3 = arith.constant 0 : index
    %2 = vector.load %arg4[%c0_2, %c0_3] : memref<1x64xf32, #tpu.memory_space<vmem>>, vector<1x64xf32>
    %cst = arith.constant 0.000000e+00 : f32
    %3 = vector.broadcast %cst : f32 to vector<8x64xf32>
    %c0_4 = arith.constant 0 : index
    %c0_5 = arith.constant 0 : index
    %c0_6 = arith.constant 0 : index
    %4 = vector.load %arg2[%c0_4, %c0_5, %c0_6] : memref<4x8x16xf32, #tpu.memory_space<vmem>>, vector<1x8x16xf32>
    %5 = vector.shape_cast %4 : vector<1x8x16xf32> to vector<8x16xf32>
    %cst_7 = arith.constant dense<0.000000e+00> : vector<8x16xf32>
    %6 = tpu.matmul %5, %1, %cst_7 {dimension_numbers = #tpu.dot_dimension_numbers<[1], [0], [0], [1], [0, 0, 1, 1], [], []>} : vector<8x16xf32>, vector<16x16xf32>, vector<8x16xf32> -> vector<8x16xf32>
    %c0_8 = arith.constant 0 : index
    %c0_9 = arith.constant 0 : index
    %c0_10 = arith.constant 0 : index
    %7 = vector.load %arg3[%c0_8, %c0_9, %c0_10] : memref<4x16x64xf32, #tpu.memory_space<vmem>>, vector<1x16x64xf32>
    %8 = vector.shape_cast %7 : vector<1x16x64xf32> to vector<16x64xf32>
    %cst_11 = arith.constant dense<0.000000e+00> : vector<8x64xf32>
    %9 = tpu.matmul %6, %8, %cst_11 {dimension_numbers = #tpu.dot_dimension_numbers<[1], [0], [0], [1], [0, 0, 1, 1], [], []>} : vector<8x16xf32>, vector<16x64xf32>, vector<8x64xf32> -> vector<8x64xf32>
    %10 = arith.addf %3, %9 : vector<8x64xf32>
    %c1 = arith.constant 1 : index
    %c0_12 = arith.constant 0 : index
    %c0_13 = arith.constant 0 : index
    %11 = vector.load %arg2[%c1, %c0_12, %c0_13] : memref<4x8x16xf32, #tpu.memory_space<vmem>>, vector<1x8x16xf32>
    %12 = vector.shape_cast %11 : vector<1x8x16xf32> to vector<8x16xf32>
    %cst_14 = arith.constant dense<0.000000e+00> : vector<8x16xf32>
    %13 = tpu.matmul %12, %1, %cst_14 {dimension_numbers = #tpu.dot_dimension_numbers<[1], [0], [0], [1], [0, 0, 1, 1], [], []>} : vector<8x16xf32>, vector<16x16xf32>, vector<8x16xf32> -> vector<8x16xf32>
    %c1_15 = arith.constant 1 : index
    %c0_16 = arith.constant 0 : index
    %c0_17 = arith.constant 0 : index
    %14 = vector.load %arg3[%c1_15, %c0_16, %c0_17] : memref<4x16x64xf32, #tpu.memory_space<vmem>>, vector<1x16x64xf32>
    %15 = vector.shape_cast %14 : vector<1x16x64xf32> to vector<16x64xf32>
    %cst_18 = arith.constant dense<0.000000e+00> : vector<8x64xf32>
    %16 = tpu.matmul %13, %15, %cst_18 {dimension_numbers = #tpu.dot_dimension_numbers<[1], [0], [0], [1], [0, 0, 1, 1], [], []>} : vector<8x16xf32>, vector<16x64xf32>, vector<8x64xf32> -> vector<8x64xf32>
    %17 = arith.addf %10, %16 : vector<8x64xf32>
    %c2 = arith.constant 2 : index
    %c0_19 = arith.constant 0 : index
    %c0_20 = arith.constant 0 : index
    %18 = vector.load %arg2[%c2, %c0_19, %c0_20] : memref<4x8x16xf32, #tpu.memory_space<vmem>>, vector<1x8x16xf32>
    %19 = vector.shape_cast %18 : vector<1x8x16xf32> to vector<8x16xf32>
    %cst_21 = arith.constant dense<0.000000e+00> : vector<8x16xf32>
    %20 = tpu.matmul %19, %1, %cst_21 {dimension_numbers = #tpu.dot_dimension_numbers<[1], [0], [0], [1], [0, 0, 1, 1], [], []>} : vector<8x16xf32>, vector<16x16xf32>, vector<8x16xf32> -> vector<8x16xf32>
    %c2_22 = arith.constant 2 : index
    %c0_23 = arith.constant 0 : index
    %c0_24 = arith.constant 0 : index
    %21 = vector.load %arg3[%c2_22, %c0_23, %c0_24] : memref<4x16x64xf32, #tpu.memory_space<vmem>>, vector<1x16x64xf32>
    %22 = vector.shape_cast %21 : vector<1x16x64xf32> to vector<16x64xf32>
    %cst_25 = arith.constant dense<0.000000e+00> : vector<8x64xf32>
    %23 = tpu.matmul %20, %22, %cst_25 {dimension_numbers = #tpu.dot_dimension_numbers<[1], [0], [0], [1], [0, 0, 1, 1], [], []>} : vector<8x16xf32>, vector<16x64xf32>, vector<8x64xf32> -> vector<8x64xf32>
    %24 = arith.addf %17, %23 : vector<8x64xf32>
    %c3 = arith.constant 3 : index
    %c0_26 = arith.constant 0 : index
    %c0_27 = arith.constant 0 : index
    %25 = vector.load %arg2[%c3, %c0_26, %c0_27] : memref<4x8x16xf32, #tpu.memory_space<vmem>>, vector<1x8x16xf32>
    %26 = vector.shape_cast %25 : vector<1x8x16xf32> to vector<8x16xf32>
    %cst_28 = arith.constant dense<0.000000e+00> : vector<8x16xf32>
    %27 = tpu.matmul %26, %1, %cst_28 {dimension_numbers = #tpu.dot_dimension_numbers<[1], [0], [0], [1], [0, 0, 1, 1], [], []>} : vector<8x16xf32>, vector<16x16xf32>, vector<8x16xf32> -> vector<8x16xf32>
    %c3_29 = arith.constant 3 : index
    %c0_30 = arith.constant 0 : index
    %c0_31 = arith.constant 0 : index
    %28 = vector.load %arg3[%c3_29, %c0_30, %c0_31] : memref<4x16x64xf32, #tpu.memory_space<vmem>>, vector<1x16x64xf32>
    %29 = vector.shape_cast %28 : vector<1x16x64xf32> to vector<16x64xf32>
    %cst_32 = arith.constant dense<0.000000e+00> : vector<8x64xf32>
    %30 = tpu.matmul %27, %29, %cst_32 {dimension_numbers = #tpu.dot_dimension_numbers<[1], [0], [0], [1], [0, 0, 1, 1], [], []>} : vector<8x16xf32>, vector<16x64xf32>, vector<8x64xf32> -> vector<8x64xf32>
    %31 = arith.addf %24, %30 : vector<8x64xf32>
    %32 = vector.broadcast %2 : vector<1x64xf32> to vector<8x64xf32>
    %33 = arith.addf %31, %32 : vector<8x64xf32>
    %cst_33 = arith.constant 0.000000e+00 : f32
    %34 = vector.broadcast %cst_33 : f32 to vector<8x64xf32>
    %35 = arith.cmpf oge, %33, %34 : vector<8x64xf32>
    %cst_34 = arith.constant 0.00999999977 : f32
    %36 = vector.broadcast %cst_34 : f32 to vector<8x64xf32>
    %37 = arith.mulf %36, %33 : vector<8x64xf32>
    %38 = arith.select %35, %33, %37 : vector<8x64xi1>, vector<8x64xf32>
    %c0_35 = arith.constant 0 : index
    %c0_36 = arith.constant 0 : index
    %39 = vector.load %arg7[%c0_35, %c0_36] : memref<1x64xf32, #tpu.memory_space<vmem>>, vector<1x64xf32>
    %cst_37 = arith.constant 0.000000e+00 : f32
    %40 = vector.broadcast %cst_37 : f32 to vector<4x64xf32>
    %c0_38 = arith.constant 0 : index
    %c0_39 = arith.constant 0 : index
    %c0_40 = arith.constant 0 : index
    %41 = vector.load %arg5[%c0_38, %c0_39, %c0_40] : memref<4x4x8xf32, #tpu.memory_space<vmem>>, vector<1x4x8xf32>
    %42 = vector.shape_cast %41 : vector<1x4x8xf32> to vector<4x8xf32>
    %cst_41 = arith.constant dense<0.000000e+00> : vector<4x64xf32>
    %43 = tpu.matmul %42, %38, %cst_41 {dimension_numbers = #tpu.dot_dimension_numbers<[1], [0], [0], [1], [0, 0, 1, 1], [], []>} : vector<4x8xf32>, vector<8x64xf32>, vector<4x64xf32> -> vector<4x64xf32>
    %c0_42 = arith.constant 0 : index
    %c0_43 = arith.constant 0 : index
    %c0_44 = arith.constant 0 : index
    %44 = vector.load %arg6[%c0_42, %c0_43, %c0_44] : memref<4x64x64xf32, #tpu.memory_space<vmem>>, vector<1x64x64xf32>
    %45 = vector.shape_cast %44 : vector<1x64x64xf32> to vector<64x64xf32>
    %cst_45 = arith.constant dense<0.000000e+00> : vector<4x64xf32>
    %46 = tpu.matmul %43, %45, %cst_45 {dimension_numbers = #tpu.dot_dimension_numbers<[1], [0], [0], [1], [0, 0, 1, 1], [], []>} : vector<4x64xf32>, vector<64x64xf32>, vector<4x64xf32> -> vector<4x64xf32>
    %47 = arith.addf %40, %46 : vector<4x64xf32>
    %c1_46 = arith.constant 1 : index
    %c0_47 = arith.constant 0 : index
    %c0_48 = arith.constant 0 : index
    %48 = vector.load %arg5[%c1_46, %c0_47, %c0_48] : memref<4x4x8xf32, #tpu.memory_space<vmem>>, vector<1x4x8xf32>
    %49 = vector.shape_cast %48 : vector<1x4x8xf32> to vector<4x8xf32>
    %cst_49 = arith.constant dense<0.000000e+00> : vector<4x64xf32>
    %50 = tpu.matmul %49, %38, %cst_49 {dimension_numbers = #tpu.dot_dimension_numbers<[1], [0], [0], [1], [0, 0, 1, 1], [], []>} : vector<4x8xf32>, vector<8x64xf32>, vector<4x64xf32> -> vector<4x64xf32>
    %c1_50 = arith.constant 1 : index
    %c0_51 = arith.constant 0 : index
    %c0_52 = arith.constant 0 : index
    %51 = vector.load %arg6[%c1_50, %c0_51, %c0_52] : memref<4x64x64xf32, #tpu.memory_space<vmem>>, vector<1x64x64xf32>
    %52 = vector.shape_cast %51 : vector<1x64x64xf32> to vector<64x64xf32>
    %cst_53 = arith.constant dense<0.000000e+00> : vector<4x64xf32>
    %53 = tpu.matmul %50, %52, %cst_53 {dimension_numbers = #tpu.dot_dimension_numbers<[1], [0], [0], [1], [0, 0, 1, 1], [], []>} : vector<4x64xf32>, vector<64x64xf32>, vector<4x64xf32> -> vector<4x64xf32>
    %54 = arith.addf %47, %53 : vector<4x64xf32>
    %c2_54 = arith.constant 2 : index
    %c0_55 = arith.constant 0 : index
    %c0_56 = arith.constant 0 : index
    %55 = vector.load %arg5[%c2_54, %c0_55, %c0_56] : memref<4x4x8xf32, #tpu.memory_space<vmem>>, vector<1x4x8xf32>
    %56 = vector.shape_cast %55 : vector<1x4x8xf32> to vector<4x8xf32>
    %cst_57 = arith.constant dense<0.000000e+00> : vector<4x64xf32>
    %57 = tpu.matmul %56, %38, %cst_57 {dimension_numbers = #tpu.dot_dimension_numbers<[1], [0], [0], [1], [0, 0, 1, 1], [], []>} : vector<4x8xf32>, vector<8x64xf32>, vector<4x64xf32> -> vector<4x64xf32>
    %c2_58 = arith.constant 2 : index
    %c0_59 = arith.constant 0 : index
    %c0_60 = arith.constant 0 : index
    %58 = vector.load %arg6[%c2_58, %c0_59, %c0_60] : memref<4x64x64xf32, #tpu.memory_space<vmem>>, vector<1x64x64xf32>
    %59 = vector.shape_cast %58 : vector<1x64x64xf32> to vector<64x64xf32>
    %cst_61 = arith.constant dense<0.000000e+00> : vector<4x64xf32>
    %60 = tpu.matmul %57, %59, %cst_61 {dimension_numbers = #tpu.dot_dimension_numbers<[1], [0], [0], [1], [0, 0, 1, 1], [], []>} : vector<4x64xf32>, vector<64x64xf32>, vector<4x64xf32> -> vector<4x64xf32>
    %61 = arith.addf %54, %60 : vector<4x64xf32>
    %c3_62 = arith.constant 3 : index
    %c0_63 = arith.constant 0 : index
    %c0_64 = arith.constant 0 : index
    %62 = vector.load %arg5[%c3_62, %c0_63, %c0_64] : memref<4x4x8xf32, #tpu.memory_space<vmem>>, vector<1x4x8xf32>
    %63 = vector.shape_cast %62 : vector<1x4x8xf32> to vector<4x8xf32>
    %cst_65 = arith.constant dense<0.000000e+00> : vector<4x64xf32>
    %64 = tpu.matmul %63, %38, %cst_65 {dimension_numbers = #tpu.dot_dimension_numbers<[1], [0], [0], [1], [0, 0, 1, 1], [], []>} : vector<4x8xf32>, vector<8x64xf32>, vector<4x64xf32> -> vector<4x64xf32>
    %c3_66 = arith.constant 3 : index
    %c0_67 = arith.constant 0 : index
    %c0_68 = arith.constant 0 : index
    %65 = vector.load %arg6[%c3_66, %c0_67, %c0_68] : memref<4x64x64xf32, #tpu.memory_space<vmem>>, vector<1x64x64xf32>
    %66 = vector.shape_cast %65 : vector<1x64x64xf32> to vector<64x64xf32>
    %cst_69 = arith.constant dense<0.000000e+00> : vector<4x64xf32>
    %67 = tpu.matmul %64, %66, %cst_69 {dimension_numbers = #tpu.dot_dimension_numbers<[1], [0], [0], [1], [0, 0, 1, 1], [], []>} : vector<4x64xf32>, vector<64x64xf32>, vector<4x64xf32> -> vector<4x64xf32>
    %68 = arith.addf %61, %67 : vector<4x64xf32>
    %69 = vector.broadcast %39 : vector<1x64xf32> to vector<4x64xf32>
    %70 = arith.addf %68, %69 : vector<4x64xf32>
    %cst_70 = arith.constant 0.000000e+00 : f32
    %71 = vector.broadcast %cst_70 : f32 to vector<4x64xf32>
    %72 = arith.cmpf oge, %70, %71 : vector<4x64xf32>
    %cst_71 = arith.constant 0.00999999977 : f32
    %73 = vector.broadcast %cst_71 : f32 to vector<4x64xf32>
    %74 = arith.mulf %73, %70 : vector<4x64xf32>
    %75 = arith.select %72, %70, %74 : vector<4x64xi1>, vector<4x64xf32>
    %cst_72 = arith.constant 0.000000e+00 : f32
    %76 = vector.broadcast %cst_72 : f32 to vector<4x4xf32>
    %c0_73 = arith.constant 0 : index
    %c0_74 = arith.constant 0 : index
    %c0_75 = arith.constant 0 : index
    %77 = vector.load %arg8[%c0_73, %c0_74, %c0_75] : memref<3x4x4xf32, #tpu.memory_space<vmem>>, vector<1x4x4xf32>
    %78 = vector.shape_cast %77 : vector<1x4x4xf32> to vector<4x4xf32>
    %cst_76 = arith.constant dense<0.000000e+00> : vector<4x64xf32>
    %79 = tpu.matmul %78, %75, %cst_76 {dimension_numbers = #tpu.dot_dimension_numbers<[1], [0], [0], [1], [0, 0, 1, 1], [], []>} : vector<4x4xf32>, vector<4x64xf32>, vector<4x64xf32> -> vector<4x64xf32>
    %c0_77 = arith.constant 0 : index
    %c0_78 = arith.constant 0 : index
    %c0_79 = arith.constant 0 : index
    %80 = vector.load %arg9[%c0_77, %c0_78, %c0_79] : memref<3x64x4xf32, #tpu.memory_space<vmem>>, vector<1x64x4xf32>
    %81 = vector.shape_cast %80 : vector<1x64x4xf32> to vector<64x4xf32>
    %cst_80 = arith.constant dense<0.000000e+00> : vector<4x4xf32>
    %82 = tpu.matmul %79, %81, %cst_80 {dimension_numbers = #tpu.dot_dimension_numbers<[1], [0], [0], [1], [0, 0, 1, 1], [], []>} : vector<4x64xf32>, vector<64x4xf32>, vector<4x4xf32> -> vector<4x4xf32>
    %83 = arith.addf %76, %82 : vector<4x4xf32>
    %c1_81 = arith.constant 1 : index
    %c0_82 = arith.constant 0 : index
    %c0_83 = arith.constant 0 : index
    %84 = vector.load %arg8[%c1_81, %c0_82, %c0_83] : memref<3x4x4xf32, #tpu.memory_space<vmem>>, vector<1x4x4xf32>
    %85 = vector.shape_cast %84 : vector<1x4x4xf32> to vector<4x4xf32>
    %cst_84 = arith.constant dense<0.000000e+00> : vector<4x64xf32>
    %86 = tpu.matmul %85, %75, %cst_84 {dimension_numbers = #tpu.dot_dimension_numbers<[1], [0], [0], [1], [0, 0, 1, 1], [], []>} : vector<4x4xf32>, vector<4x64xf32>, vector<4x64xf32> -> vector<4x64xf32>
    %c1_85 = arith.constant 1 : index
    %c0_86 = arith.constant 0 : index
    %c0_87 = arith.constant 0 : index
    %87 = vector.load %arg9[%c1_85, %c0_86, %c0_87] : memref<3x64x4xf32, #tpu.memory_space<vmem>>, vector<1x64x4xf32>
    %88 = vector.shape_cast %87 : vector<1x64x4xf32> to vector<64x4xf32>
    %cst_88 = arith.constant dense<0.000000e+00> : vector<4x4xf32>
    %89 = tpu.matmul %86, %88, %cst_88 {dimension_numbers = #tpu.dot_dimension_numbers<[1], [0], [0], [1], [0, 0, 1, 1], [], []>} : vector<4x64xf32>, vector<64x4xf32>, vector<4x4xf32> -> vector<4x4xf32>
    %90 = arith.addf %83, %89 : vector<4x4xf32>
    %c2_89 = arith.constant 2 : index
    %c0_90 = arith.constant 0 : index
    %c0_91 = arith.constant 0 : index
    %91 = vector.load %arg8[%c2_89, %c0_90, %c0_91] : memref<3x4x4xf32, #tpu.memory_space<vmem>>, vector<1x4x4xf32>
    %92 = vector.shape_cast %91 : vector<1x4x4xf32> to vector<4x4xf32>
    %cst_92 = arith.constant dense<0.000000e+00> : vector<4x64xf32>
    %93 = tpu.matmul %92, %75, %cst_92 {dimension_numbers = #tpu.dot_dimension_numbers<[1], [0], [0], [1], [0, 0, 1, 1], [], []>} : vector<4x4xf32>, vector<4x64xf32>, vector<4x64xf32> -> vector<4x64xf32>
    %c2_93 = arith.constant 2 : index
    %c0_94 = arith.constant 0 : index
    %c0_95 = arith.constant 0 : index
    %94 = vector.load %arg9[%c2_93, %c0_94, %c0_95] : memref<3x64x4xf32, #tpu.memory_space<vmem>>, vector<1x64x4xf32>
    %95 = vector.shape_cast %94 : vector<1x64x4xf32> to vector<64x4xf32>
    %cst_96 = arith.constant dense<0.000000e+00> : vector<4x4xf32>
    %96 = tpu.matmul %93, %95, %cst_96 {dimension_numbers = #tpu.dot_dimension_numbers<[1], [0], [0], [1], [0, 0, 1, 1], [], []>} : vector<4x64xf32>, vector<64x4xf32>, vector<4x4xf32> -> vector<4x4xf32>
    %97 = arith.addf %90, %96 : vector<4x4xf32>
    %cst_97 = arith.constant 0.000000e+00 : f32
    %98 = vector.broadcast %cst_97 : f32 to vector<1x5xf32>
    %c0_98 = arith.constant 0 : index
    %c0_99 = arith.constant 0 : index
    %c0_100 = arith.constant 0 : index
    %99 = vector.load %arg10[%c0_98, %c0_99, %c0_100] : memref<4x1x4xf32, #tpu.memory_space<vmem>>, vector<1x1x4xf32>
    %100 = vector.shape_cast %99 : vector<1x1x4xf32> to vector<1x4xf32>
    %cst_101 = arith.constant dense<0.000000e+00> : vector<1x64xf32>
    %101 = tpu.matmul %100, %75, %cst_101 {dimension_numbers = #tpu.dot_dimension_numbers<[1], [0], [0], [1], [0, 0, 1, 1], [], []>} : vector<1x4xf32>, vector<4x64xf32>, vector<1x64xf32> -> vector<1x64xf32>
    %c0_102 = arith.constant 0 : index
    %c0_103 = arith.constant 0 : index
    %c0_104 = arith.constant 0 : index
    %102 = vector.load %arg11[%c0_102, %c0_103, %c0_104] : memref<4x64x5xf32, #tpu.memory_space<vmem>>, vector<1x64x5xf32>
    %103 = vector.shape_cast %102 : vector<1x64x5xf32> to vector<64x5xf32>
    %cst_105 = arith.constant dense<0.000000e+00> : vector<1x5xf32>
    %104 = tpu.matmul %101, %103, %cst_105 {dimension_numbers = #tpu.dot_dimension_numbers<[1], [0], [0], [1], [0, 0, 1, 1], [], []>} : vector<1x64xf32>, vector<64x5xf32>, vector<1x5xf32> -> vector<1x5xf32>
    %105 = arith.addf %98, %104 : vector<1x5xf32>
    %c1_106 = arith.constant 1 : index
    %c0_107 = arith.constant 0 : index
    %c0_108 = arith.constant 0 : index
    %106 = vector.load %arg10[%c1_106, %c0_107, %c0_108] : memref<4x1x4xf32, #tpu.memory_space<vmem>>, vector<1x1x4xf32>
    %107 = vector.shape_cast %106 : vector<1x1x4xf32> to vector<1x4xf32>
    %cst_109 = arith.constant dense<0.000000e+00> : vector<1x64xf32>
    %108 = tpu.matmul %107, %75, %cst_109 {dimension_numbers = #tpu.dot_dimension_numbers<[1], [0], [0], [1], [0, 0, 1, 1], [], []>} : vector<1x4xf32>, vector<4x64xf32>, vector<1x64xf32> -> vector<1x64xf32>
    %c1_110 = arith.constant 1 : index
    %c0_111 = arith.constant 0 : index
    %c0_112 = arith.constant 0 : index
    %109 = vector.load %arg11[%c1_110, %c0_111, %c0_112] : memref<4x64x5xf32, #tpu.memory_space<vmem>>, vector<1x64x5xf32>
    %110 = vector.shape_cast %109 : vector<1x64x5xf32> to vector<64x5xf32>
    %cst_113 = arith.constant dense<0.000000e+00> : vector<1x5xf32>
    %111 = tpu.matmul %108, %110, %cst_113 {dimension_numbers = #tpu.dot_dimension_numbers<[1], [0], [0], [1], [0, 0, 1, 1], [], []>} : vector<1x64xf32>, vector<64x5xf32>, vector<1x5xf32> -> vector<1x5xf32>
    %112 = arith.addf %105, %111 : vector<1x5xf32>
    %c2_114 = arith.constant 2 : index
    %c0_115 = arith.constant 0 : index
    %c0_116 = arith.constant 0 : index
    %113 = vector.load %arg10[%c2_114, %c0_115, %c0_116] : memref<4x1x4xf32, #tpu.memory_space<vmem>>, vector<1x1x4xf32>
    %114 = vector.shape_cast %113 : vector<1x1x4xf32> to vector<1x4xf32>
    %cst_117 = arith.constant dense<0.000000e+00> : vector<1x64xf32>
    %115 = tpu.matmul %114, %75, %cst_117 {dimension_numbers = #tpu.dot_dimension_numbers<[1], [0], [0], [1], [0, 0, 1, 1], [], []>} : vector<1x4xf32>, vector<4x64xf32>, vector<1x64xf32> -> vector<1x64xf32>
    %c2_118 = arith.constant 2 : index
    %c0_119 = arith.constant 0 : index
    %c0_120 = arith.constant 0 : index
    %116 = vector.load %arg11[%c2_118, %c0_119, %c0_120] : memref<4x64x5xf32, #tpu.memory_space<vmem>>, vector<1x64x5xf32>
    %117 = vector.shape_cast %116 : vector<1x64x5xf32> to vector<64x5xf32>
    %cst_121 = arith.constant dense<0.000000e+00> : vector<1x5xf32>
    %118 = tpu.matmul %115, %117, %cst_121 {dimension_numbers = #tpu.dot_dimension_numbers<[1], [0], [0], [1], [0, 0, 1, 1], [], []>} : vector<1x64xf32>, vector<64x5xf32>, vector<1x5xf32> -> vector<1x5xf32>
    %119 = arith.addf %112, %118 : vector<1x5xf32>
    %c3_122 = arith.constant 3 : index
    %c0_123 = arith.constant 0 : index
    %c0_124 = arith.constant 0 : index
    %120 = vector.load %arg10[%c3_122, %c0_123, %c0_124] : memref<4x1x4xf32, #tpu.memory_space<vmem>>, vector<1x1x4xf32>
    %121 = vector.shape_cast %120 : vector<1x1x4xf32> to vector<1x4xf32>
    %cst_125 = arith.constant dense<0.000000e+00> : vector<1x64xf32>
    %122 = tpu.matmul %121, %75, %cst_125 {dimension_numbers = #tpu.dot_dimension_numbers<[1], [0], [0], [1], [0, 0, 1, 1], [], []>} : vector<1x4xf32>, vector<4x64xf32>, vector<1x64xf32> -> vector<1x64xf32>
    %c3_126 = arith.constant 3 : index
    %c0_127 = arith.constant 0 : index
    %c0_128 = arith.constant 0 : index
    %123 = vector.load %arg11[%c3_126, %c0_127, %c0_128] : memref<4x64x5xf32, #tpu.memory_space<vmem>>, vector<1x64x5xf32>
    %124 = vector.shape_cast %123 : vector<1x64x5xf32> to vector<64x5xf32>
    %cst_129 = arith.constant dense<0.000000e+00> : vector<1x5xf32>
    %125 = tpu.matmul %122, %124, %cst_129 {dimension_numbers = #tpu.dot_dimension_numbers<[1], [0], [0], [1], [0, 0, 1, 1], [], []>} : vector<1x64xf32>, vector<64x5xf32>, vector<1x5xf32> -> vector<1x5xf32>
    %126 = arith.addf %119, %125 : vector<1x5xf32>
    %c0_130 = arith.constant 0 : index
    %c0_131 = arith.constant 0 : index
    %c0_132 = arith.constant 0 : index
    %127 = vector.load %arg12[%c0_130, %c0_131, %c0_132] : memref<1x4x4xf32, #tpu.memory_space<vmem>>, vector<1x4x4xf32>
    %128 = vector.shape_cast %127 : vector<1x4x4xf32> to vector<4x4xf32>
    %129 = vector.shape_cast %97 : vector<4x4xf32> to vector<1x4x4xf32>
    tpu.vector_store %arg12[%c0_130, %c0_131, %c0_132], %129 {strides = array<i32>} : memref<1x4x4xf32, #tpu.memory_space<vmem>>, vector<1x4x4xf32>,
    %c0_133 = arith.constant 0 : index
    %c0_134 = arith.constant 0 : index
    %c0_135 = arith.constant 0 : index
    %130 = vector.load %arg13[%c0_133, %c0_134, %c0_135] : memref<1x1x5xf32, #tpu.memory_space<vmem>>, vector<1x1x5xf32>
    %131 = vector.shape_cast %130 : vector<1x1x5xf32> to vector<1x5xf32>
    %132 = vector.shape_cast %126 : vector<1x5xf32> to vector<1x1x5xf32>
    tpu.vector_store %arg13[%c0_133, %c0_134, %c0_135], %132 {strides = array<i32>} : memref<1x1x5xf32, #tpu.memory_space<vmem>>, vector<1x1x5xf32>,
    return
  }
  func.func @transform_0(%arg0: i32) -> (i32, i32, i32) {
    %c0_i32 = arith.constant 0 : i32
    %c0_i32_0 = arith.constant 0 : i32
    %c0_i32_1 = arith.constant 0 : i32
    return %arg0, %c0_i32, %c0_i32_0 : i32, i32, i32
  }
  func.func @transform_1(%arg0: i32) -> (i32, i32, i32) {
    %c0_i32 = arith.constant 0 : i32
    %c0_i32_0 = arith.constant 0 : i32
    %c0_i32_1 = arith.constant 0 : i32
    %c0_i32_2 = arith.constant 0 : i32
    return %c0_i32, %c0_i32_0, %c0_i32_1 : i32, i32, i32
  }
  func.func @transform_2(%arg0: i32) -> (i32, i32, i32) {
    %c0_i32 = arith.constant 0 : i32
    %c0_i32_0 = arith.constant 0 : i32
    %c0_i32_1 = arith.constant 0 : i32
    %c0_i32_2 = arith.constant 0 : i32
    return %c0_i32, %c0_i32_0, %c0_i32_1 : i32, i32, i32
  }
  func.func @transform_3(%arg0: i32) -> (i32, i32) {
    %c0_i32 = arith.constant 0 : i32
    %c0_i32_0 = arith.constant 0 : i32
    %c0_i32_1 = arith.constant 0 : i32
    return %c0_i32, %c0_i32_0 : i32, i32
  }
  func.func @transform_4(%arg0: i32) -> (i32, i32, i32) {
    %c0_i32 = arith.constant 0 : i32
    %c0_i32_0 = arith.constant 0 : i32
    %c0_i32_1 = arith.constant 0 : i32
    %c0_i32_2 = arith.constant 0 : i32
    return %c0_i32, %c0_i32_0, %c0_i32_1 : i32, i32, i32
  }
  func.func @transform_5(%arg0: i32) -> (i32, i32, i32) {
    %c0_i32 = arith.constant 0 : i32
    %c0_i32_0 = arith.constant 0 : i32
    %c0_i32_1 = arith.constant 0 : i32
    %c0_i32_2 = arith.constant 0 : i32
    return %c0_i32, %c0_i32_0, %c0_i32_1 : i32, i32, i32
  }
  func.func @transform_6(%arg0: i32) -> (i32, i32) {
    %c0_i32 = arith.constant 0 : i32
    %c0_i32_0 = arith.constant 0 : i32
    %c0_i32_1 = arith.constant 0 : i32
    return %c0_i32, %c0_i32_0 : i32, i32
  }
  func.func @transform_7(%arg0: i32) -> (i32, i32, i32) {
    %c0_i32 = arith.constant 0 : i32
    %c0_i32_0 = arith.constant 0 : i32
    %c0_i32_1 = arith.constant 0 : i32
    %c0_i32_2 = arith.constant 0 : i32
    return %c0_i32, %c0_i32_0, %c0_i32_1 : i32, i32, i32
  }
  func.func @transform_8(%arg0: i32) -> (i32, i32, i32) {
    %c0_i32 = arith.constant 0 : i32
    %c0_i32_0 = arith.constant 0 : i32
    %c0_i32_1 = arith.constant 0 : i32
    %c0_i32_2 = arith.constant 0 : i32
    return %c0_i32, %c0_i32_0, %c0_i32_1 : i32, i32, i32
  }
  func.func @transform_9(%arg0: i32) -> (i32, i32, i32) {
    %c0_i32 = arith.constant 0 : i32
    %c0_i32_0 = arith.constant 0 : i32
    %c0_i32_1 = arith.constant 0 : i32
    %c0_i32_2 = arith.constant 0 : i32
    return %c0_i32, %c0_i32_0, %c0_i32_1 : i32, i32, i32
  }
  func.func @transform_10(%arg0: i32) -> (i32, i32, i32) {
    %c0_i32 = arith.constant 0 : i32
    %c0_i32_0 = arith.constant 0 : i32
    %c0_i32_1 = arith.constant 0 : i32
    %c0_i32_2 = arith.constant 0 : i32
    return %c0_i32, %c0_i32_0, %c0_i32_1 : i32, i32, i32
  }
  func.func @transform_11(%arg0: i32) -> (i32, i32, i32) {
    %c0_i32 = arith.constant 0 : i32
    %c0_i32_0 = arith.constant 0 : i32
    %c0_i32_1 = arith.constant 0 : i32
    return %arg0, %c0_i32, %c0_i32_0 : i32, i32, i32
  }
  func.func @transform_12(%arg0: i32) -> (i32, i32, i32) {
    %c0_i32 = arith.constant 0 : i32
    %c0_i32_0 = arith.constant 0 : i32
    %c0_i32_1 = arith.constant 0 : i32
    return %arg0, %c0_i32, %c0_i32_0 : i32, i32, i32
  }
}

</mosaic_0001>

<llo_original>
// kernel: tpu_custom_call.1
$region0: #{tpu_custom_call.1}
  #allocation0 [shape = 'u32[]', space=smem, size = 0x4, offset = 0x4, fixed_abs, tag = 'smem constant byte address 0x4 - core index']
  #allocation1 [shape = 'u32[144,128]{1,0:T(1,128)}', space=vmem, size = 0x12000, scoped, tag = 'internal scratch']
  %s0 = inlined_call_operand.vmem [shape: f32[2,16,16], index: 0, kind: input, shape index: {}]
  %s1 = inlined_call_operand.vmem [shape: f32[4,8,16], index: 1, kind: input, shape index: {}]
  %s2 = inlined_call_operand.vmem [shape: f32[4,16,64], index: 2, kind: input, shape index: {}]
  %s3 = inlined_call_operand.vmem [shape: f32[1,64], index: 3, kind: input, shape index: {}]
  %s4 = inlined_call_operand.vmem [shape: f32[4,4,8], index: 4, kind: input, shape index: {}]
  %s5 = inlined_call_operand.vmem [shape: f32[4,64,64], index: 5, kind: input, shape index: {}]
  %s6 = inlined_call_operand.vmem [shape: f32[1,64], index: 6, kind: input, shape index: {}]
  %s7 = inlined_call_operand.vmem [shape: f32[3,4,4], index: 7, kind: input, shape index: {}]
  %s8 = inlined_call_operand.vmem [shape: f32[3,64,4], index: 8, kind: input, shape index: {}]
  %s9 = inlined_call_operand.vmem [shape: f32[4,1,4], index: 9, kind: input, shape index: {}]
  %s10 = inlined_call_operand.vmem [shape: f32[4,64,5], index: 10, kind: input, shape index: {}]
  %s11 = inlined_call_operand.hbm [shape: f32[2,4,4], index: 11, kind: output, shape index: {0}]
  %s12 = inlined_call_operand.hbm [shape: f32[2,1,5], index: 12, kind: output, shape index: {1}]
  %13 = xla_tuple %s11, %s12
  %s14 = sld [smem:[#allocation0]]
  $region85: #{tpu_custom_call.1} parent=0
    _
  %s16 = ssub.s32 1, %s14
  %s17 = scalar_select 0, %s16, %s14
  $region1: #{tpu_custom_call.1} parent=0
    #allocation2 [shape = 'u8[4096]{0}', space=vmem, size = 0x1000, scoped, tag = 'output window, operand 0']
    #allocation3 [shape = 's32[2]{0}', space=sflag, size = 0x8, scoped, tag = 'scoped memory for tpu_custom_call.1']
    #allocation4 [shape = 'u8[1024]{0}', space=vmem, size = 0x400, scoped, tag = 'output window, operand 1']
    #allocation5 [shape = 's32[2]{0}', space=sflag, size = 0x8, scoped, tag = 'scoped memory for tpu_custom_call.1']
    %18 = vsyncpa [#allocation3], 0
    %s19 = scalar_lea.sflag [#allocation3], 1
    %20 = vsyncpa %s19, 0
    %21 = vsyncpa [#allocation5], 0
    %s22 = scalar_lea.sflag [#allocation5], 1
    %23 = vsyncpa %s22, 0
    loop: start=0, step=1, limit=4
    $region2: #{tpu_custom_call.1} parent=1 // loop_pre_header
      _
    $region3: #{tpu_custom_call.1} parent=1 // loop_header
      %s25 = sphi 0, %s29
      %p26 = scmp.ge.s32.totalorder %s25, 4
      %s35 = sphi 0, %s37
      %s38 = sphi 0, %s35
      %s39 = sphi 0, %s38
      %s55 = sphi 0, %s39
      %s59 = sphi 0, %s59
      %s61 = sphi 0, %s59
      %s62 = sphi 0, %s61
      %s76 = sphi 0, %s62
      %s80 = sphi 0, %s80
      %s82 = sphi 0, %s80
      %s83 = sphi 0, %s82
      %s97 = sphi 0, %s83
      %s101 = sphi 0, %s101
      %s103 = sphi 0, %s101
      %s104 = sphi 0, %s103
      %s118 = sphi 0, %s104
      %s122 = sphi 0, %s122
      %s124 = sphi 0, %s122
      %s125 = sphi 0, %s124
      %s139 = sphi 0, %s125
      %s143 = sphi 0, %s143
      %s145 = sphi 0, %s143
      %s146 = sphi 0, %s145
      %s160 = sphi 0, %s146
      %s164 = sphi 0, %s164
      %s166 = sphi 0, %s164
      %s167 = sphi 0, %s166
      %s181 = sphi 0, %s167
      %s185 = sphi 0, %s185
      %s187 = sphi 0, %s185
      %s188 = sphi 0, %s187
      %s202 = sphi 0, %s188
      %s206 = sphi 0, %s206
      %s208 = sphi 0, %s206
      %s209 = sphi 0, %s208
      %s223 = sphi 0, %s209
      %s227 = sphi 0, %s227
      %s229 = sphi 0, %s227
      %s230 = sphi 0, %s229
      %s244 = sphi 0, %s230
      %s248 = sphi 0, %s248
      %s250 = sphi 0, %s248
      %s251 = sphi 0, %s250
      %s265 = sphi 0, %s251
      %s271 = sphi 0, %s273
      %s274 = sphi 0, %s271
      %s275 = sphi 0, %s274
      %s291 = sphi 0, %s275
      %s297 = sphi 0, %s299
      %s300 = sphi 0, %s297
      %s301 = sphi 0, %s300
      %s317 = sphi 0, %s301
    $region4: #{tpu_custom_call.1} parent=1 // loop_header_branch
      %28 = sbr.rel (%p26) target = $region8
    $region5: #{tpu_custom_call.1} parent=1 // loop_body
      %s30 = ssub.s32 %s25, 1
      %s31 = ssub.s32 %s25, 2
      %s32 = sadd.s32 %s25, 1
      %s33 = ssub.s32 %s25, %s32
      %p34 = scmp.eq.s32.totalorder %s33, 0
      %s36 = sadd.s32 %s35, 1
      %s37 = scalar_select %p34, %s35, %s36
      %p40 = pneg %p34
      %p41 = scmp.eq.s32.totalorder %s25, 1
      %p42 = por %p40, %p41
      %p43 = scmp.ne.s32.totalorder %s35, %s38
      %p44 = scmp.eq.s32.totalorder %s25, 0
      %p45 = por %p43, %p44
      %p46 = scmp.ne.s32.totalorder %s35, %s38
      %p47 = scmp.eq.s32.totalorder %s30, 1
      %p48 = por %p46, %p47
      %p49 = scmp.ne.s32.totalorder %s38, %s39
      %p50 = scmp.eq.s32.totalorder %s30, 0
      %p51 = por %p49, %p50
      %p52 = scmp.ne.s32.totalorder %s38, %s39
      %p53 = scmp.eq.s32.totalorder %s31, 1
      %p54 = por %p52, %p53
      %p56 = scmp.ne.s32.totalorder %s39, %s55
      %p57 = scmp.eq.s32.totalorder %s31, 0
      %p58 = por %p56, %p57
      %s60 = sadd.s32 %s59, 1
      %p63 = scmp.eq.s32.totalorder %s25, 1
      %p64 = scmp.ne.s32.totalorder %s59, %s61
      %p65 = scmp.eq.s32.totalorder %s25, 0
      %p66 = por %p64, %p65
      %p67 = scmp.ne.s32.totalorder %s59, %s61
      %p68 = scmp.eq.s32.totalorder %s30, 1
      %p69 = por %p67, %p68
      %p70 = scmp.ne.s32.totalorder %s61, %s62
      %p71 = scmp.eq.s32.totalorder %s30, 0
      %p72 = por %p70, %p71
      %p73 = scmp.ne.s32.totalorder %s61, %s62
      %p74 = scmp.eq.s32.totalorder %s31, 1
      %p75 = por %p73, %p74
      %p77 = scmp.ne.s32.totalorder %s62, %s76
      %p78 = scmp.eq.s32.totalorder %s31, 0
      %p79 = por %p77, %p78
      %s81 = sadd.s32 %s80, 1
      %p84 = scmp.eq.s32.totalorder %s25, 1
      %p85 = scmp.ne.s32.totalorder %s80, %s82
      %p86 = scmp.eq.s32.totalorder %s25, 0
      %p87 = por %p85, %p86
      %p88 = scmp.ne.s32.totalorder %s80, %s82
      %p89 = scmp.eq.s32.totalorder %s30, 1
      %p90 = por %p88, %p89
      %p91 = scmp.ne.s32.totalorder %s82, %s83
      %p92 = scmp.eq.s32.totalorder %s30, 0
      %p93 = por %p91, %p92
      %p94 = scmp.ne.s32.totalorder %s82, %s83
      %p95 = scmp.eq.s32.totalorder %s31, 1
      %p96 = por %p94, %p95
      %p98 = scmp.ne.s32.totalorder %s83, %s97
      %p99 = scmp.eq.s32.totalorder %s31, 0
      %p100 = por %p98, %p99
      %s102 = sadd.s32 %s101, 1
      %p105 = scmp.eq.s32.totalorder %s25, 1
      %p106 = scmp.ne.s32.totalorder %s101, %s103
      %p107 = scmp.eq.s32.totalorder %s25, 0
      %p108 = por %p106, %p107
      %p109 = scmp.ne.s32.totalorder %s101, %s103
      %p110 = scmp.eq.s32.totalorder %s30, 1
      %p111 = por %p109, %p110
      %p112 = scmp.ne.s32.totalorder %s103, %s104
      %p113 = scmp.eq.s32.totalorder %s30, 0
      %p114 = por %p112, %p113
      %p115 = scmp.ne.s32.totalorder %s103, %s104
      %p116 = scmp.eq.s32.totalorder %s31, 1
      %p117 = por %p115, %p116
      %p119 = scmp.ne.s32.totalorder %s104, %s118
      %p120 = scmp.eq.s32.totalorder %s31, 0
      %p121 = por %p119, %p120
      %s123 = sadd.s32 %s122, 1
      %p126 = scmp.eq.s32.totalorder %s25, 1
      %p127 = scmp.ne.s32.totalorder %s122, %s124
      %p128 = scmp.eq.s32.totalorder %s25, 0
      %p129 = por %p127, %p128
      %p130 = scmp.ne.s32.totalorder %s122, %s124
      %p131 = scmp.eq.s32.totalorder %s30, 1
      %p132 = por %p130, %p131
      %p133 = scmp.ne.s32.totalorder %s124, %s125
      %p134 = scmp.eq.s32.totalorder %s30, 0
      %p135 = por %p133, %p134
      %p136 = scmp.ne.s32.totalorder %s124, %s125
      %p137 = scmp.eq.s32.totalorder %s31, 1
      %p138 = por %p136, %p137
      %p140 = scmp.ne.s32.totalorder %s125, %s139
      %p141 = scmp.eq.s32.totalorder %s31, 0
      %p142 = por %p140, %p141
      %s144 = sadd.s32 %s143, 1
      %p147 = scmp.eq.s32.totalorder %s25, 1
      %p148 = scmp.ne.s32.totalorder %s143, %s145
      %p149 = scmp.eq.s32.totalorder %s25, 0
      %p150 = por %p148, %p149
      %p151 = scmp.ne.s32.totalorder %s143, %s145
      %p152 = scmp.eq.s32.totalorder %s30, 1
      %p153 = por %p151, %p152
      %p154 = scmp.ne.s32.totalorder %s145, %s146
      %p155 = scmp.eq.s32.totalorder %s30, 0
      %p156 = por %p154, %p155
      %p157 = scmp.ne.s32.totalorder %s145, %s146
      %p158 = scmp.eq.s32.totalorder %s31, 1
      %p159 = por %p157, %p158
      %p161 = scmp.ne.s32.totalorder %s146, %s160
      %p162 = scmp.eq.s32.totalorder %s31, 0
      %p163 = por %p161, %p162
      %s165 = sadd.s32 %s164, 1
      %p168 = scmp.eq.s32.totalorder %s25, 1
      %p169 = scmp.ne.s32.totalorder %s164, %s166
      %p170 = scmp.eq.s32.totalorder %s25, 0
      %p171 = por %p169, %p170
      %p172 = scmp.ne.s32.totalorder %s164, %s166
      %p173 = scmp.eq.s32.totalorder %s30, 1
      %p174 = por %p172, %p173
      %p175 = scmp.ne.s32.totalorder %s166, %s167
      %p176 = scmp.eq.s32.totalorder %s30, 0
      %p177 = por %p175, %p176
      %p178 = scmp.ne.s32.totalorder %s166, %s167
      %p179 = scmp.eq.s32.totalorder %s31, 1
      %p180 = por %p178, %p179
      %p182 = scmp.ne.s32.totalorder %s167, %s181
      %p183 = scmp.eq.s32.totalorder %s31, 0
      %p184 = por %p182, %p183
      %s186 = sadd.s32 %s185, 1
      %p189 = scmp.eq.s32.totalorder %s25, 1
      %p190 = scmp.ne.s32.totalorder %s185, %s187
      %p191 = scmp.eq.s32.totalorder %s25, 0
      %p192 = por %p190, %p191
      %p193 = scmp.ne.s32.totalorder %s185, %s187
      %p194 = scmp.eq.s32.totalorder %s30, 1
      %p195 = por %p193, %p194
      %p196 = scmp.ne.s32.totalorder %s187, %s188
      %p197 = scmp.eq.s32.totalorder %s30, 0
      %p198 = por %p196, %p197
      %p199 = scmp.ne.s32.totalorder %s187, %s188
      %p200 = scmp.eq.s32.totalorder %s31, 1
      %p201 = por %p199, %p200
      %p203 = scmp.ne.s32.totalorder %s188, %s202
      %p204 = scmp.eq.s32.totalorder %s31, 0
      %p205 = por %p203, %p204
      %s207 = sadd.s32 %s206, 1
      %p210 = scmp.eq.s32.totalorder %s25, 1
      %p211 = scmp.ne.s32.totalorder %s206, %s208
      %p212 = scmp.eq.s32.totalorder %s25, 0
      %p213 = por %p211, %p212
      %p214 = scmp.ne.s32.totalorder %s206, %s208
      %p215 = scmp.eq.s32.totalorder %s30, 1
      %p216 = por %p214, %p215
      %p217 = scmp.ne.s32.totalorder %s208, %s209
      %p218 = scmp.eq.s32.totalorder %s30, 0
      %p219 = por %p217, %p218
      %p220 = scmp.ne.s32.totalorder %s208, %s209
      %p221 = scmp.eq.s32.totalorder %s31, 1
      %p222 = por %p220, %p221
      %p224 = scmp.ne.s32.totalorder %s209, %s223
      %p225 = scmp.eq.s32.totalorder %s31, 0
      %p226 = por %p224, %p225
      %s228 = sadd.s32 %s227, 1
      %p231 = scmp.eq.s32.totalorder %s25, 1
      %p232 = scmp.ne.s32.totalorder %s227, %s229
      %p233 = scmp.eq.s32.totalorder %s25, 0
      %p234 = por %p232, %p233
      %p235 = scmp.ne.s32.totalorder %s227, %s229
      %p236 = scmp.eq.s32.totalorder %s30, 1
      %p237 = por %p235, %p236
      %p238 = scmp.ne.s32.totalorder %s229, %s230
      %p239 = scmp.eq.s32.totalorder %s30, 0
      %p240 = por %p238, %p239
      %p241 = scmp.ne.s32.totalorder %s229, %s230
      %p242 = scmp.eq.s32.totalorder %s31, 1
      %p243 = por %p241, %p242
      %p245 = scmp.ne.s32.totalorder %s230, %s244
      %p246 = scmp.eq.s32.totalorder %s31, 0
      %p247 = por %p245, %p246
      %s249 = sadd.s32 %s248, 1
      %p252 = scmp.eq.s32.totalorder %s25, 1
      %p253 = scmp.ne.s32.totalorder %s248, %s250
      %p254 = scmp.eq.s32.totalorder %s25, 0
      %p255 = por %p253, %p254
      %p256 = scmp.ne.s32.totalorder %s248, %s250
      %p257 = scmp.eq.s32.totalorder %s30, 1
      %p258 = por %p256, %p257
      %p259 = scmp.ne.s32.totalorder %s250, %s251
      %p260 = scmp.eq.s32.totalorder %s30, 0
      %p261 = por %p259, %p260
      %p262 = scmp.ne.s32.totalorder %s250, %s251
      %p263 = scmp.eq.s32.totalorder %s31, 1
      %p264 = por %p262, %p263
      %p266 = scmp.ne.s32.totalorder %s251, %s265
      %p267 = scmp.eq.s32.totalorder %s31, 0
      %p268 = por %p266, %p267
      %s269 = ssub.s32 %s25, %s32
      %p270 = scmp.eq.s32.totalorder %s269, 0
      %s272 = sadd.s32 %s271, 1
      %s273 = scalar_select %p270, %s271, %s272
      %p276 = pneg %p270
      %p277 = scmp.eq.s32.totalorder %s25, 1
      %p278 = por %p276, %p277
      %p279 = scmp.ne.s32.totalorder %s271, %s274
      %p280 = scmp.eq.s32.totalorder %s25, 0
      %p281 = por %p279, %p280
      %p282 = scmp.ne.s32.totalorder %s271, %s274
      %p283 = scmp.eq.s32.totalorder %s30, 1
      %p284 = por %p282, %p283
      %p285 = scmp.ne.s32.totalorder %s274, %s275
      %p286 = scmp.eq.s32.totalorder %s30, 0
      %p287 = por %p285, %p286
      %p288 = scmp.ne.s32.totalorder %s274, %s275
      %p289 = scmp.eq.s32.totalorder %s31, 1
      %p290 = por %p288, %p289
      %p292 = scmp.ne.s32.totalorder %s275, %s291
      %p293 = scmp.eq.s32.totalorder %s31, 0
      %p294 = por %p292, %p293
      %s295 = ssub.s32 %s25, %s32
      %p296 = scmp.eq.s32.totalorder %s295, 0
      %s298 = sadd.s32 %s297, 1
      %s299 = scalar_select %p296, %s297, %s298
      %p302 = pneg %p296
      %p303 = scmp.eq.s32.totalorder %s25, 1
      %p304 = por %p302, %p303
      %p305 = scmp.ne.s32.totalorder %s297, %s300
      %p306 = scmp.eq.s32.totalorder %s25, 0
      %p307 = por %p305, %p306
      %p308 = scmp.ne.s32.totalorder %s297, %s300
      %p309 = scmp.eq.s32.totalorder %s30, 1
      %p310 = por %p308, %p309
      %p311 = scmp.ne.s32.totalorder %s300, %s301
      %p312 = scmp.eq.s32.totalorder %s30, 0
      %p313 = por %p311, %p312
      %p314 = scmp.ne.s32.totalorder %s300, %s301
      %p315 = scmp.eq.s32.totalorder %s31, 1
      %p316 = por %p314, %p315
      %p318 = scmp.ne.s32.totalorder %s301, %s317
      %p319 = scmp.eq.s32.totalorder %s31, 0
      %p320 = por %p318, %p319
      %p321 = scmp.le.s32.totalorder 1, %s25
      %p322 = scmp.lt.s32.totalorder %s25, 3
      %p323 = pnand %p321, %p322
      %p324 = pneg %p323
      // Predicated region
      $region9: #{tpu_custom_call.1} parent=5 // pred_check
        _
      $region10: #{tpu_custom_call.1} parent=5 // pred_check_branch
        %326 = sbr.rel (%p323) target = $region12
      $region11: #{tpu_custom_call.1} parent=5 // pred_region
        %s327 = ssub.s32 %s25, 1
        // Predicated region
        $region13: #{tpu_custom_call.1} parent=11 // pred_check
          %p328 = pneg %p72
        $region14: #{tpu_custom_call.1} parent=11 // pred_check_branch
          %330 = sbr.rel (%p328) target = $region16
        $region15: #{tpu_custom_call.1} parent=11 // pred_region
          _
        $region16: #{tpu_custom_call.1} parent=11 // pred_fallthru
          _
        // Predicated region
        $region17: #{tpu_custom_call.1} parent=11 // pred_check
          %p331 = pneg %p93
        $region18: #{tpu_custom_call.1} parent=11 // pred_check_branch
          %333 = sbr.rel (%p331) target = $region20
        $region19: #{tpu_custom_call.1} parent=11 // pred_region
          _
        $region20: #{tpu_custom_call.1} parent=11 // pred_fallthru
          _
        // Predicated region
        $region21: #{tpu_custom_call.1} parent=11 // pred_check
          %p334 = pneg %p114
        $region22: #{tpu_custom_call.1} parent=11 // pred_check_branch
          %336 = sbr.rel (%p334) target = $region24
        $region23: #{tpu_custom_call.1} parent=11 // pred_region
          _
        $region24: #{tpu_custom_call.1} parent=11 // pred_fallthru
          _
        // Predicated region
        $region25: #{tpu_custom_call.1} parent=11 // pred_check
          %p337 = pneg %p135
        $region26: #{tpu_custom_call.1} parent=11 // pred_check_branch
          %339 = sbr.rel (%p337) target = $region28
        $region27: #{tpu_custom_call.1} parent=11 // pred_region
          _
        $region28: #{tpu_custom_call.1} parent=11 // pred_fallthru
          _
        // Predicated region
        $region29: #{tpu_custom_call.1} parent=11 // pred_check
          %p340 = pneg %p156
        $region30: #{tpu_custom_call.1} parent=11 // pred_check_branch
          %342 = sbr.rel (%p340) target = $region32
        $region31: #{tpu_custom_call.1} parent=11 // pred_region
          _
        $region32: #{tpu_custom_call.1} parent=11 // pred_fallthru
          _
        // Predicated region
        $region33: #{tpu_custom_call.1} parent=11 // pred_check
          %p343 = pneg %p177
        $region34: #{tpu_custom_call.1} parent=11 // pred_check_branch
          %345 = sbr.rel (%p343) target = $region36
        $region35: #{tpu_custom_call.1} parent=11 // pred_region
          _
        $region36: #{tpu_custom_call.1} parent=11 // pred_fallthru
          _
        // Predicated region
        $region37: #{tpu_custom_call.1} parent=11 // pred_check
          %p346 = pneg %p198
        $region38: #{tpu_custom_call.1} parent=11 // pred_check_branch
          %348 = sbr.rel (%p346) target = $region40
        $region39: #{tpu_custom_call.1} parent=11 // pred_region
          _
        $region40: #{tpu_custom_call.1} parent=11 // pred_fallthru
          _
        // Predicated region
        $region41: #{tpu_custom_call.1} parent=11 // pred_check
          %p349 = pneg %p219
        $region42: #{tpu_custom_call.1} parent=11 // pred_check_branch
          %351 = sbr.rel (%p349) target = $region44
        $region43: #{tpu_custom_call.1} parent=11 // pred_region
          _
        $region44: #{tpu_custom_call.1} parent=11 // pred_fallthru
          _
        // Predicated region
        $region45: #{tpu_custom_call.1} parent=11 // pred_check
          %p352 = pneg %p240
        $region46: #{tpu_custom_call.1} parent=11 // pred_check_branch
          %354 = sbr.rel (%p352) target = $region48
        $region47: #{tpu_custom_call.1} parent=11 // pred_region
          _
        $region48: #{tpu_custom_call.1} parent=11 // pred_fallthru
          _
        // Predicated region
        $region49: #{tpu_custom_call.1} parent=11 // pred_check
          %p355 = pneg %p261
        $region50: #{tpu_custom_call.1} parent=11 // pred_check_branch
          %357 = sbr.rel (%p355) target = $region52
        $region51: #{tpu_custom_call.1} parent=11 // pred_region
          _
        $region52: #{tpu_custom_call.1} parent=11 // pred_fallthru
          _
      $region12: #{tpu_custom_call.1} parent=5 // pred_fallthru
        _
      %p358 = scmp.lt.s32.totalorder %s25, 2
      // Predicated region
      $region53: #{tpu_custom_call.1} parent=5 // pred_check
        %p359 = pneg %p358
      $region54: #{tpu_custom_call.1} parent=5 // pred_check_branch
        %361 = sbr.rel (%p359) target = $region56
      $region55: #{tpu_custom_call.1} parent=5 // pred_region
        // Predicated region
        $region57: #{tpu_custom_call.1} parent=55 // pred_check
          %p362 = pneg %p45
        $region58: #{tpu_custom_call.1} parent=55 // pred_check_branch
          %364 = sbr.rel (%p362) target = $region60
        $region59: #{tpu_custom_call.1} parent=55 // pred_region
          %p365 = scmp.lt.s32.totalorder %s25, 1
          %s366 = scalar_select %p365, %s25, 1
          %s367 = smul.addr %s366, 2
          %s368 = smul.addr %s367, 8
          %s369 = scalar_lea.vmem %s0, %s368
        $region60: #{tpu_custom_call.1} parent=55 // pred_fallthru
          _
      $region56: #{tpu_custom_call.1} parent=5 // pred_fallthru
        _
      %p370 = scmp.le.s32.totalorder 1, %s25
      %p371 = scmp.lt.s32.totalorder %s25, 3
      %p372 = pnand %p370, %p371
      %p373 = pneg %p372
      // Predicated region
      $region61: #{tpu_custom_call.1} parent=5 // pred_check
        _
      $region62: #{tpu_custom_call.1} parent=5 // pred_check_branch
        %375 = sbr.rel (%p372) target = $region64
      $region63: #{tpu_custom_call.1} parent=5 // pred_region
        %s376 = ssub.s32 %s25, 1
        %p377 = scmp.lt.s32.totalorder %s30, 1
        %s378 = scalar_select %p377, %s30, 1
        %s379 = smul.addr %s378, 2
        %s380 = smul.addr %s379, 8
        %s381 = scalar_lea.vmem %s0, %s380
        %p382 = pneg %p51
        %p383 = pneg %p48
        %p384 = pneg %p72
        %p385 = pneg %p69
        %p386 = pneg %p93
        %p387 = pneg %p90
        %p388 = pneg %p114
        %p389 = pneg %p111
        %p390 = pneg %p135
        %p391 = pneg %p132
        %p392 = pneg %p156
        %p393 = pneg %p153
        %p394 = pneg %p177
        %p395 = pneg %p174
        %p396 = pneg %p198
        %p397 = pneg %p195
        %p398 = pneg %p219
        %p399 = pneg %p216
        %p400 = pneg %p240
        %p401 = pneg %p237
        %p402 = pneg %p261
        %p403 = pneg %p258
        %p404 = pneg %p287
        %p405 = pneg %p284
        %s406 = sand.u32 %s274, 1
        %s407 = scalar_lea.sflag [#allocation3], %s406
        %s408 = sand.u32 %s274, 1
        %s409 = smul.addr %s408, 4
        %s410 = scalar_lea.vmem [#allocation2], %s409
        %p411 = pneg %p313
        %p412 = pneg %p310
        %s413 = sand.u32 %s300, 1
        %s414 = scalar_lea.sflag [#allocation5], %s413
        %s415 = sand.u32 %s300, 1
        %s416 = scalar_lea.vmem [#allocation4], %s415
        %p417 = scmp.lt.s32.totalorder %s30, 1
        %s418 = scalar_select %p417, %s30, 1
        %s419 = smul.addr %s418, 2
        %s420 = smul.addr %s419, 8
        %s421 = scalar_lea.vmem %s0, %s420
        %v422 = vld [vmem:[%s421] sm:$0xff]
        %v423 = vld [vmem:[%s421 + $0x8] sm:$0xff]
        %v424 = vld [vmem:[%s3] sm:$0x1]
        %v425 = vld [vmem:[%s1] sm:$0xff]
        %vm426 = vcmask 130048
        %v428 = vsel %vm426, %v425, 0
        %430 = vmatprep.subr.mxu0 0.0
        %431 = vmatpush1.msra.mxu0 %v422
        %432 = vmatprep.subr.mxu0 0.0
        %433 = vmatpush1.msra.mxu0 %v423
        %434 = vmatprep.subr.mxu0 0.0
        %435 = vmatpush1.msra.mxu0 0.0
        %436 = vmatprep.subr.mxu0 0.0
        %437 = vmatpush1.msra.mxu0 0.0
        %438 = vmatprep.subr.mxu0 0.0
        %439 = vmatpush1.msra.mxu0 0.0
        %440 = vmatprep.subr.mxu0 0.0
        %441 = vmatpush1.msra.mxu0 0.0
        %442 = vmatprep.subr.mxu0 0.0
        %443 = vmatpush1.msra.mxu0 0.0
        %444 = vmatprep.subr.mxu0 0.0
        %445 = vmatpush1.msra.mxu0 0.0
        %446 = vmatprep.subr.mxu0 0.0
        %447 = vmatpush1.msra.mxu0 0.0
        %448 = vmatprep.subr.mxu0 0.0
        %449 = vmatpush1.msra.mxu0 0.0
        %450 = vmatprep.subr.mxu0 0.0
        %451 = vmatpush1.msra.mxu0 0.0
        %452 = vmatprep.subr.mxu0 0.0
        %453 = vmatpush1.msra.mxu0 0.0
        %454 = vmatprep.subr.mxu0 0.0
        %455 = vmatpush1.msra.mxu0 0.0
        %456 = vmatprep.subr.mxu0 0.0
        %457 = vmatpush1.msra.mxu0 0.0
        %458 = vmatprep.subr.mxu0 0.0
        %459 = vmatpush1.msra.mxu0 0.0
        %460 = vmatprep.subr.mxu0 0.0
        %461 = vmatpush1.msra.mxu0 0.0
        %462 = vmatprep.subr.mxu0 0.0
        %463 = vmatpush1.msra.mxu0 0.0
        %464 = vmatprep.subr.mxu0 0.0
        %465 = vmatpush1.msra.mxu0 0.0
        %466 = vmatprep.subr.mxu0 0.0
        %467 = vmatpush1.msra.mxu0 0.0
        %468 = vmatprep.subr.mxu0 0.0
        %469 = vmatpush1.msra.mxu0 0.0
        %470 = vmatprep.subr.mxu0 0.0
        %471 = vmatpush1.msra.mxu0 0.0
        %472 = vmatprep.subr.mxu0 0.0
        %473 = vmatpush1.msra.mxu0 0.0
        %474 = vmatprep.subr.mxu0 0.0
        %475 = vmatpush1.msra.mxu0 0.0
        %476 = vmatprep.subr.mxu0 0.0
        %477 = vmatpush1.msra.mxu0 0.0
        %478 = vmatprep.subr.mxu0 0.0
        %479 = vmatpush1.msra.mxu0 0.0
        %480 = vmatprep.subr.mxu0 0.0
        %481 = vmatpush1.msra.mxu0 0.0
        %482 = vmatprep.subr.mxu0 0.0
        %483 = vmatpush1.msra.mxu0 0.0
        %484 = vmatprep.subr.mxu0 0.0
        %485 = vmatpush1.msra.mxu0 0.0
        %486 = vmatprep.subr.mxu0 0.0
        %487 = vmatpush1.msra.mxu0 0.0
        %488 = vmatprep.subr.mxu0 0.0
        %489 = vmatpush1.msra.mxu0 0.0
        %490 = vmatprep.subr.mxu0 0.0
        %491 = vmatpush1.msra.mxu0 0.0
        %492 = vmatprep.subr.mxu0 0.0
        %493 = vmatpush1.msra.mxu0 0.0
        %494 = vmatprep.mubr.f32.mxu0 0.0
        %495 = vmatmul.mubr.f32.gmra.mrb[0].mxu0 %v428
        %v496 = vpop.f32.mrb[0].mxu0
        %v497 = vadd.f32 0.0, %v496
        %v498 = vpop.f32.mrb[0].mxu0
        %499 = vdwg.mxu0
        %v500 = vld [vmem:[%s2] sm:$0xff]
        %v501 = vld [vmem:[%s2 + $0x8] sm:$0xff]
        %s502 = scalar_lea.vmem %s1, 8
        %v503 = vld [vmem:[%s502] sm:$0xff]
        %v505 = vsel %vm426, %v503, 0
        %507 = vmatprep.subr.mxu0 0.0
        %508 = vmatpush1.msra.mxu0 %v422
        %509 = vmatprep.subr.mxu0 0.0
        %510 = vmatpush1.msra.mxu0 %v423
        %511 = vmatprep.subr.mxu0 0.0
        %512 = vmatpush1.msra.mxu0 0.0
        %513 = vmatprep.subr.mxu0 0.0
        %514 = vmatpush1.msra.mxu0 0.0
        %515 = vmatprep.subr.mxu0 0.0
        %516 = vmatpush1.msra.mxu0 0.0
        %517 = vmatprep.subr.mxu0 0.0
        %518 = vmatpush1.msra.mxu0 0.0
        %519 = vmatprep.subr.mxu0 0.0
        %520 = vmatpush1.msra.mxu0 0.0
        %521 = vmatprep.subr.mxu0 0.0
        %522 = vmatpush1.msra.mxu0 0.0
        %523 = vmatprep.subr.mxu0 0.0
        %524 = vmatpush1.msra.mxu0 0.0
        %525 = vmatprep.subr.mxu0 0.0
        %526 = vmatpush1.msra.mxu0 0.0
        %527 = vmatprep.subr.mxu0 0.0
        %528 = vmatpush1.msra.mxu0 0.0
        %529 = vmatprep.subr.mxu0 0.0
        %530 = vmatpush1.msra.mxu0 0.0
        %531 = vmatprep.subr.mxu0 0.0
        %532 = vmatpush1.msra.mxu0 0.0
        %533 = vmatprep.subr.mxu0 0.0
        %534 = vmatpush1.msra.mxu0 0.0
        %535 = vmatprep.subr.mxu0 0.0
        %536 = vmatpush1.msra.mxu0 0.0
        %537 = vmatprep.subr.mxu0 0.0
        %538 = vmatpush1.msra.mxu0 0.0
        %539 = vmatprep.subr.mxu0 0.0
        %540 = vmatpush1.msra.mxu0 0.0
        %541 = vmatprep.subr.mxu0 0.0
        %542 = vmatpush1.msra.mxu0 0.0
        %543 = vmatprep.subr.mxu0 0.0
        %544 = vmatpush1.msra.mxu0 0.0
        %545 = vmatprep.subr.mxu0 0.0
        %546 = vmatpush1.msra.mxu0 0.0
        %547 = vmatprep.subr.mxu0 0.0
        %548 = vmatpush1.msra.mxu0 0.0
        %549 = vmatprep.subr.mxu0 0.0
        %550 = vmatpush1.msra.mxu0 0.0
        %551 = vmatprep.subr.mxu0 0.0
        %552 = vmatpush1.msra.mxu0 0.0
        %553 = vmatprep.subr.mxu0 0.0
        %554 = vmatpush1.msra.mxu0 0.0
        %555 = vmatprep.subr.mxu0 0.0
        %556 = vmatpush1.msra.mxu0 0.0
        %557 = vmatprep.subr.mxu0 0.0
        %558 = vmatpush1.msra.mxu0 0.0
        %559 = vmatprep.subr.mxu0 0.0
        %560 = vmatpush1.msra.mxu0 0.0
        %561 = vmatprep.subr.mxu0 0.0
        %562 = vmatpush1.msra.mxu0 0.0
        %563 = vmatprep.subr.mxu0 0.0
        %564 = vmatpush1.msra.mxu0 0.0
        %565 = vmatprep.subr.mxu0 0.0
        %566 = vmatpush1.msra.mxu0 0.0
        %567 = vmatprep.subr.mxu0 0.0
        %568 = vmatpush1.msra.mxu0 0.0
        %569 = vmatprep.subr.mxu0 0.0
        %570 = vmatpush1.msra.mxu0 0.0
        %571 = vmatprep.mubr.f32.mxu0 0.0
        %572 = vmatmul.mubr.f32.gmra.mrb[0].mxu0 %v505
        %v573 = vpop.f32.mrb[0].mxu0
        %v574 = vadd.f32 0.0, %v573
        %v575 = vpop.f32.mrb[0].mxu0
        %576 = vdwg.mxu0
        %s577 = scalar_lea.vmem %s2, 16
        %v578 = vld [vmem:[%s577] sm:$0xff]
        %v579 = vld [vmem:[%s577 + $0x8] sm:$0xff]
        %v581 = vsel %vm426, %v574, 0
        %583 = vmatprep.subr.mxu0 0.0
        %584 = vmatpush1.msra.mxu0 %v578
        %585 = vmatprep.subr.mxu0 0.0
        %586 = vmatpush1.msra.mxu0 %v579
        %587 = vmatprep.subr.mxu0 0.0
        %588 = vmatpush1.msra.mxu0 0.0
        %589 = vmatprep.subr.mxu0 0.0
        %590 = vmatpush1.msra.mxu0 0.0
        %591 = vmatprep.subr.mxu0 0.0
        %592 = vmatpush1.msra.mxu0 0.0
        %593 = vmatprep.subr.mxu0 0.0
        %594 = vmatpush1.msra.mxu0 0.0
        %595 = vmatprep.subr.mxu0 0.0
        %596 = vmatpush1.msra.mxu0 0.0
        %597 = vmatprep.subr.mxu0 0.0
        %598 = vmatpush1.msra.mxu0 0.0
        %599 = vmatprep.subr.mxu0 0.0
        %600 = vmatpush1.msra.mxu0 0.0
        %601 = vmatprep.subr.mxu0 0.0
        %602 = vmatpush1.msra.mxu0 0.0
        %603 = vmatprep.subr.mxu0 0.0
        %604 = vmatpush1.msra.mxu0 0.0
        %605 = vmatprep.subr.mxu0 0.0
        %606 = vmatpush1.msra.mxu0 0.0
        %607 = vmatprep.subr.mxu0 0.0
        %608 = vmatpush1.msra.mxu0 0.0
        %609 = vmatprep.subr.mxu0 0.0
        %610 = vmatpush1.msra.mxu0 0.0
        %611 = vmatprep.subr.mxu0 0.0
        %612 = vmatpush1.msra.mxu0 0.0
        %613 = vmatprep.subr.mxu0 0.0
        %614 = vmatpush1.msra.mxu0 0.0
        %615 = vmatprep.subr.mxu0 0.0
        %616 = vmatpush1.msra.mxu0 0.0
        %617 = vmatprep.subr.mxu0 0.0
        %618 = vmatpush1.msra.mxu0 0.0
        %619 = vmatprep.subr.mxu0 0.0
        %620 = vmatpush1.msra.mxu0 0.0
        %621 = vmatprep.subr.mxu0 0.0
        %622 = vmatpush1.msra.mxu0 0.0
        %623 = vmatprep.subr.mxu0 0.0
        %624 = vmatpush1.msra.mxu0 0.0
        %625 = vmatprep.subr.mxu0 0.0
        %626 = vmatpush1.msra.mxu0 0.0
        %627 = vmatprep.subr.mxu0 0.0
        %628 = vmatpush1.msra.mxu0 0.0
        %629 = vmatprep.subr.mxu0 0.0
        %630 = vmatpush1.msra.mxu0 0.0
        %631 = vmatprep.subr.mxu0 0.0
        %632 = vmatpush1.msra.mxu0 0.0
        %633 = vmatprep.subr.mxu0 0.0
        %634 = vmatpush1.msra.mxu0 0.0
        %635 = vmatprep.subr.mxu0 0.0
        %636 = vmatpush1.msra.mxu0 0.0
        %637 = vmatprep.subr.mxu0 0.0
        %638 = vmatpush1.msra.mxu0 0.0
        %639 = vmatprep.subr.mxu0 0.0
        %640 = vmatpush1.msra.mxu0 0.0
        %641 = vmatprep.subr.mxu0 0.0
        %642 = vmatpush1.msra.mxu0 0.0
        %643 = vmatprep.subr.mxu0 0.0
        %644 = vmatpush1.msra.mxu0 0.0
        %645 = vmatprep.subr.mxu0 0.0
        %646 = vmatpush1.msra.mxu0 0.0
        %647 = vmatprep.mubr.f32.mxu0 0.0
        %648 = vmatmul.mubr.f32.gmra.mrb[0].mxu0 %v581
        %v649 = vpop.f32.mrb[0].mxu0
        %v650 = vadd.f32 0.0, %v649
        %v651 = vpop.f32.mrb[0].mxu0
        %652 = vdwg.mxu0
        %v654 = vsel %vm426, %v497, 0
        %656 = vmatprep.subr.mxu0 0.0
        %657 = vmatpush1.msra.mxu0 %v500
        %658 = vmatprep.subr.mxu0 0.0
        %659 = vmatpush1.msra.mxu0 %v501
        %660 = vmatprep.subr.mxu0 0.0
        %661 = vmatpush1.msra.mxu0 0.0
        %662 = vmatprep.subr.mxu0 0.0
        %663 = vmatpush1.msra.mxu0 0.0
        %664 = vmatprep.subr.mxu0 0.0
        %665 = vmatpush1.msra.mxu0 0.0
        %666 = vmatprep.subr.mxu0 0.0
        %667 = vmatpush1.msra.mxu0 0.0
        %668 = vmatprep.subr.mxu0 0.0
        %669 = vmatpush1.msra.mxu0 0.0
        %670 = vmatprep.subr.mxu0 0.0
        %671 = vmatpush1.msra.mxu0 0.0
        %672 = vmatprep.subr.mxu0 0.0
        %673 = vmatpush1.msra.mxu0 0.0
        %674 = vmatprep.subr.mxu0 0.0
        %675 = vmatpush1.msra.mxu0 0.0
        %676 = vmatprep.subr.mxu0 0.0
        %677 = vmatpush1.msra.mxu0 0.0
        %678 = vmatprep.subr.mxu0 0.0
        %679 = vmatpush1.msra.mxu0 0.0
        %680 = vmatprep.subr.mxu0 0.0
        %681 = vmatpush1.msra.mxu0 0.0
        %682 = vmatprep.subr.mxu0 0.0
        %683 = vmatpush1.msra.mxu0 0.0
        %684 = vmatprep.subr.mxu0 0.0
        %685 = vmatpush1.msra.mxu0 0.0
        %686 = vmatprep.subr.mxu0 0.0
        %687 = vmatpush1.msra.mxu0 0.0
        %688 = vmatprep.subr.mxu0 0.0
        %689 = vmatpush1.msra.mxu0 0.0
        %690 = vmatprep.subr.mxu0 0.0
        %691 = vmatpush1.msra.mxu0 0.0
        %692 = vmatprep.subr.mxu0 0.0
        %693 = vmatpush1.msra.mxu0 0.0
        %694 = vmatprep.subr.mxu0 0.0
        %695 = vmatpush1.msra.mxu0 0.0
        %696 = vmatprep.subr.mxu0 0.0
        %697 = vmatpush1.msra.mxu0 0.0
        %698 = vmatprep.subr.mxu0 0.0
        %699 = vmatpush1.msra.mxu0 0.0
        %700 = vmatprep.subr.mxu0 0.0
        %701 = vmatpush1.msra.mxu0 0.0
        %702 = vmatprep.subr.mxu0 0.0
        %703 = vmatpush1.msra.mxu0 0.0
        %704 = vmatprep.subr.mxu0 0.0
        %705 = vmatpush1.msra.mxu0 0.0
        %706 = vmatprep.subr.mxu0 0.0
        %707 = vmatpush1.msra.mxu0 0.0
        %708 = vmatprep.subr.mxu0 0.0
        %709 = vmatpush1.msra.mxu0 0.0
        %710 = vmatprep.subr.mxu0 0.0
        %711 = vmatpush1.msra.mxu0 0.0
        %712 = vmatprep.subr.mxu0 0.0
        %713 = vmatpush1.msra.mxu0 0.0
        %714 = vmatprep.subr.mxu0 0.0
        %715 = vmatpush1.msra.mxu0 0.0
        %716 = vmatprep.subr.mxu0 0.0
        %717 = vmatpush1.msra.mxu0 0.0
        %718 = vmatprep.subr.mxu0 0.0
        %719 = vmatpush1.msra.mxu0 0.0
        %720 = vmatprep.mubr.f32.mxu0 0.0
        %721 = vmatmul.mubr.f32.gmra.mrb[0].mxu0 %v654
        %v722 = vpop.f32.mrb[0].mxu0
        %v723 = vadd.f32 %v650, %v722
        %v724 = vpop.f32.mrb[0].mxu0
        %725 = vdwg.mxu0
        %s726 = scalar_lea.vmem %s1, 16
        %v727 = vld [vmem:[%s726] sm:$0xff]
        %v729 = vsel %vm426, %v727, 0
        %731 = vmatprep.subr.mxu0 0.0
        %732 = vmatpush1.msra.mxu0 %v422
        %733 = vmatprep.subr.mxu0 0.0
        %734 = vmatpush1.msra.mxu0 %v423
        %735 = vmatprep.subr.mxu0 0.0
        %736 = vmatpush1.msra.mxu0 0.0
        %737 = vmatprep.subr.mxu0 0.0
        %738 = vmatpush1.msra.mxu0 0.0
        %739 = vmatprep.subr.mxu0 0.0
        %740 = vmatpush1.msra.mxu0 0.0
        %741 = vmatprep.subr.mxu0 0.0
        %742 = vmatpush1.msra.mxu0 0.0
        %743 = vmatprep.subr.mxu0 0.0
        %744 = vmatpush1.msra.mxu0 0.0
        %745 = vmatprep.subr.mxu0 0.0
        %746 = vmatpush1.msra.mxu0 0.0
        %747 = vmatprep.subr.mxu0 0.0
        %748 = vmatpush1.msra.mxu0 0.0
        %749 = vmatprep.subr.mxu0 0.0
        %750 = vmatpush1.msra.mxu0 0.0
        %751 = vmatprep.subr.mxu0 0.0
        %752 = vmatpush1.msra.mxu0 0.0
        %753 = vmatprep.subr.mxu0 0.0
        %754 = vmatpush1.msra.mxu0 0.0
        %755 = vmatprep.subr.mxu0 0.0
        %756 = vmatpush1.msra.mxu0 0.0
        %757 = vmatprep.subr.mxu0 0.0
        %758 = vmatpush1.msra.mxu0 0.0
        %759 = vmatprep.subr.mxu0 0.0
        %760 = vmatpush1.msra.mxu0 0.0
        %761 = vmatprep.subr.mxu0 0.0
        %762 = vmatpush1.msra.mxu0 0.0
        %763 = vmatprep.subr.mxu0 0.0
        %764 = vmatpush1.msra.mxu0 0.0
        %765 = vmatprep.subr.mxu0 0.0
        %766 = vmatpush1.msra.mxu0 0.0
        %767 = vmatprep.subr.mxu0 0.0
        %768 = vmatpush1.msra.mxu0 0.0
        %769 = vmatprep.subr.mxu0 0.0
        %770 = vmatpush1.msra.mxu0 0.0
        %771 = vmatprep.subr.mxu0 0.0
        %772 = vmatpush1.msra.mxu0 0.0
        %773 = vmatprep.subr.mxu0 0.0
        %774 = vmatpush1.msra.mxu0 0.0
        %775 = vmatprep.subr.mxu0 0.0
        %776 = vmatpush1.msra.mxu0 0.0
        %777 = vmatprep.subr.mxu0 0.0
        %778 = vmatpush1.msra.mxu0 0.0
        %779 = vmatprep.subr.mxu0 0.0
        %780 = vmatpush1.msra.mxu0 0.0
        %781 = vmatprep.subr.mxu0 0.0
        %782 = vmatpush1.msra.mxu0 0.0
        %783 = vmatprep.subr.mxu0 0.0
        %784 = vmatpush1.msra.mxu0 0.0
        %785 = vmatprep.subr.mxu0 0.0
        %786 = vmatpush1.msra.mxu0 0.0
        %787 = vmatprep.subr.mxu0 0.0
        %788 = vmatpush1.msra.mxu0 0.0
        %789 = vmatprep.subr.mxu0 0.0
        %790 = vmatpush1.msra.mxu0 0.0
        %791 = vmatprep.subr.mxu0 0.0
        %792 = vmatpush1.msra.mxu0 0.0
        %793 = vmatprep.subr.mxu0 0.0
        %794 = vmatpush1.msra.mxu0 0.0
        %795 = vmatprep.mubr.f32.mxu0 0.0
        %796 = vmatmul.mubr.f32.gmra.mrb[0].mxu0 %v729
        %v797 = vpop.f32.mrb[0].mxu0
        %v798 = vadd.f32 0.0, %v797
        %v799 = vpop.f32.mrb[0].mxu0
        %800 = vdwg.mxu0
        %s801 = scalar_lea.vmem %s2, 32
        %v802 = vld [vmem:[%s801] sm:$0xff]
        %v803 = vld [vmem:[%s801 + $0x8] sm:$0xff]
        %v805 = vsel %vm426, %v798, 0
        %807 = vmatprep.subr.mxu0 0.0
        %808 = vmatpush1.msra.mxu0 %v802
        %809 = vmatprep.subr.mxu0 0.0
        %810 = vmatpush1.msra.mxu0 %v803
        %811 = vmatprep.subr.mxu0 0.0
        %812 = vmatpush1.msra.mxu0 0.0
        %813 = vmatprep.subr.mxu0 0.0
        %814 = vmatpush1.msra.mxu0 0.0
        %815 = vmatprep.subr.mxu0 0.0
        %816 = vmatpush1.msra.mxu0 0.0
        %817 = vmatprep.subr.mxu0 0.0
        %818 = vmatpush1.msra.mxu0 0.0
        %819 = vmatprep.subr.mxu0 0.0
        %820 = vmatpush1.msra.mxu0 0.0
        %821 = vmatprep.subr.mxu0 0.0
        %822 = vmatpush1.msra.mxu0 0.0
        %823 = vmatprep.subr.mxu0 0.0
        %824 = vmatpush1.msra.mxu0 0.0
        %825 = vmatprep.subr.mxu0 0.0
        %826 = vmatpush1.msra.mxu0 0.0
        %827 = vmatprep.subr.mxu0 0.0
        %828 = vmatpush1.msra.mxu0 0.0
        %829 = vmatprep.subr.mxu0 0.0
        %830 = vmatpush1.msra.mxu0 0.0
        %831 = vmatprep.subr.mxu0 0.0
        %832 = vmatpush1.msra.mxu0 0.0
        %833 = vmatprep.subr.mxu0 0.0
        %834 = vmatpush1.msra.mxu0 0.0
        %835 = vmatprep.subr.mxu0 0.0
        %836 = vmatpush1.msra.mxu0 0.0
        %837 = vmatprep.subr.mxu0 0.0
        %838 = vmatpush1.msra.mxu0 0.0
        %839 = vmatprep.subr.mxu0 0.0
        %840 = vmatpush1.msra.mxu0 0.0
        %841 = vmatprep.subr.mxu0 0.0
        %842 = vmatpush1.msra.mxu0 0.0
        %843 = vmatprep.subr.mxu0 0.0
        %844 = vmatpush1.msra.mxu0 0.0
        %845 = vmatprep.subr.mxu0 0.0
        %846 = vmatpush1.msra.mxu0 0.0
        %847 = vmatprep.subr.mxu0 0.0
        %848 = vmatpush1.msra.mxu0 0.0
        %849 = vmatprep.subr.mxu0 0.0
        %850 = vmatpush1.msra.mxu0 0.0
        %851 = vmatprep.subr.mxu0 0.0
        %852 = vmatpush1.msra.mxu0 0.0
        %853 = vmatprep.subr.mxu0 0.0
        %854 = vmatpush1.msra.mxu0 0.0
        %855 = vmatprep.subr.mxu0 0.0
        %856 = vmatpush1.msra.mxu0 0.0
        %857 = vmatprep.subr.mxu0 0.0
        %858 = vmatpush1.msra.mxu0 0.0
        %859 = vmatprep.subr.mxu0 0.0
        %860 = vmatpush1.msra.mxu0 0.0
        %861 = vmatprep.subr.mxu0 0.0
        %862 = vmatpush1.msra.mxu0 0.0
        %863 = vmatprep.subr.mxu0 0.0
        %864 = vmatpush1.msra.mxu0 0.0
        %865 = vmatprep.subr.mxu0 0.0
        %866 = vmatpush1.msra.mxu0 0.0
        %867 = vmatprep.subr.mxu0 0.0
        %868 = vmatpush1.msra.mxu0 0.0
        %869 = vmatprep.subr.mxu0 0.0
        %870 = vmatpush1.msra.mxu0 0.0
        %871 = vmatprep.mubr.f32.mxu0 0.0
        %872 = vmatmul.mubr.f32.gmra.mrb[0].mxu0 %v805
        %v873 = vpop.f32.mrb[0].mxu0
        %v874 = vadd.f32 0.0, %v873
        %v875 = vpop.f32.mrb[0].mxu0
        %876 = vdwg.mxu0
        %v877 = vadd.f32 %v723, %v874
        %s878 = scalar_lea.vmem %s1, 24
        %v879 = vld [vmem:[%s878] sm:$0xff]
        %v881 = vsel %vm426, %v879, 0
        %883 = vmatprep.subr.mxu0 0.0
        %884 = vmatpush1.msra.mxu0 %v422
        %885 = vmatprep.subr.mxu0 0.0
        %886 = vmatpush1.msra.mxu0 %v423
        %887 = vmatprep.subr.mxu0 0.0
        %888 = vmatpush1.msra.mxu0 0.0
        %889 = vmatprep.subr.mxu0 0.0
        %890 = vmatpush1.msra.mxu0 0.0
        %891 = vmatprep.subr.mxu0 0.0
        %892 = vmatpush1.msra.mxu0 0.0
        %893 = vmatprep.subr.mxu0 0.0
        %894 = vmatpush1.msra.mxu0 0.0
        %895 = vmatprep.subr.mxu0 0.0
        %896 = vmatpush1.msra.mxu0 0.0
        %897 = vmatprep.subr.mxu0 0.0
        %898 = vmatpush1.msra.mxu0 0.0
        %899 = vmatprep.subr.mxu0 0.0
        %900 = vmatpush1.msra.mxu0 0.0
        %901 = vmatprep.subr.mxu0 0.0
        %902 = vmatpush1.msra.mxu0 0.0
        %903 = vmatprep.subr.mxu0 0.0
        %904 = vmatpush1.msra.mxu0 0.0
        %905 = vmatprep.subr.mxu0 0.0
        %906 = vmatpush1.msra.mxu0 0.0
        %907 = vmatprep.subr.mxu0 0.0
        %908 = vmatpush1.msra.mxu0 0.0
        %909 = vmatprep.subr.mxu0 0.0
        %910 = vmatpush1.msra.mxu0 0.0
        %911 = vmatprep.subr.mxu0 0.0
        %912 = vmatpush1.msra.mxu0 0.0
        %913 = vmatprep.subr.mxu0 0.0
        %914 = vmatpush1.msra.mxu0 0.0
        %915 = vmatprep.subr.mxu0 0.0
        %916 = vmatpush1.msra.mxu0 0.0
        %917 = vmatprep.subr.mxu0 0.0
        %918 = vmatpush1.msra.mxu0 0.0
        %919 = vmatprep.subr.mxu0 0.0
        %920 = vmatpush1.msra.mxu0 0.0
        %921 = vmatprep.subr.mxu0 0.0
        %922 = vmatpush1.msra.mxu0 0.0
        %923 = vmatprep.subr.mxu0 0.0
        %924 = vmatpush1.msra.mxu0 0.0
        %925 = vmatprep.subr.mxu0 0.0
        %926 = vmatpush1.msra.mxu0 0.0
        %927 = vmatprep.subr.mxu0 0.0
        %928 = vmatpush1.msra.mxu0 0.0
        %929 = vmatprep.subr.mxu0 0.0
        %930 = vmatpush1.msra.mxu0 0.0
        %931 = vmatprep.subr.mxu0 0.0
        %932 = vmatpush1.msra.mxu0 0.0
        %933 = vmatprep.subr.mxu0 0.0
        %934 = vmatpush1.msra.mxu0 0.0
        %935 = vmatprep.subr.mxu0 0.0
        %936 = vmatpush1.msra.mxu0 0.0
        %937 = vmatprep.subr.mxu0 0.0
        %938 = vmatpush1.msra.mxu0 0.0
        %939 = vmatprep.subr.mxu0 0.0
        %940 = vmatpush1.msra.mxu0 0.0
        %941 = vmatprep.subr.mxu0 0.0
        %942 = vmatpush1.msra.mxu0 0.0
        %943 = vmatprep.subr.mxu0 0.0
        %944 = vmatpush1.msra.mxu0 0.0
        %945 = vmatprep.subr.mxu0 0.0
        %946 = vmatpush1.msra.mxu0 0.0
        %947 = vmatprep.mubr.f32.mxu0 0.0
        %948 = vmatmul.mubr.f32.gmra.mrb[0].mxu0 %v881
        %v949 = vpop.f32.mrb[0].mxu0
        %v950 = vadd.f32 0.0, %v949
        %v951 = vpop.f32.mrb[0].mxu0
        %952 = vdwg.mxu0
        %s953 = scalar_lea.vmem %s2, 48
        %v954 = vld [vmem:[%s953] sm:$0xff]
        %v955 = vld [vmem:[%s953 + $0x8] sm:$0xff]
        %v957 = vsel %vm426, %v950, 0
        %959 = vmatprep.subr.mxu0 0.0
        %960 = vmatpush1.msra.mxu0 %v954
        %961 = vmatprep.subr.mxu0 0.0
        %962 = vmatpush1.msra.mxu0 %v955
        %963 = vmatprep.subr.mxu0 0.0
        %964 = vmatpush1.msra.mxu0 0.0
        %965 = vmatprep.subr.mxu0 0.0
        %966 = vmatpush1.msra.mxu0 0.0
        %967 = vmatprep.subr.mxu0 0.0
        %968 = vmatpush1.msra.mxu0 0.0
        %969 = vmatprep.subr.mxu0 0.0
        %970 = vmatpush1.msra.mxu0 0.0
        %971 = vmatprep.subr.mxu0 0.0
        %972 = vmatpush1.msra.mxu0 0.0
        %973 = vmatprep.subr.mxu0 0.0
        %974 = vmatpush1.msra.mxu0 0.0
        %975 = vmatprep.subr.mxu0 0.0
        %976 = vmatpush1.msra.mxu0 0.0
        %977 = vmatprep.subr.mxu0 0.0
        %978 = vmatpush1.msra.mxu0 0.0
        %979 = vmatprep.subr.mxu0 0.0
        %980 = vmatpush1.msra.mxu0 0.0
        %981 = vmatprep.subr.mxu0 0.0
        %982 = vmatpush1.msra.mxu0 0.0
        %983 = vmatprep.subr.mxu0 0.0
        %984 = vmatpush1.msra.mxu0 0.0
        %985 = vmatprep.subr.mxu0 0.0
        %986 = vmatpush1.msra.mxu0 0.0
        %987 = vmatprep.subr.mxu0 0.0
        %988 = vmatpush1.msra.mxu0 0.0
        %989 = vmatprep.subr.mxu0 0.0
        %990 = vmatpush1.msra.mxu0 0.0
        %991 = vmatprep.subr.mxu0 0.0
        %992 = vmatpush1.msra.mxu0 0.0
        %993 = vmatprep.subr.mxu0 0.0
        %994 = vmatpush1.msra.mxu0 0.0
        %995 = vmatprep.subr.mxu0 0.0
        %996 = vmatpush1.msra.mxu0 0.0
        %997 = vmatprep.subr.mxu0 0.0
        %998 = vmatpush1.msra.mxu0 0.0
        %999 = vmatprep.subr.mxu0 0.0
        %1000 = vmatpush1.msra.mxu0 0.0
        %1001 = vmatprep.subr.mxu0 0.0
        %1002 = vmatpush1.msra.mxu0 0.0
        %1003 = vmatprep.subr.mxu0 0.0
        %1004 = vmatpush1.msra.mxu0 0.0
        %1005 = vmatprep.subr.mxu0 0.0
        %1006 = vmatpush1.msra.mxu0 0.0
        %1007 = vmatprep.subr.mxu0 0.0
        %1008 = vmatpush1.msra.mxu0 0.0
        %1009 = vmatprep.subr.mxu0 0.0
        %1010 = vmatpush1.msra.mxu0 0.0
        %1011 = vmatprep.subr.mxu0 0.0
        %1012 = vmatpush1.msra.mxu0 0.0
        %1013 = vmatprep.subr.mxu0 0.0
        %1014 = vmatpush1.msra.mxu0 0.0
        %1015 = vmatprep.subr.mxu0 0.0
        %1016 = vmatpush1.msra.mxu0 0.0
        %1017 = vmatprep.subr.mxu0 0.0
        %1018 = vmatpush1.msra.mxu0 0.0
        %1019 = vmatprep.subr.mxu0 0.0
        %1020 = vmatpush1.msra.mxu0 0.0
        %1021 = vmatprep.subr.mxu0 0.0
        %1022 = vmatpush1.msra.mxu0 0.0
        %1023 = vmatprep.mubr.f32.mxu0 0.0
        %1024 = vmatmul.mubr.f32.gmra.mrb[0].mxu0 %v957
        %v1025 = vpop.f32.mrb[0].mxu0
        %v1026 = vadd.f32 0.0, %v1025
        %v1027 = vpop.f32.mrb[0].mxu0
        %1028 = vdwg.mxu0
        %v1029 = vadd.f32 %v877, %v1026
        %v1031 = vlaneseq
        %v1032 = vshrl.u32 %v1031, 7
        %v1033 = vsub.s32 0, %v1032
        %v1034 = vrot.slane %v424, %v1033
        %v1036 = vadd.f32 %v1029, %v1034
        %vm1037 = vcmp.ge.f32.partialorder %v1036, 0.0
        %v1038 = vmul.f32 %v1036, 0.01
        %v1039 = vsel %vm1037, %v1036, %v1038
        %v1040 = vld [vmem:[%s6] sm:$0x1]
        %v1041 = vld [vmem:[%s4] sm:$0xf]
        %vm1042 = vcmask 64512
        %v1044 = vsel %vm1042, %v1041, 0
        %1046 = vmatprep.subr.mxu0 0.0
        %1047 = vmatpush1.msra.mxu0 %v1039
        %1048 = vmatprep.subr.mxu0 0.0
        %1049 = vmatpush1.msra.mxu0 0.0
        %1050 = vmatprep.subr.mxu0 0.0
        %1051 = vmatpush1.msra.mxu0 0.0
        %1052 = vmatprep.subr.mxu0 0.0
        %1053 = vmatpush1.msra.mxu0 0.0
        %1054 = vmatprep.subr.mxu0 0.0
        %1055 = vmatpush1.msra.mxu0 0.0
        %1056 = vmatprep.subr.mxu0 0.0
        %1057 = vmatpush1.msra.mxu0 0.0
        %1058 = vmatprep.subr.mxu0 0.0
        %1059 = vmatpush1.msra.mxu0 0.0
        %1060 = vmatprep.subr.mxu0 0.0
        %1061 = vmatpush1.msra.mxu0 0.0
        %1062 = vmatprep.subr.mxu0 0.0
        %1063 = vmatpush1.msra.mxu0 0.0
        %1064 = vmatprep.subr.mxu0 0.0
        %1065 = vmatpush1.msra.mxu0 0.0
        %1066 = vmatprep.subr.mxu0 0.0
        %1067 = vmatpush1.msra.mxu0 0.0
        %1068 = vmatprep.subr.mxu0 0.0
        %1069 = vmatpush1.msra.mxu0 0.0
        %1070 = vmatprep.subr.mxu0 0.0
        %1071 = vmatpush1.msra.mxu0 0.0
        %1072 = vmatprep.subr.mxu0 0.0
        %1073 = vmatpush1.msra.mxu0 0.0
        %1074 = vmatprep.subr.mxu0 0.0
        %1075 = vmatpush1.msra.mxu0 0.0
        %1076 = vmatprep.subr.mxu0 0.0
        %1077 = vmatpush1.msra.mxu0 0.0
        %1078 = vmatprep.subr.mxu0 0.0
        %1079 = vmatpush1.msra.mxu0 0.0
        %1080 = vmatprep.subr.mxu0 0.0
        %1081 = vmatpush1.msra.mxu0 0.0
        %1082 = vmatprep.subr.mxu0 0.0
        %1083 = vmatpush1.msra.mxu0 0.0
        %1084 = vmatprep.subr.mxu0 0.0
        %1085 = vmatpush1.msra.mxu0 0.0
        %1086 = vmatprep.subr.mxu0 0.0
        %1087 = vmatpush1.msra.mxu0 0.0
        %1088 = vmatprep.subr.mxu0 0.0
        %1089 = vmatpush1.msra.mxu0 0.0
        %1090 = vmatprep.subr.mxu0 0.0
        %1091 = vmatpush1.msra.mxu0 0.0
        %1092 = vmatprep.subr.mxu0 0.0
        %1093 = vmatpush1.msra.mxu0 0.0
        %1094 = vmatprep.subr.mxu0 0.0
        %1095 = vmatpush1.msra.mxu0 0.0
        %1096 = vmatprep.subr.mxu0 0.0
        %1097 = vmatpush1.msra.mxu0 0.0
        %1098 = vmatprep.subr.mxu0 0.0
        %1099 = vmatpush1.msra.mxu0 0.0
        %1100 = vmatprep.subr.mxu0 0.0
        %1101 = vmatpush1.msra.mxu0 0.0
        %1102 = vmatprep.subr.mxu0 0.0
        %1103 = vmatpush1.msra.mxu0 0.0
        %1104 = vmatprep.subr.mxu0 0.0
        %1105 = vmatpush1.msra.mxu0 0.0
        %1106 = vmatprep.subr.mxu0 0.0
        %1107 = vmatpush1.msra.mxu0 0.0
        %1108 = vmatprep.subr.mxu0 0.0
        %1109 = vmatpush1.msra.mxu0 0.0
        %1110 = vmatprep.mubr.f32.mxu0 0.0
        %1111 = vmatmul.mubr.f32.gmra.mrb[0].mxu0 %v1044
        %v1112 = vpop.f32.mrb[0].mxu0
        %v1113 = vadd.f32 0.0, %v1112
        %v1114 = vpop.f32.mrb[0].mxu0
        %1115 = vdwg.mxu0
        %v1116 = vld [vmem:[%s5] sm:$0xff]
        %v1117 = vld [vmem:[%s5 + $0x8] sm:$0xff]
        %v1118 = vld [vmem:[%s5 + $0x10] sm:$0xff]
        %v1119 = vld [vmem:[%s5 + $0x18] sm:$0xff]
        %v1120 = vld [vmem:[%s5 + $0x20] sm:$0xff]
        %v1121 = vld [vmem:[%s5 + $0x28] sm:$0xff]
        %v1122 = vld [vmem:[%s5 + $0x30] sm:$0xff]
        %v1123 = vld [vmem:[%s5 + $0x38] sm:$0xff]
        %s1124 = scalar_lea.vmem %s4, 4
        %v1125 = vld [vmem:[%s1124] sm:$0xf]
        %v1127 = vsel %vm1042, %v1125, 0
        %1129 = vmatprep.subr.mxu0 0.0
        %1130 = vmatpush1.msra.mxu0 %v1039
        %1131 = vmatprep.subr.mxu0 0.0
        %1132 = vmatpush1.msra.mxu0 0.0
        %1133 = vmatprep.subr.mxu0 0.0
        %1134 = vmatpush1.msra.mxu0 0.0
        %1135 = vmatprep.subr.mxu0 0.0
        %1136 = vmatpush1.msra.mxu0 0.0
        %1137 = vmatprep.subr.mxu0 0.0
        %1138 = vmatpush1.msra.mxu0 0.0
        %1139 = vmatprep.subr.mxu0 0.0
        %1140 = vmatpush1.msra.mxu0 0.0
        %1141 = vmatprep.subr.mxu0 0.0
        %1142 = vmatpush1.msra.mxu0 0.0
        %1143 = vmatprep.subr.mxu0 0.0
        %1144 = vmatpush1.msra.mxu0 0.0
        %1145 = vmatprep.subr.mxu0 0.0
        %1146 = vmatpush1.msra.mxu0 0.0
        %1147 = vmatprep.subr.mxu0 0.0
        %1148 = vmatpush1.msra.mxu0 0.0
        %1149 = vmatprep.subr.mxu0 0.0
        %1150 = vmatpush1.msra.mxu0 0.0
        %1151 = vmatprep.subr.mxu0 0.0
        %1152 = vmatpush1.msra.mxu0 0.0
        %1153 = vmatprep.subr.mxu0 0.0
        %1154 = vmatpush1.msra.mxu0 0.0
        %1155 = vmatprep.subr.mxu0 0.0
        %1156 = vmatpush1.msra.mxu0 0.0
        %1157 = vmatprep.subr.mxu0 0.0
        %1158 = vmatpush1.msra.mxu0 0.0
        %1159 = vmatprep.subr.mxu0 0.0
        %1160 = vmatpush1.msra.mxu0 0.0
        %1161 = vmatprep.subr.mxu0 0.0
        %1162 = vmatpush1.msra.mxu0 0.0
        %1163 = vmatprep.subr.mxu0 0.0
        %1164 = vmatpush1.msra.mxu0 0.0
        %1165 = vmatprep.subr.mxu0 0.0
        %1166 = vmatpush1.msra.mxu0 0.0
        %1167 = vmatprep.subr.mxu0 0.0
        %1168 = vmatpush1.msra.mxu0 0.0
        %1169 = vmatprep.subr.mxu0 0.0
        %1170 = vmatpush1.msra.mxu0 0.0
        %1171 = vmatprep.subr.mxu0 0.0
        %1172 = vmatpush1.msra.mxu0 0.0
        %1173 = vmatprep.subr.mxu0 0.0
        %1174 = vmatpush1.msra.mxu0 0.0
        %1175 = vmatprep.subr.mxu0 0.0
        %1176 = vmatpush1.msra.mxu0 0.0
        %1177 = vmatprep.subr.mxu0 0.0
        %1178 = vmatpush1.msra.mxu0 0.0
        %1179 = vmatprep.subr.mxu0 0.0
        %1180 = vmatpush1.msra.mxu0 0.0
        %1181 = vmatprep.subr.mxu0 0.0
        %1182 = vmatpush1.msra.mxu0 0.0
        %1183 = vmatprep.subr.mxu0 0.0
        %1184 = vmatpush1.msra.mxu0 0.0
        %1185 = vmatprep.subr.mxu0 0.0
        %1186 = vmatpush1.msra.mxu0 0.0
        %1187 = vmatprep.subr.mxu0 0.0
        %1188 = vmatpush1.msra.mxu0 0.0
        %1189 = vmatprep.subr.mxu0 0.0
        %1190 = vmatpush1.msra.mxu0 0.0
        %1191 = vmatprep.subr.mxu0 0.0
        %1192 = vmatpush1.msra.mxu0 0.0
        %1193 = vmatprep.mubr.f32.mxu0 0.0
        %1194 = vmatmul.mubr.f32.gmra.mrb[0].mxu0 %v1127
        %v1195 = vpop.f32.mrb[0].mxu0
        %v1196 = vadd.f32 0.0, %v1195
        %v1197 = vpop.f32.mrb[0].mxu0
        %1198 = vdwg.mxu0
        %s1199 = scalar_lea.vmem %s5, 64
        %v1200 = vld [vmem:[%s1199] sm:$0xff]
        %v1201 = vld [vmem:[%s1199 + $0x8] sm:$0xff]
        %v1202 = vld [vmem:[%s1199 + $0x10] sm:$0xff]
        %v1203 = vld [vmem:[%s1199 + $0x18] sm:$0xff]
        %v1204 = vld [vmem:[%s1199 + $0x20] sm:$0xff]
        %v1205 = vld [vmem:[%s1199 + $0x28] sm:$0xff]
        %v1206 = vld [vmem:[%s1199 + $0x30] sm:$0xff]
        %v1207 = vld [vmem:[%s1199 + $0x38] sm:$0xff]
        %vm1208 = vcmask 523264
        %v1210 = vsel %vm1208, %v1196, 0
        %1212 = vmatprep.subr.mxu0 0.0
        %1213 = vmatpush1.msra.mxu0 %v1200
        %1214 = vmatprep.subr.mxu0 0.0
        %1215 = vmatpush1.msra.mxu0 %v1201
        %1216 = vmatprep.subr.mxu0 0.0
        %1217 = vmatpush1.msra.mxu0 %v1202
        %1218 = vmatprep.subr.mxu0 0.0
        %1219 = vmatpush1.msra.mxu0 %v1203
        %1220 = vmatprep.subr.mxu0 0.0
        %1221 = vmatpush1.msra.mxu0 %v1204
        %1222 = vmatprep.subr.mxu0 0.0
        %1223 = vmatpush1.msra.mxu0 %v1205
        %1224 = vmatprep.subr.mxu0 0.0
        %1225 = vmatpush1.msra.mxu0 %v1206
        %1226 = vmatprep.subr.mxu0 0.0
        %1227 = vmatpush1.msra.mxu0 %v1207
        %1228 = vmatprep.subr.mxu0 0.0
        %1229 = vmatpush1.msra.mxu0 0.0
        %1230 = vmatprep.subr.mxu0 0.0
        %1231 = vmatpush1.msra.mxu0 0.0
        %1232 = vmatprep.subr.mxu0 0.0
        %1233 = vmatpush1.msra.mxu0 0.0
        %1234 = vmatprep.subr.mxu0 0.0
        %1235 = vmatpush1.msra.mxu0 0.0
        %1236 = vmatprep.subr.mxu0 0.0
        %1237 = vmatpush1.msra.mxu0 0.0
        %1238 = vmatprep.subr.mxu0 0.0
        %1239 = vmatpush1.msra.mxu0 0.0
        %1240 = vmatprep.subr.mxu0 0.0
        %1241 = vmatpush1.msra.mxu0 0.0
        %1242 = vmatprep.subr.mxu0 0.0
        %1243 = vmatpush1.msra.mxu0 0.0
        %1244 = vmatprep.subr.mxu0 0.0
        %1245 = vmatpush1.msra.mxu0 0.0
        %1246 = vmatprep.subr.mxu0 0.0
        %1247 = vmatpush1.msra.mxu0 0.0
        %1248 = vmatprep.subr.mxu0 0.0
        %1249 = vmatpush1.msra.mxu0 0.0
        %1250 = vmatprep.subr.mxu0 0.0
        %1251 = vmatpush1.msra.mxu0 0.0
        %1252 = vmatprep.subr.mxu0 0.0
        %1253 = vmatpush1.msra.mxu0 0.0
        %1254 = vmatprep.subr.mxu0 0.0
        %1255 = vmatpush1.msra.mxu0 0.0
        %1256 = vmatprep.subr.mxu0 0.0
        %1257 = vmatpush1.msra.mxu0 0.0
        %1258 = vmatprep.subr.mxu0 0.0
        %1259 = vmatpush1.msra.mxu0 0.0
        %1260 = vmatprep.subr.mxu0 0.0
        %1261 = vmatpush1.msra.mxu0 0.0
        %1262 = vmatprep.subr.mxu0 0.0
        %1263 = vmatpush1.msra.mxu0 0.0
        %1264 = vmatprep.subr.mxu0 0.0
        %1265 = vmatpush1.msra.mxu0 0.0
        %1266 = vmatprep.subr.mxu0 0.0
        %1267 = vmatpush1.msra.mxu0 0.0
        %1268 = vmatprep.subr.mxu0 0.0
        %1269 = vmatpush1.msra.mxu0 0.0
        %1270 = vmatprep.subr.mxu0 0.0
        %1271 = vmatpush1.msra.mxu0 0.0
        %1272 = vmatprep.subr.mxu0 0.0
        %1273 = vmatpush1.msra.mxu0 0.0
        %1274 = vmatprep.subr.mxu0 0.0
        %1275 = vmatpush1.msra.mxu0 0.0
        %1276 = vmatprep.mubr.f32.mxu0 0.0
        %1277 = vmatmul.mubr.f32.gmra.mrb[0].mxu0 %v1210
        %v1278 = vpop.f32.mrb[0].mxu0
        %v1279 = vadd.f32 0.0, %v1278
        %v1280 = vpop.f32.mrb[0].mxu0
        %1281 = vdwg.mxu0
        %v1283 = vsel %vm1208, %v1113, 0
        %1285 = vmatprep.subr.mxu0 0.0
        %1286 = vmatpush1.msra.mxu0 %v1116
        %1287 = vmatprep.subr.mxu0 0.0
        %1288 = vmatpush1.msra.mxu0 %v1117
        %1289 = vmatprep.subr.mxu0 0.0
        %1290 = vmatpush1.msra.mxu0 %v1118
        %1291 = vmatprep.subr.mxu0 0.0
        %1292 = vmatpush1.msra.mxu0 %v1119
        %1293 = vmatprep.subr.mxu0 0.0
        %1294 = vmatpush1.msra.mxu0 %v1120
        %1295 = vmatprep.subr.mxu0 0.0
        %1296 = vmatpush1.msra.mxu0 %v1121
        %1297 = vmatprep.subr.mxu0 0.0
        %1298 = vmatpush1.msra.mxu0 %v1122
        %1299 = vmatprep.subr.mxu0 0.0
        %1300 = vmatpush1.msra.mxu0 %v1123
        %1301 = vmatprep.subr.mxu0 0.0
        %1302 = vmatpush1.msra.mxu0 0.0
        %1303 = vmatprep.subr.mxu0 0.0
        %1304 = vmatpush1.msra.mxu0 0.0
        %1305 = vmatprep.subr.mxu0 0.0
        %1306 = vmatpush1.msra.mxu0 0.0
        %1307 = vmatprep.subr.mxu0 0.0
        %1308 = vmatpush1.msra.mxu0 0.0
        %1309 = vmatprep.subr.mxu0 0.0
        %1310 = vmatpush1.msra.mxu0 0.0
        %1311 = vmatprep.subr.mxu0 0.0
        %1312 = vmatpush1.msra.mxu0 0.0
        %1313 = vmatprep.subr.mxu0 0.0
        %1314 = vmatpush1.msra.mxu0 0.0
        %1315 = vmatprep.subr.mxu0 0.0
        %1316 = vmatpush1.msra.mxu0 0.0
        %1317 = vmatprep.subr.mxu0 0.0
        %1318 = vmatpush1.msra.mxu0 0.0
        %1319 = vmatprep.subr.mxu0 0.0
        %1320 = vmatpush1.msra.mxu0 0.0
        %1321 = vmatprep.subr.mxu0 0.0
        %1322 = vmatpush1.msra.mxu0 0.0
        %1323 = vmatprep.subr.mxu0 0.0
        %1324 = vmatpush1.msra.mxu0 0.0
        %1325 = vmatprep.subr.mxu0 0.0
        %1326 = vmatpush1.msra.mxu0 0.0
        %1327 = vmatprep.subr.mxu0 0.0
        %1328 = vmatpush1.msra.mxu0 0.0
        %1329 = vmatprep.subr.mxu0 0.0
        %1330 = vmatpush1.msra.mxu0 0.0
        %1331 = vmatprep.subr.mxu0 0.0
        %1332 = vmatpush1.msra.mxu0 0.0
        %1333 = vmatprep.subr.mxu0 0.0
        %1334 = vmatpush1.msra.mxu0 0.0
        %1335 = vmatprep.subr.mxu0 0.0
        %1336 = vmatpush1.msra.mxu0 0.0
        %1337 = vmatprep.subr.mxu0 0.0
        %1338 = vmatpush1.msra.mxu0 0.0
        %1339 = vmatprep.subr.mxu0 0.0
        %1340 = vmatpush1.msra.mxu0 0.0
        %1341 = vmatprep.subr.mxu0 0.0
        %1342 = vmatpush1.msra.mxu0 0.0
        %1343 = vmatprep.subr.mxu0 0.0
        %1344 = vmatpush1.msra.mxu0 0.0
        %1345 = vmatprep.subr.mxu0 0.0
        %1346 = vmatpush1.msra.mxu0 0.0
        %1347 = vmatprep.subr.mxu0 0.0
        %1348 = vmatpush1.msra.mxu0 0.0
        %1349 = vmatprep.mubr.f32.mxu0 0.0
        %1350 = vmatmul.mubr.f32.gmra.mrb[0].mxu0 %v1283
        %v1351 = vpop.f32.mrb[0].mxu0
        %v1352 = vadd.f32 %v1279, %v1351
        %v1353 = vpop.f32.mrb[0].mxu0
        %1354 = vdwg.mxu0
        %s1355 = scalar_lea.vmem %s4, 8
        %v1356 = vld [vmem:[%s1355] sm:$0xf]
        %v1358 = vsel %vm1042, %v1356, 0
        %1360 = vmatprep.subr.mxu0 0.0
        %1361 = vmatpush1.msra.mxu0 %v1039
        %1362 = vmatprep.subr.mxu0 0.0
        %1363 = vmatpush1.msra.mxu0 0.0
        %1364 = vmatprep.subr.mxu0 0.0
        %1365 = vmatpush1.msra.mxu0 0.0
        %1366 = vmatprep.subr.mxu0 0.0
        %1367 = vmatpush1.msra.mxu0 0.0
        %1368 = vmatprep.subr.mxu0 0.0
        %1369 = vmatpush1.msra.mxu0 0.0
        %1370 = vmatprep.subr.mxu0 0.0
        %1371 = vmatpush1.msra.mxu0 0.0
        %1372 = vmatprep.subr.mxu0 0.0
        %1373 = vmatpush1.msra.mxu0 0.0
        %1374 = vmatprep.subr.mxu0 0.0
        %1375 = vmatpush1.msra.mxu0 0.0
        %1376 = vmatprep.subr.mxu0 0.0
        %1377 = vmatpush1.msra.mxu0 0.0
        %1378 = vmatprep.subr.mxu0 0.0
        %1379 = vmatpush1.msra.mxu0 0.0
        %1380 = vmatprep.subr.mxu0 0.0
        %1381 = vmatpush1.msra.mxu0 0.0
        %1382 = vmatprep.subr.mxu0 0.0
        %1383 = vmatpush1.msra.mxu0 0.0
        %1384 = vmatprep.subr.mxu0 0.0
        %1385 = vmatpush1.msra.mxu0 0.0
        %1386 = vmatprep.subr.mxu0 0.0
        %1387 = vmatpush1.msra.mxu0 0.0
        %1388 = vmatprep.subr.mxu0 0.0
        %1389 = vmatpush1.msra.mxu0 0.0
        %1390 = vmatprep.subr.mxu0 0.0
        %1391 = vmatpush1.msra.mxu0 0.0
        %1392 = vmatprep.subr.mxu0 0.0
        %1393 = vmatpush1.msra.mxu0 0.0
        %1394 = vmatprep.subr.mxu0 0.0
        %1395 = vmatpush1.msra.mxu0 0.0
        %1396 = vmatprep.subr.mxu0 0.0
        %1397 = vmatpush1.msra.mxu0 0.0
        %1398 = vmatprep.subr.mxu0 0.0
        %1399 = vmatpush1.msra.mxu0 0.0
        %1400 = vmatprep.subr.mxu0 0.0
        %1401 = vmatpush1.msra.mxu0 0.0
        %1402 = vmatprep.subr.mxu0 0.0
        %1403 = vmatpush1.msra.mxu0 0.0
        %1404 = vmatprep.subr.mxu0 0.0
        %1405 = vmatpush1.msra.mxu0 0.0
        %1406 = vmatprep.subr.mxu0 0.0
        %1407 = vmatpush1.msra.mxu0 0.0
        %1408 = vmatprep.subr.mxu0 0.0
        %1409 = vmatpush1.msra.mxu0 0.0
        %1410 = vmatprep.subr.mxu0 0.0
        %1411 = vmatpush1.msra.mxu0 0.0
        %1412 = vmatprep.subr.mxu0 0.0
        %1413 = vmatpush1.msra.mxu0 0.0
        %1414 = vmatprep.subr.mxu0 0.0
        %1415 = vmatpush1.msra.mxu0 0.0
        %1416 = vmatprep.subr.mxu0 0.0
        %1417 = vmatpush1.msra.mxu0 0.0
        %1418 = vmatprep.subr.mxu0 0.0
        %1419 = vmatpush1.msra.mxu0 0.0
        %1420 = vmatprep.subr.mxu0 0.0
        %1421 = vmatpush1.msra.mxu0 0.0
        %1422 = vmatprep.subr.mxu0 0.0
        %1423 = vmatpush1.msra.mxu0 0.0
        %1424 = vmatprep.mubr.f32.mxu0 0.0
        %1425 = vmatmul.mubr.f32.gmra.mrb[0].mxu0 %v1358
        %v1426 = vpop.f32.mrb[0].mxu0
        %v1427 = vadd.f32 0.0, %v1426
        %v1428 = vpop.f32.mrb[0].mxu0
        %1429 = vdwg.mxu0
        %s1430 = scalar_lea.vmem %s5, 128
        %v1431 = vld [vmem:[%s1430] sm:$0xff]
        %v1432 = vld [vmem:[%s1430 + $0x8] sm:$0xff]
        %v1433 = vld [vmem:[%s1430 + $0x10] sm:$0xff]
        %v1434 = vld [vmem:[%s1430 + $0x18] sm:$0xff]
        %v1435 = vld [vmem:[%s1430 + $0x20] sm:$0xff]
        %v1436 = vld [vmem:[%s1430 + $0x28] sm:$0xff]
        %v1437 = vld [vmem:[%s1430 + $0x30] sm:$0xff]
        %v1438 = vld [vmem:[%s1430 + $0x38] sm:$0xff]
        %v1440 = vsel %vm1208, %v1427, 0
        %1442 = vmatprep.subr.mxu0 0.0
        %1443 = vmatpush1.msra.mxu0 %v1431
        %1444 = vmatprep.subr.mxu0 0.0
        %1445 = vmatpush1.msra.mxu0 %v1432
        %1446 = vmatprep.subr.mxu0 0.0
        %1447 = vmatpush1.msra.mxu0 %v1433
        %1448 = vmatprep.subr.mxu0 0.0
        %1449 = vmatpush1.msra.mxu0 %v1434
        %1450 = vmatprep.subr.mxu0 0.0
        %1451 = vmatpush1.msra.mxu0 %v1435
        %1452 = vmatprep.subr.mxu0 0.0
        %1453 = vmatpush1.msra.mxu0 %v1436
        %1454 = vmatprep.subr.mxu0 0.0
        %1455 = vmatpush1.msra.mxu0 %v1437
        %1456 = vmatprep.subr.mxu0 0.0
        %1457 = vmatpush1.msra.mxu0 %v1438
        %1458 = vmatprep.subr.mxu0 0.0
        %1459 = vmatpush1.msra.mxu0 0.0
        %1460 = vmatprep.subr.mxu0 0.0
        %1461 = vmatpush1.msra.mxu0 0.0
        %1462 = vmatprep.subr.mxu0 0.0
        %1463 = vmatpush1.msra.mxu0 0.0
        %1464 = vmatprep.subr.mxu0 0.0
        %1465 = vmatpush1.msra.mxu0 0.0
        %1466 = vmatprep.subr.mxu0 0.0
        %1467 = vmatpush1.msra.mxu0 0.0
        %1468 = vmatprep.subr.mxu0 0.0
        %1469 = vmatpush1.msra.mxu0 0.0
        %1470 = vmatprep.subr.mxu0 0.0
        %1471 = vmatpush1.msra.mxu0 0.0
        %1472 = vmatprep.subr.mxu0 0.0
        %1473 = vmatpush1.msra.mxu0 0.0
        %1474 = vmatprep.subr.mxu0 0.0
        %1475 = vmatpush1.msra.mxu0 0.0
        %1476 = vmatprep.subr.mxu0 0.0
        %1477 = vmatpush1.msra.mxu0 0.0
        %1478 = vmatprep.subr.mxu0 0.0
        %1479 = vmatpush1.msra.mxu0 0.0
        %1480 = vmatprep.subr.mxu0 0.0
        %1481 = vmatpush1.msra.mxu0 0.0
        %1482 = vmatprep.subr.mxu0 0.0
        %1483 = vmatpush1.msra.mxu0 0.0
        %1484 = vmatprep.subr.mxu0 0.0
        %1485 = vmatpush1.msra.mxu0 0.0
        %1486 = vmatprep.subr.mxu0 0.0
        %1487 = vmatpush1.msra.mxu0 0.0
        %1488 = vmatprep.subr.mxu0 0.0
        %1489 = vmatpush1.msra.mxu0 0.0
        %1490 = vmatprep.subr.mxu0 0.0
        %1491 = vmatpush1.msra.mxu0 0.0
        %1492 = vmatprep.subr.mxu0 0.0
        %1493 = vmatpush1.msra.mxu0 0.0
        %1494 = vmatprep.subr.mxu0 0.0
        %1495 = vmatpush1.msra.mxu0 0.0
        %1496 = vmatprep.subr.mxu0 0.0
        %1497 = vmatpush1.msra.mxu0 0.0
        %1498 = vmatprep.subr.mxu0 0.0
        %1499 = vmatpush1.msra.mxu0 0.0
        %1500 = vmatprep.subr.mxu0 0.0
        %1501 = vmatpush1.msra.mxu0 0.0
        %1502 = vmatprep.subr.mxu0 0.0
        %1503 = vmatpush1.msra.mxu0 0.0
        %1504 = vmatprep.subr.mxu0 0.0
        %1505 = vmatpush1.msra.mxu0 0.0
        %1506 = vmatprep.mubr.f32.mxu0 0.0
        %1507 = vmatmul.mubr.f32.gmra.mrb[0].mxu0 %v1440
        %v1508 = vpop.f32.mrb[0].mxu0
        %v1509 = vadd.f32 0.0, %v1508
        %v1510 = vpop.f32.mrb[0].mxu0
        %1511 = vdwg.mxu0
        %v1512 = vadd.f32 %v1352, %v1509
        %s1513 = scalar_lea.vmem %s4, 12
        %v1514 = vld [vmem:[%s1513] sm:$0xf]
        %v1516 = vsel %vm1042, %v1514, 0
        %1518 = vmatprep.subr.mxu0 0.0
        %1519 = vmatpush1.msra.mxu0 %v1039
        %1520 = vmatprep.subr.mxu0 0.0
        %1521 = vmatpush1.msra.mxu0 0.0
        %1522 = vmatprep.subr.mxu0 0.0
        %1523 = vmatpush1.msra.mxu0 0.0
        %1524 = vmatprep.subr.mxu0 0.0
        %1525 = vmatpush1.msra.mxu0 0.0
        %1526 = vmatprep.subr.mxu0 0.0
        %1527 = vmatpush1.msra.mxu0 0.0
        %1528 = vmatprep.subr.mxu0 0.0
        %1529 = vmatpush1.msra.mxu0 0.0
        %1530 = vmatprep.subr.mxu0 0.0
        %1531 = vmatpush1.msra.mxu0 0.0
        %1532 = vmatprep.subr.mxu0 0.0
        %1533 = vmatpush1.msra.mxu0 0.0
        %1534 = vmatprep.subr.mxu0 0.0
        %1535 = vmatpush1.msra.mxu0 0.0
        %1536 = vmatprep.subr.mxu0 0.0
        %1537 = vmatpush1.msra.mxu0 0.0
        %1538 = vmatprep.subr.mxu0 0.0
        %1539 = vmatpush1.msra.mxu0 0.0
        %1540 = vmatprep.subr.mxu0 0.0
        %1541 = vmatpush1.msra.mxu0 0.0
        %1542 = vmatprep.subr.mxu0 0.0
        %1543 = vmatpush1.msra.mxu0 0.0
        %1544 = vmatprep.subr.mxu0 0.0
        %1545 = vmatpush1.msra.mxu0 0.0
        %1546 = vmatprep.subr.mxu0 0.0
        %1547 = vmatpush1.msra.mxu0 0.0
        %1548 = vmatprep.subr.mxu0 0.0
        %1549 = vmatpush1.msra.mxu0 0.0
        %1550 = vmatprep.subr.mxu0 0.0
        %1551 = vmatpush1.msra.mxu0 0.0
        %1552 = vmatprep.subr.mxu0 0.0
        %1553 = vmatpush1.msra.mxu0 0.0
        %1554 = vmatprep.subr.mxu0 0.0
        %1555 = vmatpush1.msra.mxu0 0.0
        %1556 = vmatprep.subr.mxu0 0.0
        %1557 = vmatpush1.msra.mxu0 0.0
        %1558 = vmatprep.subr.mxu0 0.0
        %1559 = vmatpush1.msra.mxu0 0.0
        %1560 = vmatprep.subr.mxu0 0.0
        %1561 = vmatpush1.msra.mxu0 0.0
        %1562 = vmatprep.subr.mxu0 0.0
        %1563 = vmatpush1.msra.mxu0 0.0
        %1564 = vmatprep.subr.mxu0 0.0
        %1565 = vmatpush1.msra.mxu0 0.0
        %1566 = vmatprep.subr.mxu0 0.0
        %1567 = vmatpush1.msra.mxu0 0.0
        %1568 = vmatprep.subr.mxu0 0.0
        %1569 = vmatpush1.msra.mxu0 0.0
        %1570 = vmatprep.subr.mxu0 0.0
        %1571 = vmatpush1.msra.mxu0 0.0
        %1572 = vmatprep.subr.mxu0 0.0
        %1573 = vmatpush1.msra.mxu0 0.0
        %1574 = vmatprep.subr.mxu0 0.0
        %1575 = vmatpush1.msra.mxu0 0.0
        %1576 = vmatprep.subr.mxu0 0.0
        %1577 = vmatpush1.msra.mxu0 0.0
        %1578 = vmatprep.subr.mxu0 0.0
        %1579 = vmatpush1.msra.mxu0 0.0
        %1580 = vmatprep.subr.mxu0 0.0
        %1581 = vmatpush1.msra.mxu0 0.0
        %1582 = vmatprep.mubr.f32.mxu0 0.0
        %1583 = vmatmul.mubr.f32.gmra.mrb[0].mxu0 %v1516
        %v1584 = vpop.f32.mrb[0].mxu0
        %v1585 = vadd.f32 0.0, %v1584
        %v1586 = vpop.f32.mrb[0].mxu0
        %1587 = vdwg.mxu0
        %s1588 = scalar_lea.vmem %s5, 192
        %v1589 = vld [vmem:[%s1588] sm:$0xff]
        %v1590 = vld [vmem:[%s1588 + $0x8] sm:$0xff]
        %v1591 = vld [vmem:[%s1588 + $0x10] sm:$0xff]
        %v1592 = vld [vmem:[%s1588 + $0x18] sm:$0xff]
        %v1593 = vld [vmem:[%s1588 + $0x20] sm:$0xff]
        %v1594 = vld [vmem:[%s1588 + $0x28] sm:$0xff]
        %v1595 = vld [vmem:[%s1588 + $0x30] sm:$0xff]
        %v1596 = vld [vmem:[%s1588 + $0x38] sm:$0xff]
        %v1598 = vsel %vm1208, %v1585, 0
        %1600 = vmatprep.subr.mxu0 0.0
        %1601 = vmatpush1.msra.mxu0 %v1589
        %1602 = vmatprep.subr.mxu0 0.0
        %1603 = vmatpush1.msra.mxu0 %v1590
        %1604 = vmatprep.subr.mxu0 0.0
        %1605 = vmatpush1.msra.mxu0 %v1591
        %1606 = vmatprep.subr.mxu0 0.0
        %1607 = vmatpush1.msra.mxu0 %v1592
        %1608 = vmatprep.subr.mxu0 0.0
        %1609 = vmatpush1.msra.mxu0 %v1593
        %1610 = vmatprep.subr.mxu0 0.0
        %1611 = vmatpush1.msra.mxu0 %v1594
        %1612 = vmatprep.subr.mxu0 0.0
        %1613 = vmatpush1.msra.mxu0 %v1595
        %1614 = vmatprep.subr.mxu0 0.0
        %1615 = vmatpush1.msra.mxu0 %v1596
        %1616 = vmatprep.subr.mxu0 0.0
        %1617 = vmatpush1.msra.mxu0 0.0
        %1618 = vmatprep.subr.mxu0 0.0
        %1619 = vmatpush1.msra.mxu0 0.0
        %1620 = vmatprep.subr.mxu0 0.0
        %1621 = vmatpush1.msra.mxu0 0.0
        %1622 = vmatprep.subr.mxu0 0.0
        %1623 = vmatpush1.msra.mxu0 0.0
        %1624 = vmatprep.subr.mxu0 0.0
        %1625 = vmatpush1.msra.mxu0 0.0
        %1626 = vmatprep.subr.mxu0 0.0
        %1627 = vmatpush1.msra.mxu0 0.0
        %1628 = vmatprep.subr.mxu0 0.0
        %1629 = vmatpush1.msra.mxu0 0.0
        %1630 = vmatprep.subr.mxu0 0.0
        %1631 = vmatpush1.msra.mxu0 0.0
        %1632 = vmatprep.subr.mxu0 0.0
        %1633 = vmatpush1.msra.mxu0 0.0
        %1634 = vmatprep.subr.mxu0 0.0
        %1635 = vmatpush1.msra.mxu0 0.0
        %1636 = vmatprep.subr.mxu0 0.0
        %1637 = vmatpush1.msra.mxu0 0.0
        %1638 = vmatprep.subr.mxu0 0.0
        %1639 = vmatpush1.msra.mxu0 0.0
        %1640 = vmatprep.subr.mxu0 0.0
        %1641 = vmatpush1.msra.mxu0 0.0
        %1642 = vmatprep.subr.mxu0 0.0
        %1643 = vmatpush1.msra.mxu0 0.0
        %1644 = vmatprep.subr.mxu0 0.0
        %1645 = vmatpush1.msra.mxu0 0.0
        %1646 = vmatprep.subr.mxu0 0.0
        %1647 = vmatpush1.msra.mxu0 0.0
        %1648 = vmatprep.subr.mxu0 0.0
        %1649 = vmatpush1.msra.mxu0 0.0
        %1650 = vmatprep.subr.mxu0 0.0
        %1651 = vmatpush1.msra.mxu0 0.0
        %1652 = vmatprep.subr.mxu0 0.0
        %1653 = vmatpush1.msra.mxu0 0.0
        %1654 = vmatprep.subr.mxu0 0.0
        %1655 = vmatpush1.msra.mxu0 0.0
        %1656 = vmatprep.subr.mxu0 0.0
        %1657 = vmatpush1.msra.mxu0 0.0
        %1658 = vmatprep.subr.mxu0 0.0
        %1659 = vmatpush1.msra.mxu0 0.0
        %1660 = vmatprep.subr.mxu0 0.0
        %1661 = vmatpush1.msra.mxu0 0.0
        %1662 = vmatprep.subr.mxu0 0.0
        %1663 = vmatpush1.msra.mxu0 0.0
        %1664 = vmatprep.mubr.f32.mxu0 0.0
        %1665 = vmatmul.mubr.f32.gmra.mrb[0].mxu0 %v1598
        %v1666 = vpop.f32.mrb[0].mxu0
        %v1667 = vadd.f32 0.0, %v1666
        %v1668 = vpop.f32.mrb[0].mxu0
        %1669 = vdwg.mxu0
        %v1670 = vadd.f32 %v1512, %v1667
        %v1672 = vlaneseq
        %v1673 = vshrl.u32 %v1672, 7
        %v1674 = vsub.s32 0, %v1673
        %v1675 = vrot.slane %v1040, %v1674
        %v1677 = vadd.f32 %v1670, %v1675
        %vm1678 = vcmp.ge.f32.partialorder %v1677, 0.0
        %v1679 = vmul.f32 %v1677, 0.01
        %v1680 = vsel %vm1678, %v1677, %v1679
        %v1681 = vld [vmem:[%s7] sm:$0xf]
        %vm1682 = vcmask 31744
        %v1684 = vsel %vm1682, %v1681, 0
        %vm1686 = vcmask 1043456
        %v1688 = vsel %vm1686, %v1680, 0
        %1690 = vmatprep.subr.mxu0 0.0
        %1691 = vmatpush1.msra.mxu0 %v1688
        %1692 = vmatprep.subr.mxu0 0.0
        %1693 = vmatpush1.msra.mxu0 0.0
        %1694 = vmatprep.subr.mxu0 0.0
        %1695 = vmatpush1.msra.mxu0 0.0
        %1696 = vmatprep.subr.mxu0 0.0
        %1697 = vmatpush1.msra.mxu0 0.0
        %1698 = vmatprep.subr.mxu0 0.0
        %1699 = vmatpush1.msra.mxu0 0.0
        %1700 = vmatprep.subr.mxu0 0.0
        %1701 = vmatpush1.msra.mxu0 0.0
        %1702 = vmatprep.subr.mxu0 0.0
        %1703 = vmatpush1.msra.mxu0 0.0
        %1704 = vmatprep.subr.mxu0 0.0
        %1705 = vmatpush1.msra.mxu0 0.0
        %1706 = vmatprep.subr.mxu0 0.0
        %1707 = vmatpush1.msra.mxu0 0.0
        %1708 = vmatprep.subr.mxu0 0.0
        %1709 = vmatpush1.msra.mxu0 0.0
        %1710 = vmatprep.subr.mxu0 0.0
        %1711 = vmatpush1.msra.mxu0 0.0
        %1712 = vmatprep.subr.mxu0 0.0
        %1713 = vmatpush1.msra.mxu0 0.0
        %1714 = vmatprep.subr.mxu0 0.0
        %1715 = vmatpush1.msra.mxu0 0.0
        %1716 = vmatprep.subr.mxu0 0.0
        %1717 = vmatpush1.msra.mxu0 0.0
        %1718 = vmatprep.subr.mxu0 0.0
        %1719 = vmatpush1.msra.mxu0 0.0
        %1720 = vmatprep.subr.mxu0 0.0
        %1721 = vmatpush1.msra.mxu0 0.0
        %1722 = vmatprep.subr.mxu0 0.0
        %1723 = vmatpush1.msra.mxu0 0.0
        %1724 = vmatprep.subr.mxu0 0.0
        %1725 = vmatpush1.msra.mxu0 0.0
        %1726 = vmatprep.subr.mxu0 0.0
        %1727 = vmatpush1.msra.mxu0 0.0
        %1728 = vmatprep.subr.mxu0 0.0
        %1729 = vmatpush1.msra.mxu0 0.0
        %1730 = vmatprep.subr.mxu0 0.0
        %1731 = vmatpush1.msra.mxu0 0.0
        %1732 = vmatprep.subr.mxu0 0.0
        %1733 = vmatpush1.msra.mxu0 0.0
        %1734 = vmatprep.subr.mxu0 0.0
        %1735 = vmatpush1.msra.mxu0 0.0
        %1736 = vmatprep.subr.mxu0 0.0
        %1737 = vmatpush1.msra.mxu0 0.0
        %1738 = vmatprep.subr.mxu0 0.0
        %1739 = vmatpush1.msra.mxu0 0.0
        %1740 = vmatprep.subr.mxu0 0.0
        %1741 = vmatpush1.msra.mxu0 0.0
        %1742 = vmatprep.subr.mxu0 0.0
        %1743 = vmatpush1.msra.mxu0 0.0
        %1744 = vmatprep.subr.mxu0 0.0
        %1745 = vmatpush1.msra.mxu0 0.0
        %1746 = vmatprep.subr.mxu0 0.0
        %1747 = vmatpush1.msra.mxu0 0.0
        %1748 = vmatprep.subr.mxu0 0.0
        %1749 = vmatpush1.msra.mxu0 0.0
        %1750 = vmatprep.subr.mxu0 0.0
        %1751 = vmatpush1.msra.mxu0 0.0
        %1752 = vmatprep.subr.mxu0 0.0
        %1753 = vmatpush1.msra.mxu0 0.0
        %1754 = vmatprep.mubr.f32.mxu0 0.0
        %1755 = vmatmul.mubr.f32.gmra.mrb[0].mxu0 %v1684
        %v1756 = vpop.f32.mrb[0].mxu0
        %v1757 = vadd.f32 0.0, %v1756
        %v1758 = vpop.f32.mrb[0].mxu0
        %1759 = vdwg.mxu0
        %v1760 = vld [vmem:[%s8] sm:$0xff]
        %v1761 = vld [vmem:[%s8 + $0x8] sm:$0xff]
        %v1762 = vld [vmem:[%s8 + $0x10] sm:$0xff]
        %v1763 = vld [vmem:[%s8 + $0x18] sm:$0xff]
        %v1764 = vld [vmem:[%s8 + $0x20] sm:$0xff]
        %v1765 = vld [vmem:[%s8 + $0x28] sm:$0xff]
        %v1766 = vld [vmem:[%s8 + $0x30] sm:$0xff]
        %v1767 = vld [vmem:[%s8 + $0x38] sm:$0xff]
        %s1768 = scalar_lea.vmem %s7, 4
        %v1769 = vld [vmem:[%s1768] sm:$0xf]
        %v1771 = vsel %vm1682, %v1769, 0
        %1773 = vmatprep.subr.mxu0 0.0
        %1774 = vmatpush1.msra.mxu0 %v1688
        %1775 = vmatprep.subr.mxu0 0.0
        %1776 = vmatpush1.msra.mxu0 0.0
        %1777 = vmatprep.subr.mxu0 0.0
        %1778 = vmatpush1.msra.mxu0 0.0
        %1779 = vmatprep.subr.mxu0 0.0
        %1780 = vmatpush1.msra.mxu0 0.0
        %1781 = vmatprep.subr.mxu0 0.0
        %1782 = vmatpush1.msra.mxu0 0.0
        %1783 = vmatprep.subr.mxu0 0.0
        %1784 = vmatpush1.msra.mxu0 0.0
        %1785 = vmatprep.subr.mxu0 0.0
        %1786 = vmatpush1.msra.mxu0 0.0
        %1787 = vmatprep.subr.mxu0 0.0
        %1788 = vmatpush1.msra.mxu0 0.0
        %1789 = vmatprep.subr.mxu0 0.0
        %1790 = vmatpush1.msra.mxu0 0.0
        %1791 = vmatprep.subr.mxu0 0.0
        %1792 = vmatpush1.msra.mxu0 0.0
        %1793 = vmatprep.subr.mxu0 0.0
        %1794 = vmatpush1.msra.mxu0 0.0
        %1795 = vmatprep.subr.mxu0 0.0
        %1796 = vmatpush1.msra.mxu0 0.0
        %1797 = vmatprep.subr.mxu0 0.0
        %1798 = vmatpush1.msra.mxu0 0.0
        %1799 = vmatprep.subr.mxu0 0.0
        %1800 = vmatpush1.msra.mxu0 0.0
        %1801 = vmatprep.subr.mxu0 0.0
        %1802 = vmatpush1.msra.mxu0 0.0
        %1803 = vmatprep.subr.mxu0 0.0
        %1804 = vmatpush1.msra.mxu0 0.0
        %1805 = vmatprep.subr.mxu0 0.0
        %1806 = vmatpush1.msra.mxu0 0.0
        %1807 = vmatprep.subr.mxu0 0.0
        %1808 = vmatpush1.msra.mxu0 0.0
        %1809 = vmatprep.subr.mxu0 0.0
        %1810 = vmatpush1.msra.mxu0 0.0
        %1811 = vmatprep.subr.mxu0 0.0
        %1812 = vmatpush1.msra.mxu0 0.0
        %1813 = vmatprep.subr.mxu0 0.0
        %1814 = vmatpush1.msra.mxu0 0.0
        %1815 = vmatprep.subr.mxu0 0.0
        %1816 = vmatpush1.msra.mxu0 0.0
        %1817 = vmatprep.subr.mxu0 0.0
        %1818 = vmatpush1.msra.mxu0 0.0
        %1819 = vmatprep.subr.mxu0 0.0
        %1820 = vmatpush1.msra.mxu0 0.0
        %1821 = vmatprep.subr.mxu0 0.0
        %1822 = vmatpush1.msra.mxu0 0.0
        %1823 = vmatprep.subr.mxu0 0.0
        %1824 = vmatpush1.msra.mxu0 0.0
        %1825 = vmatprep.subr.mxu0 0.0
        %1826 = vmatpush1.msra.mxu0 0.0
        %1827 = vmatprep.subr.mxu0 0.0
        %1828 = vmatpush1.msra.mxu0 0.0
        %1829 = vmatprep.subr.mxu0 0.0
        %1830 = vmatpush1.msra.mxu0 0.0
        %1831 = vmatprep.subr.mxu0 0.0
        %1832 = vmatpush1.msra.mxu0 0.0
        %1833 = vmatprep.subr.mxu0 0.0
        %1834 = vmatpush1.msra.mxu0 0.0
        %1835 = vmatprep.subr.mxu0 0.0
        %1836 = vmatpush1.msra.mxu0 0.0
        %1837 = vmatprep.mubr.f32.mxu0 0.0
        %1838 = vmatmul.mubr.f32.gmra.mrb[0].mxu0 %v1771
        %v1839 = vpop.f32.mrb[0].mxu0
        %v1840 = vadd.f32 0.0, %v1839
        %v1841 = vpop.f32.mrb[0].mxu0
        %1842 = vdwg.mxu0
        %s1843 = scalar_lea.vmem %s8, 64
        %v1844 = vld [vmem:[%s1843] sm:$0xff]
        %v1845 = vld [vmem:[%s1843 + $0x8] sm:$0xff]
        %v1846 = vld [vmem:[%s1843 + $0x10] sm:$0xff]
        %v1847 = vld [vmem:[%s1843 + $0x18] sm:$0xff]
        %v1848 = vld [vmem:[%s1843 + $0x20] sm:$0xff]
        %v1849 = vld [vmem:[%s1843 + $0x28] sm:$0xff]
        %v1850 = vld [vmem:[%s1843 + $0x30] sm:$0xff]
        %v1851 = vld [vmem:[%s1843 + $0x38] sm:$0xff]
        %v1853 = vsel %vm1208, %v1840, 0
        %1855 = vmatprep.subr.mxu0 0.0
        %1856 = vmatpush1.msra.mxu0 %v1844
        %1857 = vmatprep.subr.mxu0 0.0
        %1858 = vmatpush1.msra.mxu0 %v1845
        %1859 = vmatprep.subr.mxu0 0.0
        %1860 = vmatpush1.msra.mxu0 %v1846
        %1861 = vmatprep.subr.mxu0 0.0
        %1862 = vmatpush1.msra.mxu0 %v1847
        %1863 = vmatprep.subr.mxu0 0.0
        %1864 = vmatpush1.msra.mxu0 %v1848
        %1865 = vmatprep.subr.mxu0 0.0
        %1866 = vmatpush1.msra.mxu0 %v1849
        %1867 = vmatprep.subr.mxu0 0.0
        %1868 = vmatpush1.msra.mxu0 %v1850
        %1869 = vmatprep.subr.mxu0 0.0
        %1870 = vmatpush1.msra.mxu0 %v1851
        %1871 = vmatprep.subr.mxu0 0.0
        %1872 = vmatpush1.msra.mxu0 0.0
        %1873 = vmatprep.subr.mxu0 0.0
        %1874 = vmatpush1.msra.mxu0 0.0
        %1875 = vmatprep.subr.mxu0 0.0
        %1876 = vmatpush1.msra.mxu0 0.0
        %1877 = vmatprep.subr.mxu0 0.0
        %1878 = vmatpush1.msra.mxu0 0.0
        %1879 = vmatprep.subr.mxu0 0.0
        %1880 = vmatpush1.msra.mxu0 0.0
        %1881 = vmatprep.subr.mxu0 0.0
        %1882 = vmatpush1.msra.mxu0 0.0
        %1883 = vmatprep.subr.mxu0 0.0
        %1884 = vmatpush1.msra.mxu0 0.0
        %1885 = vmatprep.subr.mxu0 0.0
        %1886 = vmatpush1.msra.mxu0 0.0
        %1887 = vmatprep.subr.mxu0 0.0
        %1888 = vmatpush1.msra.mxu0 0.0
        %1889 = vmatprep.subr.mxu0 0.0
        %1890 = vmatpush1.msra.mxu0 0.0
        %1891 = vmatprep.subr.mxu0 0.0
        %1892 = vmatpush1.msra.mxu0 0.0
        %1893 = vmatprep.subr.mxu0 0.0
        %1894 = vmatpush1.msra.mxu0 0.0
        %1895 = vmatprep.subr.mxu0 0.0
        %1896 = vmatpush1.msra.mxu0 0.0
        %1897 = vmatprep.subr.mxu0 0.0
        %1898 = vmatpush1.msra.mxu0 0.0
        %1899 = vmatprep.subr.mxu0 0.0
        %1900 = vmatpush1.msra.mxu0 0.0
        %1901 = vmatprep.subr.mxu0 0.0
        %1902 = vmatpush1.msra.mxu0 0.0
        %1903 = vmatprep.subr.mxu0 0.0
        %1904 = vmatpush1.msra.mxu0 0.0
        %1905 = vmatprep.subr.mxu0 0.0
        %1906 = vmatpush1.msra.mxu0 0.0
        %1907 = vmatprep.subr.mxu0 0.0
        %1908 = vmatpush1.msra.mxu0 0.0
        %1909 = vmatprep.subr.mxu0 0.0
        %1910 = vmatpush1.msra.mxu0 0.0
        %1911 = vmatprep.subr.mxu0 0.0
        %1912 = vmatpush1.msra.mxu0 0.0
        %1913 = vmatprep.subr.mxu0 0.0
        %1914 = vmatpush1.msra.mxu0 0.0
        %1915 = vmatprep.subr.mxu0 0.0
        %1916 = vmatpush1.msra.mxu0 0.0
        %1917 = vmatprep.subr.mxu0 0.0
        %1918 = vmatpush1.msra.mxu0 0.0
        %1919 = vmatprep.mubr.f32.mxu0 0.0
        %1920 = vmatmul.mubr.f32.gmra.mrb[0].mxu0 %v1853
        %v1921 = vpop.f32.mrb[0].mxu0
        %v1922 = vadd.f32 0.0, %v1921
        %v1923 = vpop.f32.mrb[0].mxu0
        %1924 = vdwg.mxu0
        %v1926 = vsel %vm1208, %v1757, 0
        %1928 = vmatprep.subr.mxu0 0.0
        %1929 = vmatpush1.msra.mxu0 %v1760
        %1930 = vmatprep.subr.mxu0 0.0
        %1931 = vmatpush1.msra.mxu0 %v1761
        %1932 = vmatprep.subr.mxu0 0.0
        %1933 = vmatpush1.msra.mxu0 %v1762
        %1934 = vmatprep.subr.mxu0 0.0
        %1935 = vmatpush1.msra.mxu0 %v1763
        %1936 = vmatprep.subr.mxu0 0.0
        %1937 = vmatpush1.msra.mxu0 %v1764
        %1938 = vmatprep.subr.mxu0 0.0
        %1939 = vmatpush1.msra.mxu0 %v1765
        %1940 = vmatprep.subr.mxu0 0.0
        %1941 = vmatpush1.msra.mxu0 %v1766
        %1942 = vmatprep.subr.mxu0 0.0
        %1943 = vmatpush1.msra.mxu0 %v1767
        %1944 = vmatprep.subr.mxu0 0.0
        %1945 = vmatpush1.msra.mxu0 0.0
        %1946 = vmatprep.subr.mxu0 0.0
        %1947 = vmatpush1.msra.mxu0 0.0
        %1948 = vmatprep.subr.mxu0 0.0
        %1949 = vmatpush1.msra.mxu0 0.0
        %1950 = vmatprep.subr.mxu0 0.0
        %1951 = vmatpush1.msra.mxu0 0.0
        %1952 = vmatprep.subr.mxu0 0.0
        %1953 = vmatpush1.msra.mxu0 0.0
        %1954 = vmatprep.subr.mxu0 0.0
        %1955 = vmatpush1.msra.mxu0 0.0
        %1956 = vmatprep.subr.mxu0 0.0
        %1957 = vmatpush1.msra.mxu0 0.0
        %1958 = vmatprep.subr.mxu0 0.0
        %1959 = vmatpush1.msra.mxu0 0.0
        %1960 = vmatprep.subr.mxu0 0.0
        %1961 = vmatpush1.msra.mxu0 0.0
        %1962 = vmatprep.subr.mxu0 0.0
        %1963 = vmatpush1.msra.mxu0 0.0
        %1964 = vmatprep.subr.mxu0 0.0
        %1965 = vmatpush1.msra.mxu0 0.0
        %1966 = vmatprep.subr.mxu0 0.0
        %1967 = vmatpush1.msra.mxu0 0.0
        %1968 = vmatprep.subr.mxu0 0.0
        %1969 = vmatpush1.msra.mxu0 0.0
        %1970 = vmatprep.subr.mxu0 0.0
        %1971 = vmatpush1.msra.mxu0 0.0
        %1972 = vmatprep.subr.mxu0 0.0
        %1973 = vmatpush1.msra.mxu0 0.0
        %1974 = vmatprep.subr.mxu0 0.0
        %1975 = vmatpush1.msra.mxu0 0.0
        %1976 = vmatprep.subr.mxu0 0.0
        %1977 = vmatpush1.msra.mxu0 0.0
        %1978 = vmatprep.subr.mxu0 0.0
        %1979 = vmatpush1.msra.mxu0 0.0
        %1980 = vmatprep.subr.mxu0 0.0
        %1981 = vmatpush1.msra.mxu0 0.0
        %1982 = vmatprep.subr.mxu0 0.0
        %1983 = vmatpush1.msra.mxu0 0.0
        %1984 = vmatprep.subr.mxu0 0.0
        %1985 = vmatpush1.msra.mxu0 0.0
        %1986 = vmatprep.subr.mxu0 0.0
        %1987 = vmatpush1.msra.mxu0 0.0
        %1988 = vmatprep.subr.mxu0 0.0
        %1989 = vmatpush1.msra.mxu0 0.0
        %1990 = vmatprep.subr.mxu0 0.0
        %1991 = vmatpush1.msra.mxu0 0.0
        %1992 = vmatprep.mubr.f32.mxu0 0.0
        %1993 = vmatmul.mubr.f32.gmra.mrb[0].mxu0 %v1926
        %v1994 = vpop.f32.mrb[0].mxu0
        %v1995 = vadd.f32 %v1922, %v1994
        %v1996 = vpop.f32.mrb[0].mxu0
        %1997 = vdwg.mxu0
        %s1998 = scalar_lea.vmem %s7, 8
        %v1999 = vld [vmem:[%s1998] sm:$0xf]
        %v2001 = vsel %vm1682, %v1999, 0
        %2003 = vmatprep.subr.mxu0 0.0
        %2004 = vmatpush1.msra.mxu0 %v1688
        %2005 = vmatprep.subr.mxu0 0.0
        %2006 = vmatpush1.msra.mxu0 0.0
        %2007 = vmatprep.subr.mxu0 0.0
        %2008 = vmatpush1.msra.mxu0 0.0
        %2009 = vmatprep.subr.mxu0 0.0
        %2010 = vmatpush1.msra.mxu0 0.0
        %2011 = vmatprep.subr.mxu0 0.0
        %2012 = vmatpush1.msra.mxu0 0.0
        %2013 = vmatprep.subr.mxu0 0.0
        %2014 = vmatpush1.msra.mxu0 0.0
        %2015 = vmatprep.subr.mxu0 0.0
        %2016 = vmatpush1.msra.mxu0 0.0
        %2017 = vmatprep.subr.mxu0 0.0
        %2018 = vmatpush1.msra.mxu0 0.0
        %2019 = vmatprep.subr.mxu0 0.0
        %2020 = vmatpush1.msra.mxu0 0.0
        %2021 = vmatprep.subr.mxu0 0.0
        %2022 = vmatpush1.msra.mxu0 0.0
        %2023 = vmatprep.subr.mxu0 0.0
        %2024 = vmatpush1.msra.mxu0 0.0
        %2025 = vmatprep.subr.mxu0 0.0
        %2026 = vmatpush1.msra.mxu0 0.0
        %2027 = vmatprep.subr.mxu0 0.0
        %2028 = vmatpush1.msra.mxu0 0.0
        %2029 = vmatprep.subr.mxu0 0.0
        %2030 = vmatpush1.msra.mxu0 0.0
        %2031 = vmatprep.subr.mxu0 0.0
        %2032 = vmatpush1.msra.mxu0 0.0
        %2033 = vmatprep.subr.mxu0 0.0
        %2034 = vmatpush1.msra.mxu0 0.0
        %2035 = vmatprep.subr.mxu0 0.0
        %2036 = vmatpush1.msra.mxu0 0.0
        %2037 = vmatprep.subr.mxu0 0.0
        %2038 = vmatpush1.msra.mxu0 0.0
        %2039 = vmatprep.subr.mxu0 0.0
        %2040 = vmatpush1.msra.mxu0 0.0
        %2041 = vmatprep.subr.mxu0 0.0
        %2042 = vmatpush1.msra.mxu0 0.0
        %2043 = vmatprep.subr.mxu0 0.0
        %2044 = vmatpush1.msra.mxu0 0.0
        %2045 = vmatprep.subr.mxu0 0.0
        %2046 = vmatpush1.msra.mxu0 0.0
        %2047 = vmatprep.subr.mxu0 0.0
        %2048 = vmatpush1.msra.mxu0 0.0
        %2049 = vmatprep.subr.mxu0 0.0
        %2050 = vmatpush1.msra.mxu0 0.0
        %2051 = vmatprep.subr.mxu0 0.0
        %2052 = vmatpush1.msra.mxu0 0.0
        %2053 = vmatprep.subr.mxu0 0.0
        %2054 = vmatpush1.msra.mxu0 0.0
        %2055 = vmatprep.subr.mxu0 0.0
        %2056 = vmatpush1.msra.mxu0 0.0
        %2057 = vmatprep.subr.mxu0 0.0
        %2058 = vmatpush1.msra.mxu0 0.0
        %2059 = vmatprep.subr.mxu0 0.0
        %2060 = vmatpush1.msra.mxu0 0.0
        %2061 = vmatprep.subr.mxu0 0.0
        %2062 = vmatpush1.msra.mxu0 0.0
        %2063 = vmatprep.subr.mxu0 0.0
        %2064 = vmatpush1.msra.mxu0 0.0
        %2065 = vmatprep.subr.mxu0 0.0
        %2066 = vmatpush1.msra.mxu0 0.0
        %2067 = vmatprep.mubr.f32.mxu0 0.0
        %2068 = vmatmul.mubr.f32.gmra.mrb[0].mxu0 %v2001
        %v2069 = vpop.f32.mrb[0].mxu0
        %v2070 = vadd.f32 0.0, %v2069
        %v2071 = vpop.f32.mrb[0].mxu0
        %2072 = vdwg.mxu0
        %s2073 = scalar_lea.vmem %s8, 128
        %v2074 = vld [vmem:[%s2073] sm:$0xff]
        %v2075 = vld [vmem:[%s2073 + $0x8] sm:$0xff]
        %v2076 = vld [vmem:[%s2073 + $0x10] sm:$0xff]
        %v2077 = vld [vmem:[%s2073 + $0x18] sm:$0xff]
        %v2078 = vld [vmem:[%s2073 + $0x20] sm:$0xff]
        %v2079 = vld [vmem:[%s2073 + $0x28] sm:$0xff]
        %v2080 = vld [vmem:[%s2073 + $0x30] sm:$0xff]
        %v2081 = vld [vmem:[%s2073 + $0x38] sm:$0xff]
        %v2083 = vsel %vm1208, %v2070, 0
        %2085 = vmatprep.subr.mxu0 0.0
        %2086 = vmatpush1.msra.mxu0 %v2074
        %2087 = vmatprep.subr.mxu0 0.0
        %2088 = vmatpush1.msra.mxu0 %v2075
        %2089 = vmatprep.subr.mxu0 0.0
        %2090 = vmatpush1.msra.mxu0 %v2076
        %2091 = vmatprep.subr.mxu0 0.0
        %2092 = vmatpush1.msra.mxu0 %v2077
        %2093 = vmatprep.subr.mxu0 0.0
        %2094 = vmatpush1.msra.mxu0 %v2078
        %2095 = vmatprep.subr.mxu0 0.0
        %2096 = vmatpush1.msra.mxu0 %v2079
        %2097 = vmatprep.subr.mxu0 0.0
        %2098 = vmatpush1.msra.mxu0 %v2080
        %2099 = vmatprep.subr.mxu0 0.0
        %2100 = vmatpush1.msra.mxu0 %v2081
        %2101 = vmatprep.subr.mxu0 0.0
        %2102 = vmatpush1.msra.mxu0 0.0
        %2103 = vmatprep.subr.mxu0 0.0
        %2104 = vmatpush1.msra.mxu0 0.0
        %2105 = vmatprep.subr.mxu0 0.0
        %2106 = vmatpush1.msra.mxu0 0.0
        %2107 = vmatprep.subr.mxu0 0.0
        %2108 = vmatpush1.msra.mxu0 0.0
        %2109 = vmatprep.subr.mxu0 0.0
        %2110 = vmatpush1.msra.mxu0 0.0
        %2111 = vmatprep.subr.mxu0 0.0
        %2112 = vmatpush1.msra.mxu0 0.0
        %2113 = vmatprep.subr.mxu0 0.0
        %2114 = vmatpush1.msra.mxu0 0.0
        %2115 = vmatprep.subr.mxu0 0.0
        %2116 = vmatpush1.msra.mxu0 0.0
        %2117 = vmatprep.subr.mxu0 0.0
        %2118 = vmatpush1.msra.mxu0 0.0
        %2119 = vmatprep.subr.mxu0 0.0
        %2120 = vmatpush1.msra.mxu0 0.0
        %2121 = vmatprep.subr.mxu0 0.0
        %2122 = vmatpush1.msra.mxu0 0.0
        %2123 = vmatprep.subr.mxu0 0.0
        %2124 = vmatpush1.msra.mxu0 0.0
        %2125 = vmatprep.subr.mxu0 0.0
        %2126 = vmatpush1.msra.mxu0 0.0
        %2127 = vmatprep.subr.mxu0 0.0
        %2128 = vmatpush1.msra.mxu0 0.0
        %2129 = vmatprep.subr.mxu0 0.0
        %2130 = vmatpush1.msra.mxu0 0.0
        %2131 = vmatprep.subr.mxu0 0.0
        %2132 = vmatpush1.msra.mxu0 0.0
        %2133 = vmatprep.subr.mxu0 0.0
        %2134 = vmatpush1.msra.mxu0 0.0
        %2135 = vmatprep.subr.mxu0 0.0
        %2136 = vmatpush1.msra.mxu0 0.0
        %2137 = vmatprep.subr.mxu0 0.0
        %2138 = vmatpush1.msra.mxu0 0.0
        %2139 = vmatprep.subr.mxu0 0.0
        %2140 = vmatpush1.msra.mxu0 0.0
        %2141 = vmatprep.subr.mxu0 0.0
        %2142 = vmatpush1.msra.mxu0 0.0
        %2143 = vmatprep.subr.mxu0 0.0
        %2144 = vmatpush1.msra.mxu0 0.0
        %2145 = vmatprep.subr.mxu0 0.0
        %2146 = vmatpush1.msra.mxu0 0.0
        %2147 = vmatprep.subr.mxu0 0.0
        %2148 = vmatpush1.msra.mxu0 0.0
        %2149 = vmatprep.mubr.f32.mxu0 0.0
        %2150 = vmatmul.mubr.f32.gmra.mrb[0].mxu0 %v2083
        %v2151 = vpop.f32.mrb[0].mxu0
        %v2152 = vadd.f32 0.0, %v2151
        %v2153 = vpop.f32.mrb[0].mxu0
        %2154 = vdwg.mxu0
        %v2155 = vadd.f32 %v1995, %v2152
        %v2156 = vld [vmem:[%s9] sm:$0x1]
        %v2158 = vsel %vm1682, %v2156, 0
        %2160 = vmatprep.subr.mxu0 0.0
        %2161 = vmatpush1.msra.mxu0 %v1688
        %2162 = vmatprep.subr.mxu0 0.0
        %2163 = vmatpush1.msra.mxu0 0.0
        %2164 = vmatprep.subr.mxu0 0.0
        %2165 = vmatpush1.msra.mxu0 0.0
        %2166 = vmatprep.subr.mxu0 0.0
        %2167 = vmatpush1.msra.mxu0 0.0
        %2168 = vmatprep.subr.mxu0 0.0
        %2169 = vmatpush1.msra.mxu0 0.0
        %2170 = vmatprep.subr.mxu0 0.0
        %2171 = vmatpush1.msra.mxu0 0.0
        %2172 = vmatprep.subr.mxu0 0.0
        %2173 = vmatpush1.msra.mxu0 0.0
        %2174 = vmatprep.subr.mxu0 0.0
        %2175 = vmatpush1.msra.mxu0 0.0
        %2176 = vmatprep.subr.mxu0 0.0
        %2177 = vmatpush1.msra.mxu0 0.0
        %2178 = vmatprep.subr.mxu0 0.0
        %2179 = vmatpush1.msra.mxu0 0.0
        %2180 = vmatprep.subr.mxu0 0.0
        %2181 = vmatpush1.msra.mxu0 0.0
        %2182 = vmatprep.subr.mxu0 0.0
        %2183 = vmatpush1.msra.mxu0 0.0
        %2184 = vmatprep.subr.mxu0 0.0
        %2185 = vmatpush1.msra.mxu0 0.0
        %2186 = vmatprep.subr.mxu0 0.0
        %2187 = vmatpush1.msra.mxu0 0.0
        %2188 = vmatprep.subr.mxu0 0.0
        %2189 = vmatpush1.msra.mxu0 0.0
        %2190 = vmatprep.subr.mxu0 0.0
        %2191 = vmatpush1.msra.mxu0 0.0
        %2192 = vmatprep.subr.mxu0 0.0
        %2193 = vmatpush1.msra.mxu0 0.0
        %2194 = vmatprep.subr.mxu0 0.0
        %2195 = vmatpush1.msra.mxu0 0.0
        %2196 = vmatprep.subr.mxu0 0.0
        %2197 = vmatpush1.msra.mxu0 0.0
        %2198 = vmatprep.subr.mxu0 0.0
        %2199 = vmatpush1.msra.mxu0 0.0
        %2200 = vmatprep.subr.mxu0 0.0
        %2201 = vmatpush1.msra.mxu0 0.0
        %2202 = vmatprep.subr.mxu0 0.0
        %2203 = vmatpush1.msra.mxu0 0.0
        %2204 = vmatprep.subr.mxu0 0.0
        %2205 = vmatpush1.msra.mxu0 0.0
        %2206 = vmatprep.subr.mxu0 0.0
        %2207 = vmatpush1.msra.mxu0 0.0
        %2208 = vmatprep.subr.mxu0 0.0
        %2209 = vmatpush1.msra.mxu0 0.0
        %2210 = vmatprep.subr.mxu0 0.0
        %2211 = vmatpush1.msra.mxu0 0.0
        %2212 = vmatprep.subr.mxu0 0.0
        %2213 = vmatpush1.msra.mxu0 0.0
        %2214 = vmatprep.subr.mxu0 0.0
        %2215 = vmatpush1.msra.mxu0 0.0
        %2216 = vmatprep.subr.mxu0 0.0
        %2217 = vmatpush1.msra.mxu0 0.0
        %2218 = vmatprep.subr.mxu0 0.0
        %2219 = vmatpush1.msra.mxu0 0.0
        %2220 = vmatprep.subr.mxu0 0.0
        %2221 = vmatpush1.msra.mxu0 0.0
        %2222 = vmatprep.subr.mxu0 0.0
        %2223 = vmatpush1.msra.mxu0 0.0
        %2224 = vmatprep.mubr.f32.mxu0 0.0
        %2225 = vmatmul.mubr.f32.gmra.mrb[0].mxu0 %v2158
        %v2226 = vpop.f32.mrb[0].mxu0
        %v2227 = vadd.f32 0.0, %v2226
        %v2228 = vpop.f32.mrb[0].mxu0
        %2229 = vdwg.mxu0
        %v2230 = vld [vmem:[%s10] sm:$0xff]
        %v2231 = vld [vmem:[%s10 + $0x8] sm:$0xff]
        %v2232 = vld [vmem:[%s10 + $0x10] sm:$0xff]
        %v2233 = vld [vmem:[%s10 + $0x18] sm:$0xff]
        %v2234 = vld [vmem:[%s10 + $0x20] sm:$0xff]
        %v2235 = vld [vmem:[%s10 + $0x28] sm:$0xff]
        %v2236 = vld [vmem:[%s10 + $0x30] sm:$0xff]
        %v2237 = vld [vmem:[%s10 + $0x38] sm:$0xff]
        %s2238 = scalar_lea.vmem %s9, 1
        %v2239 = vld [vmem:[%s2238] sm:$0x1]
        %v2241 = vsel %vm1682, %v2239, 0
        %2243 = vmatprep.subr.mxu0 0.0
        %2244 = vmatpush1.msra.mxu0 %v1688
        %2245 = vmatprep.subr.mxu0 0.0
        %2246 = vmatpush1.msra.mxu0 0.0
        %2247 = vmatprep.subr.mxu0 0.0
        %2248 = vmatpush1.msra.mxu0 0.0
        %2249 = vmatprep.subr.mxu0 0.0
        %2250 = vmatpush1.msra.mxu0 0.0
        %2251 = vmatprep.subr.mxu0 0.0
        %2252 = vmatpush1.msra.mxu0 0.0
        %2253 = vmatprep.subr.mxu0 0.0
        %2254 = vmatpush1.msra.mxu0 0.0
        %2255 = vmatprep.subr.mxu0 0.0
        %2256 = vmatpush1.msra.mxu0 0.0
        %2257 = vmatprep.subr.mxu0 0.0
        %2258 = vmatpush1.msra.mxu0 0.0
        %2259 = vmatprep.subr.mxu0 0.0
        %2260 = vmatpush1.msra.mxu0 0.0
        %2261 = vmatprep.subr.mxu0 0.0
        %2262 = vmatpush1.msra.mxu0 0.0
        %2263 = vmatprep.subr.mxu0 0.0
        %2264 = vmatpush1.msra.mxu0 0.0
        %2265 = vmatprep.subr.mxu0 0.0
        %2266 = vmatpush1.msra.mxu0 0.0
        %2267 = vmatprep.subr.mxu0 0.0
        %2268 = vmatpush1.msra.mxu0 0.0
        %2269 = vmatprep.subr.mxu0 0.0
        %2270 = vmatpush1.msra.mxu0 0.0
        %2271 = vmatprep.subr.mxu0 0.0
        %2272 = vmatpush1.msra.mxu0 0.0
        %2273 = vmatprep.subr.mxu0 0.0
        %2274 = vmatpush1.msra.mxu0 0.0
        %2275 = vmatprep.subr.mxu0 0.0
        %2276 = vmatpush1.msra.mxu0 0.0
        %2277 = vmatprep.subr.mxu0 0.0
        %2278 = vmatpush1.msra.mxu0 0.0
        %2279 = vmatprep.subr.mxu0 0.0
        %2280 = vmatpush1.msra.mxu0 0.0
        %2281 = vmatprep.subr.mxu0 0.0
        %2282 = vmatpush1.msra.mxu0 0.0
        %2283 = vmatprep.subr.mxu0 0.0
        %2284 = vmatpush1.msra.mxu0 0.0
        %2285 = vmatprep.subr.mxu0 0.0
        %2286 = vmatpush1.msra.mxu0 0.0
        %2287 = vmatprep.subr.mxu0 0.0
        %2288 = vmatpush1.msra.mxu0 0.0
        %2289 = vmatprep.subr.mxu0 0.0
        %2290 = vmatpush1.msra.mxu0 0.0
        %2291 = vmatprep.subr.mxu0 0.0
        %2292 = vmatpush1.msra.mxu0 0.0
        %2293 = vmatprep.subr.mxu0 0.0
        %2294 = vmatpush1.msra.mxu0 0.0
        %2295 = vmatprep.subr.mxu0 0.0
        %2296 = vmatpush1.msra.mxu0 0.0
        %2297 = vmatprep.subr.mxu0 0.0
        %2298 = vmatpush1.msra.mxu0 0.0
        %2299 = vmatprep.subr.mxu0 0.0
        %2300 = vmatpush1.msra.mxu0 0.0
        %2301 = vmatprep.subr.mxu0 0.0
        %2302 = vmatpush1.msra.mxu0 0.0
        %2303 = vmatprep.subr.mxu0 0.0
        %2304 = vmatpush1.msra.mxu0 0.0
        %2305 = vmatprep.subr.mxu0 0.0
        %2306 = vmatpush1.msra.mxu0 0.0
        %2307 = vmatprep.mubr.f32.mxu0 0.0
        %2308 = vmatmul.mubr.f32.gmra.mrb[0].mxu0 %v2241
        %v2309 = vpop.f32.mrb[0].mxu0
        %v2310 = vadd.f32 0.0, %v2309
        %v2311 = vpop.f32.mrb[0].mxu0
        %2312 = vdwg.mxu0
        %s2313 = scalar_lea.vmem %s10, 64
        %v2314 = vld [vmem:[%s2313] sm:$0xff]
        %v2315 = vld [vmem:[%s2313 + $0x8] sm:$0xff]
        %v2316 = vld [vmem:[%s2313 + $0x10] sm:$0xff]
        %v2317 = vld [vmem:[%s2313 + $0x18] sm:$0xff]
        %v2318 = vld [vmem:[%s2313 + $0x20] sm:$0xff]
        %v2319 = vld [vmem:[%s2313 + $0x28] sm:$0xff]
        %v2320 = vld [vmem:[%s2313 + $0x30] sm:$0xff]
        %v2321 = vld [vmem:[%s2313 + $0x38] sm:$0xff]
        %v2323 = vsel %vm1208, %v2310, 0
        %2325 = vmatprep.subr.mxu0 0.0
        %2326 = vmatpush1.msra.mxu0 %v2314
        %2327 = vmatprep.subr.mxu0 0.0
        %2328 = vmatpush1.msra.mxu0 %v2315
        %2329 = vmatprep.subr.mxu0 0.0
        %2330 = vmatpush1.msra.mxu0 %v2316
        %2331 = vmatprep.subr.mxu0 0.0
        %2332 = vmatpush1.msra.mxu0 %v2317
        %2333 = vmatprep.subr.mxu0 0.0
        %2334 = vmatpush1.msra.mxu0 %v2318
        %2335 = vmatprep.subr.mxu0 0.0
        %2336 = vmatpush1.msra.mxu0 %v2319
        %2337 = vmatprep.subr.mxu0 0.0
        %2338 = vmatpush1.msra.mxu0 %v2320
        %2339 = vmatprep.subr.mxu0 0.0
        %2340 = vmatpush1.msra.mxu0 %v2321
        %2341 = vmatprep.subr.mxu0 0.0
        %2342 = vmatpush1.msra.mxu0 0.0
        %2343 = vmatprep.subr.mxu0 0.0
        %2344 = vmatpush1.msra.mxu0 0.0
        %2345 = vmatprep.subr.mxu0 0.0
        %2346 = vmatpush1.msra.mxu0 0.0
        %2347 = vmatprep.subr.mxu0 0.0
        %2348 = vmatpush1.msra.mxu0 0.0
        %2349 = vmatprep.subr.mxu0 0.0
        %2350 = vmatpush1.msra.mxu0 0.0
        %2351 = vmatprep.subr.mxu0 0.0
        %2352 = vmatpush1.msra.mxu0 0.0
        %2353 = vmatprep.subr.mxu0 0.0
        %2354 = vmatpush1.msra.mxu0 0.0
        %2355 = vmatprep.subr.mxu0 0.0
        %2356 = vmatpush1.msra.mxu0 0.0
        %2357 = vmatprep.subr.mxu0 0.0
        %2358 = vmatpush1.msra.mxu0 0.0
        %2359 = vmatprep.subr.mxu0 0.0
        %2360 = vmatpush1.msra.mxu0 0.0
        %2361 = vmatprep.subr.mxu0 0.0
        %2362 = vmatpush1.msra.mxu0 0.0
        %2363 = vmatprep.subr.mxu0 0.0
        %2364 = vmatpush1.msra.mxu0 0.0
        %2365 = vmatprep.subr.mxu0 0.0
        %2366 = vmatpush1.msra.mxu0 0.0
        %2367 = vmatprep.subr.mxu0 0.0
        %2368 = vmatpush1.msra.mxu0 0.0
        %2369 = vmatprep.subr.mxu0 0.0
        %2370 = vmatpush1.msra.mxu0 0.0
        %2371 = vmatprep.subr.mxu0 0.0
        %2372 = vmatpush1.msra.mxu0 0.0
        %2373 = vmatprep.subr.mxu0 0.0
        %2374 = vmatpush1.msra.mxu0 0.0
        %2375 = vmatprep.subr.mxu0 0.0
        %2376 = vmatpush1.msra.mxu0 0.0
        %2377 = vmatprep.subr.mxu0 0.0
        %2378 = vmatpush1.msra.mxu0 0.0
        %2379 = vmatprep.subr.mxu0 0.0
        %2380 = vmatpush1.msra.mxu0 0.0
        %2381 = vmatprep.subr.mxu0 0.0
        %2382 = vmatpush1.msra.mxu0 0.0
        %2383 = vmatprep.subr.mxu0 0.0
        %2384 = vmatpush1.msra.mxu0 0.0
        %2385 = vmatprep.subr.mxu0 0.0
        %2386 = vmatpush1.msra.mxu0 0.0
        %2387 = vmatprep.subr.mxu0 0.0
        %2388 = vmatpush1.msra.mxu0 0.0
        %2389 = vmatprep.mubr.f32.mxu0 0.0
        %2390 = vmatmul.mubr.f32.gmra.mrb[0].mxu0 %v2323
        %v2391 = vpop.f32.mrb[0].mxu0
        %v2392 = vadd.f32 0.0, %v2391
        %v2393 = vpop.f32.mrb[0].mxu0
        %2394 = vdwg.mxu0
        %v2396 = vsel %vm1208, %v2227, 0
        %2398 = vmatprep.subr.mxu0 0.0
        %2399 = vmatpush1.msra.mxu0 %v2230
        %2400 = vmatprep.subr.mxu0 0.0
        %2401 = vmatpush1.msra.mxu0 %v2231
        %2402 = vmatprep.subr.mxu0 0.0
        %2403 = vmatpush1.msra.mxu0 %v2232
        %2404 = vmatprep.subr.mxu0 0.0
        %2405 = vmatpush1.msra.mxu0 %v2233
        %2406 = vmatprep.subr.mxu0 0.0
        %2407 = vmatpush1.msra.mxu0 %v2234
        %2408 = vmatprep.subr.mxu0 0.0
        %2409 = vmatpush1.msra.mxu0 %v2235
        %2410 = vmatprep.subr.mxu0 0.0
        %2411 = vmatpush1.msra.mxu0 %v2236
        %2412 = vmatprep.subr.mxu0 0.0
        %2413 = vmatpush1.msra.mxu0 %v2237
        %2414 = vmatprep.subr.mxu0 0.0
        %2415 = vmatpush1.msra.mxu0 0.0
        %2416 = vmatprep.subr.mxu0 0.0
        %2417 = vmatpush1.msra.mxu0 0.0
        %2418 = vmatprep.subr.mxu0 0.0
        %2419 = vmatpush1.msra.mxu0 0.0
        %2420 = vmatprep.subr.mxu0 0.0
        %2421 = vmatpush1.msra.mxu0 0.0
        %2422 = vmatprep.subr.mxu0 0.0
        %2423 = vmatpush1.msra.mxu0 0.0
        %2424 = vmatprep.subr.mxu0 0.0
        %2425 = vmatpush1.msra.mxu0 0.0
        %2426 = vmatprep.subr.mxu0 0.0
        %2427 = vmatpush1.msra.mxu0 0.0
        %2428 = vmatprep.subr.mxu0 0.0
        %2429 = vmatpush1.msra.mxu0 0.0
        %2430 = vmatprep.subr.mxu0 0.0
        %2431 = vmatpush1.msra.mxu0 0.0
        %2432 = vmatprep.subr.mxu0 0.0
        %2433 = vmatpush1.msra.mxu0 0.0
        %2434 = vmatprep.subr.mxu0 0.0
        %2435 = vmatpush1.msra.mxu0 0.0
        %2436 = vmatprep.subr.mxu0 0.0
        %2437 = vmatpush1.msra.mxu0 0.0
        %2438 = vmatprep.subr.mxu0 0.0
        %2439 = vmatpush1.msra.mxu0 0.0
        %2440 = vmatprep.subr.mxu0 0.0
        %2441 = vmatpush1.msra.mxu0 0.0
        %2442 = vmatprep.subr.mxu0 0.0
        %2443 = vmatpush1.msra.mxu0 0.0
        %2444 = vmatprep.subr.mxu0 0.0
        %2445 = vmatpush1.msra.mxu0 0.0
        %2446 = vmatprep.subr.mxu0 0.0
        %2447 = vmatpush1.msra.mxu0 0.0
        %2448 = vmatprep.subr.mxu0 0.0
        %2449 = vmatpush1.msra.mxu0 0.0
        %2450 = vmatprep.subr.mxu0 0.0
        %2451 = vmatpush1.msra.mxu0 0.0
        %2452 = vmatprep.subr.mxu0 0.0
        %2453 = vmatpush1.msra.mxu0 0.0
        %2454 = vmatprep.subr.mxu0 0.0
        %2455 = vmatpush1.msra.mxu0 0.0
        %2456 = vmatprep.subr.mxu0 0.0
        %2457 = vmatpush1.msra.mxu0 0.0
        %2458 = vmatprep.subr.mxu0 0.0
        %2459 = vmatpush1.msra.mxu0 0.0
        %2460 = vmatprep.subr.mxu0 0.0
        %2461 = vmatpush1.msra.mxu0 0.0
        %2462 = vmatprep.mubr.f32.mxu0 0.0
        %2463 = vmatmul.mubr.f32.gmra.mrb[0].mxu0 %v2396
        %v2464 = vpop.f32.mrb[0].mxu0
        %v2465 = vadd.f32 %v2392, %v2464
        %v2466 = vpop.f32.mrb[0].mxu0
        %2467 = vdwg.mxu0
        %s2468 = scalar_lea.vmem %s9, 2
        %v2469 = vld [vmem:[%s2468] sm:$0x1]
        %v2471 = vsel %vm1682, %v2469, 0
        %2473 = vmatprep.subr.mxu0 0.0
        %2474 = vmatpush1.msra.mxu0 %v1688
        %2475 = vmatprep.subr.mxu0 0.0
        %2476 = vmatpush1.msra.mxu0 0.0
        %2477 = vmatprep.subr.mxu0 0.0
        %2478 = vmatpush1.msra.mxu0 0.0
        %2479 = vmatprep.subr.mxu0 0.0
        %2480 = vmatpush1.msra.mxu0 0.0
        %2481 = vmatprep.subr.mxu0 0.0
        %2482 = vmatpush1.msra.mxu0 0.0
        %2483 = vmatprep.subr.mxu0 0.0
        %2484 = vmatpush1.msra.mxu0 0.0
        %2485 = vmatprep.subr.mxu0 0.0
        %2486 = vmatpush1.msra.mxu0 0.0
        %2487 = vmatprep.subr.mxu0 0.0
        %2488 = vmatpush1.msra.mxu0 0.0
        %2489 = vmatprep.subr.mxu0 0.0
        %2490 = vmatpush1.msra.mxu0 0.0
        %2491 = vmatprep.subr.mxu0 0.0
        %2492 = vmatpush1.msra.mxu0 0.0
        %2493 = vmatprep.subr.mxu0 0.0
        %2494 = vmatpush1.msra.mxu0 0.0
        %2495 = vmatprep.subr.mxu0 0.0
        %2496 = vmatpush1.msra.mxu0 0.0
        %2497 = vmatprep.subr.mxu0 0.0
        %2498 = vmatpush1.msra.mxu0 0.0
        %2499 = vmatprep.subr.mxu0 0.0
        %2500 = vmatpush1.msra.mxu0 0.0
        %2501 = vmatprep.subr.mxu0 0.0
        %2502 = vmatpush1.msra.mxu0 0.0
        %2503 = vmatprep.subr.mxu0 0.0
        %2504 = vmatpush1.msra.mxu0 0.0
        %2505 = vmatprep.subr.mxu0 0.0
        %2506 = vmatpush1.msra.mxu0 0.0
        %2507 = vmatprep.subr.mxu0 0.0
        %2508 = vmatpush1.msra.mxu0 0.0
        %2509 = vmatprep.subr.mxu0 0.0
        %2510 = vmatpush1.msra.mxu0 0.0
        %2511 = vmatprep.subr.mxu0 0.0
        %2512 = vmatpush1.msra.mxu0 0.0
        %2513 = vmatprep.subr.mxu0 0.0
        %2514 = vmatpush1.msra.mxu0 0.0
        %2515 = vmatprep.subr.mxu0 0.0
        %2516 = vmatpush1.msra.mxu0 0.0
        %2517 = vmatprep.subr.mxu0 0.0
        %2518 = vmatpush1.msra.mxu0 0.0
        %2519 = vmatprep.subr.mxu0 0.0
        %2520 = vmatpush1.msra.mxu0 0.0
        %2521 = vmatprep.subr.mxu0 0.0
        %2522 = vmatpush1.msra.mxu0 0.0
        %2523 = vmatprep.subr.mxu0 0.0
        %2524 = vmatpush1.msra.mxu0 0.0
        %2525 = vmatprep.subr.mxu0 0.0
        %2526 = vmatpush1.msra.mxu0 0.0
        %2527 = vmatprep.subr.mxu0 0.0
        %2528 = vmatpush1.msra.mxu0 0.0
        %2529 = vmatprep.subr.mxu0 0.0
        %2530 = vmatpush1.msra.mxu0 0.0
        %2531 = vmatprep.subr.mxu0 0.0
        %2532 = vmatpush1.msra.mxu0 0.0
        %2533 = vmatprep.subr.mxu0 0.0
        %2534 = vmatpush1.msra.mxu0 0.0
        %2535 = vmatprep.subr.mxu0 0.0
        %2536 = vmatpush1.msra.mxu0 0.0
        %2537 = vmatprep.mubr.f32.mxu0 0.0
        %2538 = vmatmul.mubr.f32.gmra.mrb[0].mxu0 %v2471
        %v2539 = vpop.f32.mrb[0].mxu0
        %v2540 = vadd.f32 0.0, %v2539
        %v2541 = vpop.f32.mrb[0].mxu0
        %2542 = vdwg.mxu0
        %s2543 = scalar_lea.vmem %s10, 128
        %v2544 = vld [vmem:[%s2543] sm:$0xff]
        %v2545 = vld [vmem:[%s2543 + $0x8] sm:$0xff]
        %v2546 = vld [vmem:[%s2543 + $0x10] sm:$0xff]
        %v2547 = vld [vmem:[%s2543 + $0x18] sm:$0xff]
        %v2548 = vld [vmem:[%s2543 + $0x20] sm:$0xff]
        %v2549 = vld [vmem:[%s2543 + $0x28] sm:$0xff]
        %v2550 = vld [vmem:[%s2543 + $0x30] sm:$0xff]
        %v2551 = vld [vmem:[%s2543 + $0x38] sm:$0xff]
        %v2553 = vsel %vm1208, %v2540, 0
        %2555 = vmatprep.subr.mxu0 0.0
        %2556 = vmatpush1.msra.mxu0 %v2544
        %2557 = vmatprep.subr.mxu0 0.0
        %2558 = vmatpush1.msra.mxu0 %v2545
        %2559 = vmatprep.subr.mxu0 0.0
        %2560 = vmatpush1.msra.mxu0 %v2546
        %2561 = vmatprep.subr.mxu0 0.0
        %2562 = vmatpush1.msra.mxu0 %v2547
        %2563 = vmatprep.subr.mxu0 0.0
        %2564 = vmatpush1.msra.mxu0 %v2548
        %2565 = vmatprep.subr.mxu0 0.0
        %2566 = vmatpush1.msra.mxu0 %v2549
        %2567 = vmatprep.subr.mxu0 0.0
        %2568 = vmatpush1.msra.mxu0 %v2550
        %2569 = vmatprep.subr.mxu0 0.0
        %2570 = vmatpush1.msra.mxu0 %v2551
        %2571 = vmatprep.subr.mxu0 0.0
        %2572 = vmatpush1.msra.mxu0 0.0
        %2573 = vmatprep.subr.mxu0 0.0
        %2574 = vmatpush1.msra.mxu0 0.0
        %2575 = vmatprep.subr.mxu0 0.0
        %2576 = vmatpush1.msra.mxu0 0.0
        %2577 = vmatprep.subr.mxu0 0.0
        %2578 = vmatpush1.msra.mxu0 0.0
        %2579 = vmatprep.subr.mxu0 0.0
        %2580 = vmatpush1.msra.mxu0 0.0
        %2581 = vmatprep.subr.mxu0 0.0
        %2582 = vmatpush1.msra.mxu0 0.0
        %2583 = vmatprep.subr.mxu0 0.0
        %2584 = vmatpush1.msra.mxu0 0.0
        %2585 = vmatprep.subr.mxu0 0.0
        %2586 = vmatpush1.msra.mxu0 0.0
        %2587 = vmatprep.subr.mxu0 0.0
        %2588 = vmatpush1.msra.mxu0 0.0
        %2589 = vmatprep.subr.mxu0 0.0
        %2590 = vmatpush1.msra.mxu0 0.0
        %2591 = vmatprep.subr.mxu0 0.0
        %2592 = vmatpush1.msra.mxu0 0.0
        %2593 = vmatprep.subr.mxu0 0.0
        %2594 = vmatpush1.msra.mxu0 0.0
        %2595 = vmatprep.subr.mxu0 0.0
        %2596 = vmatpush1.msra.mxu0 0.0
        %2597 = vmatprep.subr.mxu0 0.0
        %2598 = vmatpush1.msra.mxu0 0.0
        %2599 = vmatprep.subr.mxu0 0.0
        %2600 = vmatpush1.msra.mxu0 0.0
        %2601 = vmatprep.subr.mxu0 0.0
        %2602 = vmatpush1.msra.mxu0 0.0
        %2603 = vmatprep.subr.mxu0 0.0
        %2604 = vmatpush1.msra.mxu0 0.0
        %2605 = vmatprep.subr.mxu0 0.0
        %2606 = vmatpush1.msra.mxu0 0.0
        %2607 = vmatprep.subr.mxu0 0.0
        %2608 = vmatpush1.msra.mxu0 0.0
        %2609 = vmatprep.subr.mxu0 0.0
        %2610 = vmatpush1.msra.mxu0 0.0
        %2611 = vmatprep.subr.mxu0 0.0
        %2612 = vmatpush1.msra.mxu0 0.0
        %2613 = vmatprep.subr.mxu0 0.0
        %2614 = vmatpush1.msra.mxu0 0.0
        %2615 = vmatprep.subr.mxu0 0.0
        %2616 = vmatpush1.msra.mxu0 0.0
        %2617 = vmatprep.subr.mxu0 0.0
        %2618 = vmatpush1.msra.mxu0 0.0
        %2619 = vmatprep.mubr.f32.mxu0 0.0
        %2620 = vmatmul.mubr.f32.gmra.mrb[0].mxu0 %v2553
        %v2621 = vpop.f32.mrb[0].mxu0
        %v2622 = vadd.f32 0.0, %v2621
        %v2623 = vpop.f32.mrb[0].mxu0
        %2624 = vdwg.mxu0
        %v2625 = vadd.f32 %v2465, %v2622
        %s2626 = scalar_lea.vmem %s9, 3
        %v2627 = vld [vmem:[%s2626] sm:$0x1]
        %v2629 = vsel %vm1682, %v2627, 0
        %2631 = vmatprep.subr.mxu0 0.0
        %2632 = vmatpush1.msra.mxu0 %v1688
        %2633 = vmatprep.subr.mxu0 0.0
        %2634 = vmatpush1.msra.mxu0 0.0
        %2635 = vmatprep.subr.mxu0 0.0
        %2636 = vmatpush1.msra.mxu0 0.0
        %2637 = vmatprep.subr.mxu0 0.0
        %2638 = vmatpush1.msra.mxu0 0.0
        %2639 = vmatprep.subr.mxu0 0.0
        %2640 = vmatpush1.msra.mxu0 0.0
        %2641 = vmatprep.subr.mxu0 0.0
        %2642 = vmatpush1.msra.mxu0 0.0
        %2643 = vmatprep.subr.mxu0 0.0
        %2644 = vmatpush1.msra.mxu0 0.0
        %2645 = vmatprep.subr.mxu0 0.0
        %2646 = vmatpush1.msra.mxu0 0.0
        %2647 = vmatprep.subr.mxu0 0.0
        %2648 = vmatpush1.msra.mxu0 0.0
        %2649 = vmatprep.subr.mxu0 0.0
        %2650 = vmatpush1.msra.mxu0 0.0
        %2651 = vmatprep.subr.mxu0 0.0
        %2652 = vmatpush1.msra.mxu0 0.0
        %2653 = vmatprep.subr.mxu0 0.0
        %2654 = vmatpush1.msra.mxu0 0.0
        %2655 = vmatprep.subr.mxu0 0.0
        %2656 = vmatpush1.msra.mxu0 0.0
        %2657 = vmatprep.subr.mxu0 0.0
        %2658 = vmatpush1.msra.mxu0 0.0
        %2659 = vmatprep.subr.mxu0 0.0
        %2660 = vmatpush1.msra.mxu0 0.0
        %2661 = vmatprep.subr.mxu0 0.0
        %2662 = vmatpush1.msra.mxu0 0.0
        %2663 = vmatprep.subr.mxu0 0.0
        %2664 = vmatpush1.msra.mxu0 0.0
        %2665 = vmatprep.subr.mxu0 0.0
        %2666 = vmatpush1.msra.mxu0 0.0
        %2667 = vmatprep.subr.mxu0 0.0
        %2668 = vmatpush1.msra.mxu0 0.0
        %2669 = vmatprep.subr.mxu0 0.0
        %2670 = vmatpush1.msra.mxu0 0.0
        %2671 = vmatprep.subr.mxu0 0.0
        %2672 = vmatpush1.msra.mxu0 0.0
        %2673 = vmatprep.subr.mxu0 0.0
        %2674 = vmatpush1.msra.mxu0 0.0
        %2675 = vmatprep.subr.mxu0 0.0
        %2676 = vmatpush1.msra.mxu0 0.0
        %2677 = vmatprep.subr.mxu0 0.0
        %2678 = vmatpush1.msra.mxu0 0.0
        %2679 = vmatprep.subr.mxu0 0.0
        %2680 = vmatpush1.msra.mxu0 0.0
        %2681 = vmatprep.subr.mxu0 0.0
        %2682 = vmatpush1.msra.mxu0 0.0
        %2683 = vmatprep.subr.mxu0 0.0
        %2684 = vmatpush1.msra.mxu0 0.0
        %2685 = vmatprep.subr.mxu0 0.0
        %2686 = vmatpush1.msra.mxu0 0.0
        %2687 = vmatprep.subr.mxu0 0.0
        %2688 = vmatpush1.msra.mxu0 0.0
        %2689 = vmatprep.subr.mxu0 0.0
        %2690 = vmatpush1.msra.mxu0 0.0
        %2691 = vmatprep.subr.mxu0 0.0
        %2692 = vmatpush1.msra.mxu0 0.0
        %2693 = vmatprep.subr.mxu0 0.0
        %2694 = vmatpush1.msra.mxu0 0.0
        %2695 = vmatprep.mubr.f32.mxu0 0.0
        %2696 = vmatmul.mubr.f32.gmra.mrb[0].mxu0 %v2629
        %v2697 = vpop.f32.mrb[0].mxu0
        %v2698 = vadd.f32 0.0, %v2697
        %v2699 = vpop.f32.mrb[0].mxu0
        %2700 = vdwg.mxu0
        %s2701 = scalar_lea.vmem %s10, 192
        %v2702 = vld [vmem:[%s2701] sm:$0xff]
        %v2703 = vld [vmem:[%s2701 + $0x8] sm:$0xff]
        %v2704 = vld [vmem:[%s2701 + $0x10] sm:$0xff]
        %v2705 = vld [vmem:[%s2701 + $0x18] sm:$0xff]
        %v2706 = vld [vmem:[%s2701 + $0x20] sm:$0xff]
        %v2707 = vld [vmem:[%s2701 + $0x28] sm:$0xff]
        %v2708 = vld [vmem:[%s2701 + $0x30] sm:$0xff]
        %v2709 = vld [vmem:[%s2701 + $0x38] sm:$0xff]
        %v2711 = vsel %vm1208, %v2698, 0
        %2713 = vmatprep.subr.mxu0 0.0
        %2714 = vmatpush1.msra.mxu0 %v2702
        %2715 = vmatprep.subr.mxu0 0.0
        %2716 = vmatpush1.msra.mxu0 %v2703
        %2717 = vmatprep.subr.mxu0 0.0
        %2718 = vmatpush1.msra.mxu0 %v2704
        %2719 = vmatprep.subr.mxu0 0.0
        %2720 = vmatpush1.msra.mxu0 %v2705
        %2721 = vmatprep.subr.mxu0 0.0
        %2722 = vmatpush1.msra.mxu0 %v2706
        %2723 = vmatprep.subr.mxu0 0.0
        %2724 = vmatpush1.msra.mxu0 %v2707
        %2725 = vmatprep.subr.mxu0 0.0
        %2726 = vmatpush1.msra.mxu0 %v2708
        %2727 = vmatprep.subr.mxu0 0.0
        %2728 = vmatpush1.msra.mxu0 %v2709
        %2729 = vmatprep.subr.mxu0 0.0
        %2730 = vmatpush1.msra.mxu0 0.0
        %2731 = vmatprep.subr.mxu0 0.0
        %2732 = vmatpush1.msra.mxu0 0.0
        %2733 = vmatprep.subr.mxu0 0.0
        %2734 = vmatpush1.msra.mxu0 0.0
        %2735 = vmatprep.subr.mxu0 0.0
        %2736 = vmatpush1.msra.mxu0 0.0
        %2737 = vmatprep.subr.mxu0 0.0
        %2738 = vmatpush1.msra.mxu0 0.0
        %2739 = vmatprep.subr.mxu0 0.0
        %2740 = vmatpush1.msra.mxu0 0.0
        %2741 = vmatprep.subr.mxu0 0.0
        %2742 = vmatpush1.msra.mxu0 0.0
        %2743 = vmatprep.subr.mxu0 0.0
        %2744 = vmatpush1.msra.mxu0 0.0
        %2745 = vmatprep.subr.mxu0 0.0
        %2746 = vmatpush1.msra.mxu0 0.0
        %2747 = vmatprep.subr.mxu0 0.0
        %2748 = vmatpush1.msra.mxu0 0.0
        %2749 = vmatprep.subr.mxu0 0.0
        %2750 = vmatpush1.msra.mxu0 0.0
        %2751 = vmatprep.subr.mxu0 0.0
        %2752 = vmatpush1.msra.mxu0 0.0
        %2753 = vmatprep.subr.mxu0 0.0
        %2754 = vmatpush1.msra.mxu0 0.0
        %2755 = vmatprep.subr.mxu0 0.0
        %2756 = vmatpush1.msra.mxu0 0.0
        %2757 = vmatprep.subr.mxu0 0.0
        %2758 = vmatpush1.msra.mxu0 0.0
        %2759 = vmatprep.subr.mxu0 0.0
        %2760 = vmatpush1.msra.mxu0 0.0
        %2761 = vmatprep.subr.mxu0 0.0
        %2762 = vmatpush1.msra.mxu0 0.0
        %2763 = vmatprep.subr.mxu0 0.0
        %2764 = vmatpush1.msra.mxu0 0.0
        %2765 = vmatprep.subr.mxu0 0.0
        %2766 = vmatpush1.msra.mxu0 0.0
        %2767 = vmatprep.subr.mxu0 0.0
        %2768 = vmatpush1.msra.mxu0 0.0
        %2769 = vmatprep.subr.mxu0 0.0
        %2770 = vmatpush1.msra.mxu0 0.0
        %2771 = vmatprep.subr.mxu0 0.0
        %2772 = vmatpush1.msra.mxu0 0.0
        %2773 = vmatprep.subr.mxu0 0.0
        %2774 = vmatpush1.msra.mxu0 0.0
        %2775 = vmatprep.subr.mxu0 0.0
        %2776 = vmatpush1.msra.mxu0 0.0
        %2777 = vmatprep.mubr.f32.mxu0 0.0
        %2778 = vmatmul.mubr.f32.gmra.mrb[0].mxu0 %v2711
        %v2779 = vpop.f32.mrb[0].mxu0
        %v2780 = vadd.f32 0.0, %v2779
        %v2781 = vpop.f32.mrb[0].mxu0
        %2782 = vdwg.mxu0
        %v2783 = vadd.f32 %v2625, %v2780
        %vm2784 = vcmask 27648
        %2785 = vst.msk [vmem:[%s410] sm:$0xf] %vm2784, %v2155
        %vm2786 = vcmask 32768
        %2787 = vst.msk [vmem:[%s416] sm:$0x1] %vm2786, %v2783
        %s2788 = sand.u32 %s274, 1
        %s2789 = scalar_lea.sflag [#allocation3], %s2788
        %s2790 = sand.u32 %s274, 1
        %s2791 = smul.addr %s2790, 4
        %s2792 = scalar_lea.vmem [#allocation2], %s2791
        %s2793 = sand.u32 %s300, 1
        %s2794 = scalar_lea.sflag [#allocation5], %s2793
        %s2795 = sand.u32 %s300, 1
        %s2796 = scalar_lea.vmem [#allocation4], %s2795
        // Predicated region
        $region65: #{tpu_custom_call.1} parent=63 // pred_check
          %p2797 = pneg %p284
        $region66: #{tpu_custom_call.1} parent=63 // pred_check_branch
          %2799 = sbr.rel (%p2797) target = $region68
        $region67: #{tpu_custom_call.1} parent=63 // pred_region
          %s2801 = ssub.s32 64, 64
          %2802 = vsyncadd %s2789, %s2801
          %s2803 = smul.addr %s30, 64
          %s2804 = scalar_lea.hbm %s11, %s2803
          %s2806 = sshll.u32 %s2792, 4
          %s2807 = int_to_ptr.vmem [resolvable:$true] %s2806
          %2809 = dma.vmem_to_hbm [thread:$0]  %s2807, 64, %s2804, %s2789
        $region68: #{tpu_custom_call.1} parent=63 // pred_fallthru
          _
        // Predicated region
        $region69: #{tpu_custom_call.1} parent=63 // pred_check
          %p2810 = pneg %p310
        $region70: #{tpu_custom_call.1} parent=63 // pred_check_branch
          %2812 = sbr.rel (%p2810) target = $region72
        $region71: #{tpu_custom_call.1} parent=63 // pred_region
          %s2814 = ssub.s32 16, 16
          %2815 = vsyncadd %s2794, %s2814
          %s2816 = smul.addr %s30, 16
          %s2817 = scalar_lea.hbm %s12, %s2816
          %s2819 = sshll.u32 %s2796, 4
          %s2820 = int_to_ptr.vmem [resolvable:$true] %s2819
          %2822 = dma.vmem_to_hbm [thread:$0]  %s2820, 16, %s2817, %s2794
        $region72: #{tpu_custom_call.1} parent=63 // pred_fallthru
          _
      $region64: #{tpu_custom_call.1} parent=5 // pred_fallthru
        _
      %p2823 = scmp.le.s32.totalorder 2, %s25
      // Predicated region
      $region73: #{tpu_custom_call.1} parent=5 // pred_check
        %p2824 = pneg %p2823
      $region74: #{tpu_custom_call.1} parent=5 // pred_check_branch
        %2826 = sbr.rel (%p2824) target = $region76
      $region75: #{tpu_custom_call.1} parent=5 // pred_region
        %s2827 = ssub.s32 %s25, 2
        // Predicated region
        $region77: #{tpu_custom_call.1} parent=75 // pred_check
          %p2828 = pneg %p290
        $region78: #{tpu_custom_call.1} parent=75 // pred_check_branch
          %2830 = sbr.rel (%p2828) target = $region80
        $region79: #{tpu_custom_call.1} parent=75 // pred_region
          %s2831 = sand.u32 %s275, 1
          %s2832 = scalar_lea.sflag [#allocation3], %s2831
          %s2833 = sand.u32 %s275, 1
          %s2834 = smul.addr %s2833, 4
          %s2835 = scalar_lea.vmem [#allocation2], %s2834
          %2836 = dma.done %s2832, 64
        $region80: #{tpu_custom_call.1} parent=75 // pred_fallthru
          _
        // Predicated region
        $region81: #{tpu_custom_call.1} parent=75 // pred_check
          %p2837 = pneg %p316
        $region82: #{tpu_custom_call.1} parent=75 // pred_check_branch
          %2839 = sbr.rel (%p2837) target = $region84
        $region83: #{tpu_custom_call.1} parent=75 // pred_region
          %s2840 = sand.u32 %s301, 1
          %s2841 = scalar_lea.sflag [#allocation5], %s2840
          %s2842 = sand.u32 %s301, 1
          %s2843 = scalar_lea.vmem [#allocation4], %s2842
          %2844 = dma.done %s2841, 16
        $region84: #{tpu_custom_call.1} parent=75 // pred_fallthru
          _
      $region76: #{tpu_custom_call.1} parent=5 // pred_fallthru
        _
    $region6: #{tpu_custom_call.1} parent=1 // loop_footer
      %s29 = sadd.s32 1, %s25
    $region7: #{tpu_custom_call.1} parent=1 // loop_footer_branch
      %24 = sbr.rel target = $region3
    $region8: #{tpu_custom_call.1} parent=1 // loop_exit
      _
    %2845 = vsyncpa [#allocation3], 1
    %s2846 = scalar_lea.sflag [#allocation3], 1
    %2847 = vsyncpa %s2846, 1
    %2848 = vsyncpa [#allocation5], 1
    %s2849 = scalar_lea.sflag [#allocation5], 1
    %2850 = vsyncpa %s2849, 1

</llo_original>
